<compile_context>
chip_gen: v6e
topology: v6e:2x2x1
jax: 0.10.0
libtpu: 0.0.40
codegen_flags: <defaults>
</compile_context>

<pallas_src>
import jax
import jax.numpy as jnp
from jax.experimental import pallas as pl
from jax.experimental.pallas import tpu as pltpu

FC1_DIMS = 1024
FC2_DIMS = 1024
_TB_MAX = 1024  # batch tile cap; intermediates at tb=1024 stay well inside 32 MiB VMEM


def _critic_kernel(x_ref, w1_ref, b1_ref, w2_ref, b2_ref, w3t_ref, b3_ref, out_ref):
    # fc1: bf16 x bf16 MXU matmul with f32 accumulation; bias+ReLU in f32, then the
    # activation is kept in bf16 (it is the fc2 MXU input anyway and halves the
    # largest live intermediate).
    x = x_ref[...].astype(jnp.bfloat16)
    h1 = jnp.dot(x, w1_ref[...], preferred_element_type=jnp.float32) + b1_ref[...]
    h1 = jnp.maximum(h1, 0.0).astype(jnp.bfloat16)

    # fc2 + ReLU (f32 accumulation; h2 is consumed immediately below, keep f32).
    h2 = jnp.dot(h1, w2_ref[...], preferred_element_type=jnp.float32) + b2_ref[...]
    h2 = jnp.maximum(h2, 0.0)

    # Value head (out_features == 1): VPU multiply + lane reduction instead of a
    # lane-sparse N=1 MXU matmul. The (tb, 1) result is transposed (XLU) into a
    # lane-dense (1, tb) row so the output block stores with unmasked vst.
    v = jnp.sum(h2 * w3t_ref[...], axis=-1, keepdims=True) + b3_ref[...]  # (tb, 1)
    out_ref[...] = v.T.reshape(out_ref.shape).astype(out_ref.dtype)


def _round_up(n, m):
    return ((n + m - 1) // m) * m


def critic_forward(x, params):
    """x: [B, input_dims] float32 -> value: [B, 1] float32."""
    w1, b1, w2, b2, w3t, b3 = params
    B, D = x.shape

    # Tile selection:
    #  - tiny B: single tile rounded to the sublane multiple (8);
    #  - otherwise: at least 2 grid steps (so v7x megacore can split the batch),
    #    capped at _TB_MAX to amortize the per-grid-step fixed overhead.
    b8 = _round_up(B, 8)
    if B <= 8:
        tb = b8
    else:
        tb = min(_TB_MAX, _round_up(pl.cdiv(b8, 2), 8))
    b_pad = _round_up(B, tb)
    if b_pad != B:
        x = jnp.pad(x, ((0, b_pad - B), (0, 0)))
    num_tiles = b_pad // tb

    flops = 2 * b_pad * (D * FC1_DIMS + FC1_DIMS * FC2_DIMS + FC2_DIMS)
    bytes_accessed = (
        w1.size * w1.dtype.itemsize + w2.size * w2.dtype.itemsize
        + (b1.size + b2.size + w3t.size + b3.size) * 4
        + b_pad * D * 4 + b_pad * 4
    )

    def _const(shape):
        # Weights/biases: same block every grid step -> fetched once into VMEM;
        # Buffered(1) avoids allocating a useless second buffer for them.
        return pl.BlockSpec(shape, lambda i: (0,) * len(shape),
                            pipeline_mode=pl.Buffered(1))

    out = pl.pallas_call(
        _critic_kernel,
        out_shape=jax.ShapeDtypeStruct((num_tiles, 1, tb), jnp.float32),
        grid=(num_tiles,),
        in_specs=[
            pl.BlockSpec((tb, D), lambda i: (i, 0)),  # x tile (pipelined, 2 buffers)
            _const((D, FC1_DIMS)),                    # w1 (bf16, VMEM-resident)
            _const((1, FC1_DIMS)),                    # b1
            _const((FC1_DIMS, FC2_DIMS)),             # w2 (bf16, VMEM-resident)
            _const((1, FC2_DIMS)),                    # b2
            _const((1, FC2_DIMS)),                    # w3^T
            _const((1, 1)),                           # b3
        ],
        out_specs=pl.BlockSpec((1, 1, tb), lambda i: (i, 0, 0)),  # lane-dense rows
        compiler_params=pltpu.CompilerParams(
            dimension_semantics=("parallel",),
            vmem_limit_bytes=32 * 1024 * 1024),
        cost_estimate=pl.CostEstimate(
            flops=flops, transcendentals=0, bytes_accessed=bytes_accessed),
    )(x, w1, b1, w2, b2, w3t, b3)

    return out.reshape(b_pad, 1)[:B]


def init_params(key, input_dims):
    """Deterministic PyTorch-style init: U(-1/sqrt(fan_in), 1/sqrt(fan_in))."""
    ks = jax.random.split(key, 6)

    def lin(kw, kb, fan_in, fan_out):
        bound = 1.0 / jnp.sqrt(jnp.float32(fan_in))
        w = jax.random.uniform(kw, (fan_in, fan_out), jnp.float32, -bound, bound)
        b = jax.random.uniform(kb, (1, fan_out), jnp.float32, -bound, bound)
        return w, b

    w1, b1 = lin(ks[0], ks[1], input_dims, FC1_DIMS)
    w2, b2 = lin(ks[2], ks[3], FC1_DIMS, FC2_DIMS)
    w3, b3 = lin(ks[4], ks[5], FC2_DIMS, 1)
    # bf16 storage for the two big weight matrices (kernel is weight-DMA-bound for
    # small batches); value-head weight pre-transposed to [1, FC2] for the VPU/XLU
    # reduction.
    return (w1.astype(jnp.bfloat16), b1,
            w2.astype(jnp.bfloat16), b2,
            w3.T, b3.reshape(1, 1))


def _reference(x, params):
    w1, b1, w2, b2, w3t, b3 = params
    h = jnp.maximum(x @ w1.astype(jnp.float32) + b1, 0.0)
    h = jnp.maximum(h @ w2.astype(jnp.float32) + b2, 0.0)
    return jnp.sum(h * w3t, axis=-1, keepdims=True) + b3


if __name__ == "__main__":
    key = jax.random.PRNGKey(0)
    k_x, k_x2, k_p = jax.random.split(key, 3)

    input_dims = 32  # small observation dim, consistent with a PPO continuous-control critic
    params = init_params(k_p, input_dims)

    # Small batch: single-tile path.
    batch = 8
    x = jax.random.normal(k_x, (batch, input_dims), jnp.float32)
    value = jax.block_until_ready(critic_forward(x, params))
    assert value.shape == (batch, 1)
    # bf16 matmul inputs with f32 accumulation -> loosened tolerance vs the f32 reference.
    assert jnp.allclose(value, _reference(x, params), atol=3e-2, rtol=3e-2)

    # Larger batch: exercises padding, the multi-tile grid (>=2 steps) and the
    # lane-dense output reshape.
    batch2 = 300
    x2 = jax.random.normal(k_x2, (batch2, input_dims), jnp.float32)
    value2 = jax.block_until_ready(critic_forward(x2, params))
    assert value2.shape == (batch2, 1)
    assert jnp.allclose(value2, _reference(x2, params), atol=3e-2, rtol=3e-2)

    print("KERNEL_OK")
</pallas_src>

<mosaic_0001>
module attributes {stable_mosaic.version = 11 : i64} {
  func.func @_critic_kernel(%arg0: i32, %arg1: memref<8x32xf32, #tpu.memory_space<vmem>>, %arg2: memref<32x1024xbf16, #tpu.memory_space<vmem>>, %arg3: memref<1x1024xf32, #tpu.memory_space<vmem>>, %arg4: memref<1024x1024xbf16, #tpu.memory_space<vmem>>, %arg5: memref<1x1024xf32, #tpu.memory_space<vmem>>, %arg6: memref<1x1024xf32, #tpu.memory_space<vmem>>, %arg7: memref<1x1xf32, #tpu.memory_space<vmem>>, %arg8: memref<1x1x8xf32, #tpu.memory_space<vmem>>) attributes {dimension_semantics = [#tpu.dimension_semantics<parallel>], iteration_bounds = array<i64: 1>, scalar_prefetch = 0 : i64, scratch_operands = 0 : i64, tpu.core_type = #tpu.core_type<tc>, window_params = [{transform_indices = @transform_0, window_bounds = array<i64: 8, 32>}, {pipeline_mode = #tpu.pipeline_mode<synchronous>, transform_indices = @transform_1, window_bounds = array<i64: 32, 1024>}, {pipeline_mode = #tpu.pipeline_mode<synchronous>, transform_indices = @transform_2, window_bounds = array<i64: 1, 1024>}, {pipeline_mode = #tpu.pipeline_mode<synchronous>, transform_indices = @transform_3, window_bounds = array<i64: 1024, 1024>}, {pipeline_mode = #tpu.pipeline_mode<synchronous>, transform_indices = @transform_4, window_bounds = array<i64: 1, 1024>}, {pipeline_mode = #tpu.pipeline_mode<synchronous>, transform_indices = @transform_5, window_bounds = array<i64: 1, 1024>}, {pipeline_mode = #tpu.pipeline_mode<synchronous>, transform_indices = @transform_6, window_bounds = array<i64: 1, 1>}, {transform_indices = @transform_7, window_bounds = array<i64: 1, 1, 8>}]} {
    %c0 = arith.constant 0 : index
    %c0_0 = arith.constant 0 : index
    %0 = vector.load %arg1[%c0, %c0_0] : memref<8x32xf32, #tpu.memory_space<vmem>>, vector<8x32xf32>
    %1 = arith.truncf %0 : vector<8x32xf32> to vector<8x32xbf16>
    %c0_1 = arith.constant 0 : index
    %c0_2 = arith.constant 0 : index
    %2 = vector.load %arg2[%c0_1, %c0_2] : memref<32x1024xbf16, #tpu.memory_space<vmem>>, vector<32x1024xbf16>
    %cst = arith.constant dense<0.000000e+00> : vector<8x1024xf32>
    %3 = tpu.matmul %1, %2, %cst {dimension_numbers = #tpu.dot_dimension_numbers<[1], [0], [0], [1], [0, 0, 1, 1], [], []>} : vector<8x32xbf16>, vector<32x1024xbf16>, vector<8x1024xf32> -> vector<8x1024xf32>
    %c0_3 = arith.constant 0 : index
    %c0_4 = arith.constant 0 : index
    %4 = vector.load %arg3[%c0_3, %c0_4] : memref<1x1024xf32, #tpu.memory_space<vmem>>, vector<1x1024xf32>
    %5 = vector.broadcast %4 : vector<1x1024xf32> to vector<8x1024xf32>
    %6 = arith.addf %3, %5 : vector<8x1024xf32>
    %cst_5 = arith.constant 0.000000e+00 : f32
    %7 = vector.broadcast %cst_5 : f32 to vector<8x1024xf32>
    %8 = arith.maximumf %6, %7 : vector<8x1024xf32>
    %9 = arith.truncf %8 : vector<8x1024xf32> to vector<8x1024xbf16>
    %c0_6 = arith.constant 0 : index
    %c0_7 = arith.constant 0 : index
    %10 = vector.load %arg4[%c0_6, %c0_7] : memref<1024x1024xbf16, #tpu.memory_space<vmem>>, vector<1024x1024xbf16>
    %cst_8 = arith.constant dense<0.000000e+00> : vector<8x1024xf32>
    %11 = tpu.matmul %9, %10, %cst_8 {dimension_numbers = #tpu.dot_dimension_numbers<[1], [0], [0], [1], [0, 0, 1, 1], [], []>} : vector<8x1024xbf16>, vector<1024x1024xbf16>, vector<8x1024xf32> -> vector<8x1024xf32>
    %c0_9 = arith.constant 0 : index
    %c0_10 = arith.constant 0 : index
    %12 = vector.load %arg5[%c0_9, %c0_10] : memref<1x1024xf32, #tpu.memory_space<vmem>>, vector<1x1024xf32>
    %13 = vector.broadcast %12 : vector<1x1024xf32> to vector<8x1024xf32>
    %14 = arith.addf %11, %13 : vector<8x1024xf32>
    %cst_11 = arith.constant 0.000000e+00 : f32
    %15 = vector.broadcast %cst_11 : f32 to vector<8x1024xf32>
    %16 = arith.maximumf %14, %15 : vector<8x1024xf32>
    %c0_12 = arith.constant 0 : index
    %c0_13 = arith.constant 0 : index
    %17 = vector.load %arg6[%c0_12, %c0_13] : memref<1x1024xf32, #tpu.memory_space<vmem>>, vector<1x1024xf32>
    %18 = vector.broadcast %17 : vector<1x1024xf32> to vector<8x1024xf32>
    %19 = arith.mulf %16, %18 : vector<8x1024xf32>
    %cst_14 = arith.constant dense<0.000000e+00> : vector<8xf32>
    %20 = vector.multi_reduction <add>, %19, %cst_14 [1] : vector<8x1024xf32> to vector<8xf32>
    %21 = vector.shape_cast %20 : vector<8xf32> to vector<8x1xf32>
    %c0_15 = arith.constant 0 : index
    %c0_16 = arith.constant 0 : index
    %22 = vector.load %arg7[%c0_15, %c0_16] : memref<1x1xf32, #tpu.memory_space<vmem>>, vector<1x1xf32>
    %23 = vector.broadcast %22 : vector<1x1xf32> to vector<8x1xf32>
    %24 = arith.addf %21, %23 : vector<8x1xf32>
    %25 = tpu.transpose %24, [1, 0] : vector<8x1xf32> -> vector<1x8xf32>
    %26 = vector.shape_cast %25 : vector<1x8xf32> to vector<1x1x8xf32>
    %c0_17 = arith.constant 0 : index
    %c0_18 = arith.constant 0 : index
    %c0_19 = arith.constant 0 : index
    %27 = vector.load %arg8[%c0_17, %c0_18, %c0_19] : memref<1x1x8xf32, #tpu.memory_space<vmem>>, vector<1x1x8xf32>
    tpu.vector_store %arg8[%c0_17, %c0_18, %c0_19], %26 {strides = array<i32>} : memref<1x1x8xf32, #tpu.memory_space<vmem>>, vector<1x1x8xf32>,
    return
  }
  func.func @transform_0(%arg0: i32) -> (i32, i32) {
    %c0_i32 = arith.constant 0 : i32
    %c0_i32_0 = arith.constant 0 : i32
    return %arg0, %c0_i32 : i32, i32
  }
  func.func @transform_1(%arg0: i32) -> (i32, i32) {
    %c0_i32 = arith.constant 0 : i32
    %c0_i32_0 = arith.constant 0 : i32
    %c0_i32_1 = arith.constant 0 : i32
    return %c0_i32, %c0_i32_0 : i32, i32
  }
  func.func @transform_2(%arg0: i32) -> (i32, i32) {
    %c0_i32 = arith.constant 0 : i32
    %c0_i32_0 = arith.constant 0 : i32
    %c0_i32_1 = arith.constant 0 : i32
    return %c0_i32, %c0_i32_0 : i32, i32
  }
  func.func @transform_3(%arg0: i32) -> (i32, i32) {
    %c0_i32 = arith.constant 0 : i32
    %c0_i32_0 = arith.constant 0 : i32
    %c0_i32_1 = arith.constant 0 : i32
    return %c0_i32, %c0_i32_0 : i32, i32
  }
  func.func @transform_4(%arg0: i32) -> (i32, i32) {
    %c0_i32 = arith.constant 0 : i32
    %c0_i32_0 = arith.constant 0 : i32
    %c0_i32_1 = arith.constant 0 : i32
    return %c0_i32, %c0_i32_0 : i32, i32
  }
  func.func @transform_5(%arg0: i32) -> (i32, i32) {
    %c0_i32 = arith.constant 0 : i32
    %c0_i32_0 = arith.constant 0 : i32
    %c0_i32_1 = arith.constant 0 : i32
    return %c0_i32, %c0_i32_0 : i32, i32
  }
  func.func @transform_6(%arg0: i32) -> (i32, i32) {
    %c0_i32 = arith.constant 0 : i32
    %c0_i32_0 = arith.constant 0 : i32
    %c0_i32_1 = arith.constant 0 : i32
    return %c0_i32, %c0_i32_0 : i32, i32
  }
  func.func @transform_7(%arg0: i32) -> (i32, i32, i32) {
    %c0_i32 = arith.constant 0 : i32
    %c0_i32_0 = arith.constant 0 : i32
    %c0_i32_1 = arith.constant 0 : i32
    return %arg0, %c0_i32, %c0_i32_0 : i32, i32, i32
  }
}

</mosaic_0001>

<llo_original>
// kernel: tpu_custom_call.1
$region0: #{tpu_custom_call.1}
  #allocation0 [shape = 'u32[]', space=smem, size = 0x4, offset = 0x4, fixed_abs, tag = 'smem constant byte address 0x4 - core index']
  #allocation1 [shape = 'u32[144,128]{1,0:T(1,128)}', space=vmem, size = 0x12000, scoped, tag = 'internal scratch']
  #allocation2 [shape = 'f32[1,1]{1,0:T(1,128)S(1)}', space=vmem, size = 0x200, scoped, tag = 'scoped memory for tpu_custom_call.1']
  %s0 = inlined_call_operand.hbm [shape: f32[8,32], index: 0, kind: input, shape index: {}]
  %s1 = inlined_call_operand.hbm [shape: bf16[32,1024], index: 1, kind: input, shape index: {}]
  %s2 = inlined_call_operand.hbm [shape: f32[1,1024], index: 2, kind: input, shape index: {}]
  %s3 = inlined_call_operand.hbm [shape: bf16[1024,1024], index: 3, kind: input, shape index: {}]
  %s4 = inlined_call_operand.hbm [shape: f32[1,1024], index: 4, kind: input, shape index: {}]
  %s5 = inlined_call_operand.hbm [shape: f32[1,1024], index: 5, kind: input, shape index: {}]
  %s6 = inlined_call_operand.<no memory space> [shape: f32[1,1], index: 6, kind: input, shape index: {}]
  %s7 = inlined_call_operand.hbm [shape: f32[1,1,8], index: 7, kind: output, shape index: {}]
  %s8 = sld [smem:[#allocation0]]
  $region62: #{tpu_custom_call.1} parent=0
    _
  %s10 = ssub.s32 1, %s8
  %s11 = scalar_select 0, %s10, %s8
  %v12 = vstv %s6
  %13 = vst [vmem:[#allocation2] sm:$0x1] %v12
  $region1: #{tpu_custom_call.1} parent=0
    #allocation3 [shape = 'u8[4096]{0}', space=vmem, size = 0x1000, scoped, tag = 'input window, operand 0, single buffered']
    #allocation4 [shape = 's32[1]{0}', space=sflag, size = 0x4, scoped, tag = 'scoped memory for tpu_custom_call.1']
    #allocation5 [shape = 's32[1]{0}', space=sflag, size = 0x4, scoped, tag = 'scoped memory for tpu_custom_call.1']
    #allocation6 [shape = 'u8[65536]{0}', space=vmem, size = 0x10000, scoped, tag = 'input window, operand 1, single buffered']
    #allocation7 [shape = 's32[1]{0}', space=sflag, size = 0x4, scoped, tag = 'scoped memory for tpu_custom_call.1']
    #allocation8 [shape = 'u8[4096]{0}', space=vmem, size = 0x1000, scoped, tag = 'input window, operand 2, single buffered']
    #allocation9 [shape = 'u8[2097152]{0}', space=vmem, size = 0x200000, scoped, tag = 'input window, operand 3, single buffered']
    #allocation10 [shape = 's32[1]{0}', space=sflag, size = 0x4, scoped, tag = 'scoped memory for tpu_custom_call.1']
    #allocation11 [shape = 'u8[4096]{0}', space=vmem, size = 0x1000, scoped, tag = 'input window, operand 4, single buffered']
    #allocation12 [shape = 'u8[4096]{0}', space=vmem, size = 0x1000, scoped, tag = 'input window, operand 5, single buffered']
    #allocation13 [shape = 's32[1]{0}', space=sflag, size = 0x4, scoped, tag = 'scoped memory for tpu_custom_call.1']
    #allocation14 [shape = 'u8[512]{0}', space=vmem, size = 0x400, scoped, tag = 'output window, operand 0, single buffered']
    %14 = vsyncpa [#allocation4], 0
    %15 = vsyncpa [#allocation7], 0
    %16 = vsyncpa [#allocation10], 0
    %17 = vsyncpa [#allocation13], 0
    %18 = vsyncpa [#allocation5], 0
    // Predicated region
    $region2: #{tpu_custom_call.1} parent=1 // pred_check
      _
    $region3: #{tpu_custom_call.1} parent=1 // pred_check_branch
      %20 = sbr.rel (0) target = $region5
    $region4: #{tpu_custom_call.1} parent=1 // pred_region
      %s22 = ssub.s32 128, 128
      %23 = vsyncadd [#allocation4], %s22
      %s25 = sshll.u32 [#allocation3], 4
      %s26 = int_to_ptr.vmem [resolvable:$true] %s25
      %28 = dma.hbm_to_vmem [thread:$0]  %s0, 128, %s26, [#allocation4]
    $region5: #{tpu_custom_call.1} parent=1 // pred_fallthru
      _
    // Predicated region
    $region6: #{tpu_custom_call.1} parent=1 // pred_check
      _
    $region7: #{tpu_custom_call.1} parent=1 // pred_check_branch
      %30 = sbr.rel (0) target = $region9
    $region8: #{tpu_custom_call.1} parent=1 // pred_region
      %s32 = ssub.s32 2048, 2048
      %33 = vsyncadd [#allocation7], %s32
      %s34 = sshll.u32 [#allocation6], 4
      %s35 = int_to_ptr.vmem [resolvable:$true] %s34
      %40 = dma.hbm_to_vmem [thread:$0]  %s1, 2048, %s35, [#allocation7], 512, 512, 32
    $region9: #{tpu_custom_call.1} parent=1 // pred_fallthru
      _
    // Predicated region
    $region10: #{tpu_custom_call.1} parent=1 // pred_check
      _
    $region11: #{tpu_custom_call.1} parent=1 // pred_check_branch
      %42 = sbr.rel (0) target = $region13
    $region12: #{tpu_custom_call.1} parent=1 // pred_region
      %s44 = ssub.s32 128, 128
      %45 = vsyncadd [#allocation7], %s44
      %s47 = sshll.u32 [#allocation8], 4
      %s48 = int_to_ptr.vmem [resolvable:$true] %s47
      %50 = dma.hbm_to_vmem [thread:$0]  %s2, 128, %s48, [#allocation7]
    $region13: #{tpu_custom_call.1} parent=1 // pred_fallthru
      _
    // Predicated region
    $region14: #{tpu_custom_call.1} parent=1 // pred_check
      _
    $region15: #{tpu_custom_call.1} parent=1 // pred_check_branch
      %52 = sbr.rel (0) target = $region17
    $region16: #{tpu_custom_call.1} parent=1 // pred_region
      %s54 = ssub.s32 65536, 65536
      %55 = vsyncadd [#allocation10], %s54
      %s56 = sshll.u32 [#allocation9], 4
      %s57 = int_to_ptr.vmem [resolvable:$true] %s56
      %62 = dma.hbm_to_vmem [thread:$0]  %s3, 65536, %s57, [#allocation10], 512, 512, 32
    $region17: #{tpu_custom_call.1} parent=1 // pred_fallthru
      _
    // Predicated region
    $region18: #{tpu_custom_call.1} parent=1 // pred_check
      _
    $region19: #{tpu_custom_call.1} parent=1 // pred_check_branch
      %64 = sbr.rel (0) target = $region21
    $region20: #{tpu_custom_call.1} parent=1 // pred_region
      %s66 = ssub.s32 128, 128
      %67 = vsyncadd [#allocation10], %s66
      %s69 = sshll.u32 [#allocation11], 4
      %s70 = int_to_ptr.vmem [resolvable:$true] %s69
      %72 = dma.hbm_to_vmem [thread:$0]  %s4, 128, %s70, [#allocation10]
    $region21: #{tpu_custom_call.1} parent=1 // pred_fallthru
      _
    // Predicated region
    $region22: #{tpu_custom_call.1} parent=1 // pred_check
      _
    $region23: #{tpu_custom_call.1} parent=1 // pred_check_branch
      %74 = sbr.rel (0) target = $region25
    $region24: #{tpu_custom_call.1} parent=1 // pred_region
      %s76 = ssub.s32 128, 128
      %77 = vsyncadd [#allocation13], %s76
      %s79 = sshll.u32 [#allocation12], 4
      %s80 = int_to_ptr.vmem [resolvable:$true] %s79
      %82 = dma.hbm_to_vmem [thread:$0]  %s5, 128, %s80, [#allocation13]
    $region25: #{tpu_custom_call.1} parent=1 // pred_fallthru
      _
    // Predicated region
    $region26: #{tpu_custom_call.1} parent=1 // pred_check
      _
    $region27: #{tpu_custom_call.1} parent=1 // pred_check_branch
      %84 = sbr.rel (0) target = $region29
    $region28: #{tpu_custom_call.1} parent=1 // pred_region
      _
    $region29: #{tpu_custom_call.1} parent=1 // pred_fallthru
      _
    // Predicated region
    $region30: #{tpu_custom_call.1} parent=1 // pred_check
      _
    $region31: #{tpu_custom_call.1} parent=1 // pred_check_branch
      %86 = sbr.rel (0) target = $region33
    $region32: #{tpu_custom_call.1} parent=1 // pred_region
      %87 = dma.done [#allocation4], 128
    $region33: #{tpu_custom_call.1} parent=1 // pred_fallthru
      _
    // Predicated region
    $region34: #{tpu_custom_call.1} parent=1 // pred_check
      _
    $region35: #{tpu_custom_call.1} parent=1 // pred_check_branch
      %89 = sbr.rel (0) target = $region37
    $region36: #{tpu_custom_call.1} parent=1 // pred_region
      %90 = dma.done [#allocation7], 2048
    $region37: #{tpu_custom_call.1} parent=1 // pred_fallthru
      _
    // Predicated region
    $region38: #{tpu_custom_call.1} parent=1 // pred_check
      _
    $region39: #{tpu_custom_call.1} parent=1 // pred_check_branch
      %92 = sbr.rel (0) target = $region41
    $region40: #{tpu_custom_call.1} parent=1 // pred_region
      %93 = dma.done [#allocation7], 128
    $region41: #{tpu_custom_call.1} parent=1 // pred_fallthru
      _
    // Predicated region
    $region42: #{tpu_custom_call.1} parent=1 // pred_check
      _
    $region43: #{tpu_custom_call.1} parent=1 // pred_check_branch
      %95 = sbr.rel (0) target = $region45
    $region44: #{tpu_custom_call.1} parent=1 // pred_region
      %96 = dma.done [#allocation10], 65536
    $region45: #{tpu_custom_call.1} parent=1 // pred_fallthru
      _
    // Predicated region
    $region46: #{tpu_custom_call.1} parent=1 // pred_check
      _
    $region47: #{tpu_custom_call.1} parent=1 // pred_check_branch
      %98 = sbr.rel (0) target = $region49
    $region48: #{tpu_custom_call.1} parent=1 // pred_region
      %99 = dma.done [#allocation10], 128
    $region49: #{tpu_custom_call.1} parent=1 // pred_fallthru
      _
    // Predicated region
    $region50: #{tpu_custom_call.1} parent=1 // pred_check
      _
    $region51: #{tpu_custom_call.1} parent=1 // pred_check_branch
      %101 = sbr.rel (0) target = $region53
    $region52: #{tpu_custom_call.1} parent=1 // pred_region
      %102 = dma.done [#allocation13], 128
    $region53: #{tpu_custom_call.1} parent=1 // pred_fallthru
      _
    %v104 = vld [vmem:[#allocation3] sm:$0xff]
    %v105 = vpack.c.bf16 %v104, %v104
    %v106 = vld [vmem:[#allocation6] sm:$0xff]
    %v107 = vld [vmem:[#allocation6 + $0x8] sm:$0xff]
    %v108 = vld [vmem:[#allocation6 + $0x10] sm:$0xff]
    %v109 = vld [vmem:[#allocation6 + $0x18] sm:$0xff]
    %v110 = vld [vmem:[#allocation6 + $0x20] sm:$0xff]
    %v111 = vld [vmem:[#allocation6 + $0x28] sm:$0xff]
    %v112 = vld [vmem:[#allocation6 + $0x30] sm:$0xff]
    %v113 = vld [vmem:[#allocation6 + $0x38] sm:$0xff]
    %v114 = vld [vmem:[#allocation6 + $0x40] sm:$0xff]
    %v115 = vld [vmem:[#allocation6 + $0x48] sm:$0xff]
    %v116 = vld [vmem:[#allocation6 + $0x50] sm:$0xff]
    %v117 = vld [vmem:[#allocation6 + $0x58] sm:$0xff]
    %v118 = vld [vmem:[#allocation6 + $0x60] sm:$0xff]
    %v119 = vld [vmem:[#allocation6 + $0x68] sm:$0xff]
    %v120 = vld [vmem:[#allocation6 + $0x70] sm:$0xff]
    %v121 = vld [vmem:[#allocation6 + $0x78] sm:$0xff]
    %v122 = vld [vmem:[#allocation8] sm:$0xff]
    %v124 = vlaneseq
    %v125 = vshrl.u32 %v124, 7
    %v126 = vsub.s32 0, %v125
    %v127 = vrot.slane %v122, %v126
    %v128 = vlaneseq
    %v129 = vshrl.u32 %v128, 7
    %v130 = vsub.s32 1, %v129
    %v131 = vrot.slane %v122, %v130
    %v132 = vlaneseq
    %v133 = vshrl.u32 %v132, 7
    %v134 = vsub.s32 2, %v133
    %v135 = vrot.slane %v122, %v134
    %v136 = vlaneseq
    %v137 = vshrl.u32 %v136, 7
    %v138 = vsub.s32 3, %v137
    %v139 = vrot.slane %v122, %v138
    %v140 = vlaneseq
    %v141 = vshrl.u32 %v140, 7
    %v142 = vsub.s32 4, %v141
    %v143 = vrot.slane %v122, %v142
    %v144 = vlaneseq
    %v145 = vshrl.u32 %v144, 7
    %v146 = vsub.s32 5, %v145
    %v147 = vrot.slane %v122, %v146
    %v148 = vlaneseq
    %v149 = vshrl.u32 %v148, 7
    %v150 = vsub.s32 6, %v149
    %v151 = vrot.slane %v122, %v150
    %v152 = vlaneseq
    %v153 = vshrl.u32 %v152, 7
    %v154 = vsub.s32 7, %v153
    %v155 = vrot.slane %v122, %v154
    %v180 = vunpack.c.l.b16 %v106
    %v181 = vunpack.c.h.b16 %v106
    %v182 = vunpack.c.l.b16 %v107
    %v183 = vunpack.c.h.b16 %v107
    %v184 = vunpack.c.l.b16 %v108
    %v185 = vunpack.c.h.b16 %v108
    %v186 = vunpack.c.l.b16 %v109
    %v187 = vunpack.c.h.b16 %v109
    %v188 = vunpack.c.l.b16 %v110
    %v189 = vunpack.c.h.b16 %v110
    %v190 = vunpack.c.l.b16 %v111
    %v191 = vunpack.c.h.b16 %v111
    %v192 = vunpack.c.l.b16 %v112
    %v193 = vunpack.c.h.b16 %v112
    %v194 = vunpack.c.l.b16 %v113
    %v195 = vunpack.c.h.b16 %v113
    %v196 = vunpack.c.l.b16 %v114
    %v197 = vunpack.c.h.b16 %v114
    %v198 = vunpack.c.l.b16 %v115
    %v199 = vunpack.c.h.b16 %v115
    %v200 = vunpack.c.l.b16 %v116
    %v201 = vunpack.c.h.b16 %v116
    %v202 = vunpack.c.l.b16 %v117
    %v203 = vunpack.c.h.b16 %v117
    %v204 = vunpack.c.l.b16 %v118
    %v205 = vunpack.c.h.b16 %v118
    %v206 = vunpack.c.l.b16 %v119
    %v207 = vunpack.c.h.b16 %v119
    %v208 = vunpack.c.l.b16 %v120
    %v209 = vunpack.c.h.b16 %v120
    %v210 = vunpack.c.l.b16 %v121
    %v211 = vunpack.c.h.b16 %v121
    %v212 = vpack.c.b16 %v188, %v180
    %v213 = vpack.c.b16 %v189, %v181
    %v214 = vpack.c.b16 %v190, %v182
    %v215 = vpack.c.b16 %v191, %v183
    %v216 = vpack.c.b16 %v192, %v184
    %v217 = vpack.c.b16 %v193, %v185
    %v218 = vpack.c.b16 %v194, %v186
    %v219 = vpack.c.b16 %v195, %v187
    %v220 = vpack.c.b16 %v204, %v196
    %v221 = vpack.c.b16 %v205, %v197
    %v222 = vpack.c.b16 %v206, %v198
    %v223 = vpack.c.b16 %v207, %v199
    %v224 = vpack.c.b16 %v208, %v200
    %v225 = vpack.c.b16 %v209, %v201
    %v226 = vpack.c.b16 %v210, %v202
    %v227 = vpack.c.b16 %v211, %v203
    %vm244 = vcmask 261120
    %v246 = vsel %vm244, %v105, 0
    %248 = vmatprep.subr.bf16.mxu0 0
    %249 = vmatpush1.bf16.msra.mxu0 0
    %250 = vmatprep.subr.bf16.mxu0 0
    %251 = vmatpush1.bf16.msra.mxu0 0
    %252 = vmatprep.subr.bf16.mxu0 0
    %253 = vmatpush1.bf16.msra.mxu0 0
    %254 = vmatprep.subr.bf16.mxu0 0
    %255 = vmatpush1.bf16.msra.mxu0 0
    %256 = vmatprep.subr.bf16.mxu0 0
    %257 = vmatpush1.bf16.msra.mxu0 0
    %258 = vmatprep.subr.bf16.mxu0 0
    %259 = vmatpush1.bf16.msra.mxu0 0
    %260 = vmatprep.subr.bf16.mxu0 %v221
    %261 = vmatpush1.bf16.msra.mxu0 %v220
    %262 = vmatprep.subr.bf16.mxu0 %v213
    %263 = vmatpush1.bf16.msra.mxu0 %v212
    %264 = vmatprep.subr.bf16.mxu0 0
    %265 = vmatpush2.bf16.msra.mxu0 0
    %266 = vmatprep.subr.bf16.mxu0 0
    %267 = vmatpush2.bf16.msra.mxu0 0
    %268 = vmatprep.subr.bf16.mxu0 0
    %269 = vmatpush2.bf16.msra.mxu0 0
    %270 = vmatprep.subr.bf16.mxu0 0
    %271 = vmatpush2.bf16.msra.mxu0 0
    %272 = vmatprep.subr.bf16.mxu0 0
    %273 = vmatpush2.bf16.msra.mxu0 0
    %274 = vmatprep.subr.bf16.mxu0 0
    %275 = vmatpush2.bf16.msra.mxu0 0
    %276 = vmatprep.subr.bf16.mxu0 0
    %277 = vmatpush2.bf16.msra.mxu0 0
    %278 = vmatprep.subr.bf16.mxu0 0
    %279 = vmatpush2.bf16.msra.mxu0 0
    %280 = vmatprep.mubr.bf16.mxu0 0
    %281 = vmatmul.mubr.bf16.gmra.mxu0 %v246
    %v282 = vpop.f32.mrf.mxu0
    %v283 = vadd.f32 %v127, %v282
    %v284 = vpop.f32.mrf.mxu0
    %v285 = vadd.f32 %v131, %v284
    %v286 = vpop.f32.mrf.mxu0
    %v287 = vpop.f32.mrf.mxu0
    %288 = vdwg.mxu0
    %289 = vmatprep.subr.bf16.mxu0 0
    %290 = vmatpush1.bf16.msra.mxu0 0
    %291 = vmatprep.subr.bf16.mxu0 0
    %292 = vmatpush1.bf16.msra.mxu0 0
    %293 = vmatprep.subr.bf16.mxu0 0
    %294 = vmatpush1.bf16.msra.mxu0 0
    %295 = vmatprep.subr.bf16.mxu0 0
    %296 = vmatpush1.bf16.msra.mxu0 0
    %297 = vmatprep.subr.bf16.mxu0 0
    %298 = vmatpush1.bf16.msra.mxu0 0
    %299 = vmatprep.subr.bf16.mxu0 0
    %300 = vmatpush1.bf16.msra.mxu0 0
    %301 = vmatprep.subr.bf16.mxu0 %v223
    %302 = vmatpush1.bf16.msra.mxu0 %v222
    %303 = vmatprep.subr.bf16.mxu0 %v215
    %304 = vmatpush1.bf16.msra.mxu0 %v214
    %305 = vmatprep.subr.bf16.mxu0 0
    %306 = vmatpush2.bf16.msra.mxu0 0
    %307 = vmatprep.subr.bf16.mxu0 0
    %308 = vmatpush2.bf16.msra.mxu0 0
    %309 = vmatprep.subr.bf16.mxu0 0
    %310 = vmatpush2.bf16.msra.mxu0 0
    %311 = vmatprep.subr.bf16.mxu0 0
    %312 = vmatpush2.bf16.msra.mxu0 0
    %313 = vmatprep.subr.bf16.mxu0 0
    %314 = vmatpush2.bf16.msra.mxu0 0
    %315 = vmatprep.subr.bf16.mxu0 0
    %316 = vmatpush2.bf16.msra.mxu0 0
    %317 = vmatprep.subr.bf16.mxu0 0
    %318 = vmatpush2.bf16.msra.mxu0 0
    %319 = vmatprep.subr.bf16.mxu0 0
    %320 = vmatpush2.bf16.msra.mxu0 0
    %321 = vmatprep.mubr.bf16.mxu0 0
    %322 = vmatmul.mubr.bf16.gmra.mxu0 %v246
    %v323 = vpop.f32.mrf.mxu0
    %v324 = vadd.f32 %v135, %v323
    %v325 = vpop.f32.mrf.mxu0
    %v326 = vadd.f32 %v139, %v325
    %v327 = vpop.f32.mrf.mxu0
    %v328 = vpop.f32.mrf.mxu0
    %329 = vdwg.mxu0
    %330 = vmatprep.subr.bf16.mxu0 0
    %331 = vmatpush1.bf16.msra.mxu0 0
    %332 = vmatprep.subr.bf16.mxu0 0
    %333 = vmatpush1.bf16.msra.mxu0 0
    %334 = vmatprep.subr.bf16.mxu0 0
    %335 = vmatpush1.bf16.msra.mxu0 0
    %336 = vmatprep.subr.bf16.mxu0 0
    %337 = vmatpush1.bf16.msra.mxu0 0
    %338 = vmatprep.subr.bf16.mxu0 0
    %339 = vmatpush1.bf16.msra.mxu0 0
    %340 = vmatprep.subr.bf16.mxu0 0
    %341 = vmatpush1.bf16.msra.mxu0 0
    %342 = vmatprep.subr.bf16.mxu0 %v225
    %343 = vmatpush1.bf16.msra.mxu0 %v224
    %344 = vmatprep.subr.bf16.mxu0 %v217
    %345 = vmatpush1.bf16.msra.mxu0 %v216
    %346 = vmatprep.subr.bf16.mxu0 0
    %347 = vmatpush2.bf16.msra.mxu0 0
    %348 = vmatprep.subr.bf16.mxu0 0
    %349 = vmatpush2.bf16.msra.mxu0 0
    %350 = vmatprep.subr.bf16.mxu0 0
    %351 = vmatpush2.bf16.msra.mxu0 0
    %352 = vmatprep.subr.bf16.mxu0 0
    %353 = vmatpush2.bf16.msra.mxu0 0
    %354 = vmatprep.subr.bf16.mxu0 0
    %355 = vmatpush2.bf16.msra.mxu0 0
    %356 = vmatprep.subr.bf16.mxu0 0
    %357 = vmatpush2.bf16.msra.mxu0 0
    %358 = vmatprep.subr.bf16.mxu0 0
    %359 = vmatpush2.bf16.msra.mxu0 0
    %360 = vmatprep.subr.bf16.mxu0 0
    %361 = vmatpush2.bf16.msra.mxu0 0
    %362 = vmatprep.mubr.bf16.mxu0 0
    %363 = vmatmul.mubr.bf16.gmra.mxu0 %v246
    %v364 = vpop.f32.mrf.mxu0
    %v365 = vadd.f32 %v143, %v364
    %v366 = vpop.f32.mrf.mxu0
    %v367 = vadd.f32 %v147, %v366
    %v368 = vpop.f32.mrf.mxu0
    %v369 = vpop.f32.mrf.mxu0
    %370 = vdwg.mxu0
    %371 = vmatprep.subr.bf16.mxu0 0
    %372 = vmatpush1.bf16.msra.mxu0 0
    %373 = vmatprep.subr.bf16.mxu0 0
    %374 = vmatpush1.bf16.msra.mxu0 0
    %375 = vmatprep.subr.bf16.mxu0 0
    %376 = vmatpush1.bf16.msra.mxu0 0
    %377 = vmatprep.subr.bf16.mxu0 0
    %378 = vmatpush1.bf16.msra.mxu0 0
    %379 = vmatprep.subr.bf16.mxu0 0
    %380 = vmatpush1.bf16.msra.mxu0 0
    %381 = vmatprep.subr.bf16.mxu0 0
    %382 = vmatpush1.bf16.msra.mxu0 0
    %383 = vmatprep.subr.bf16.mxu0 %v227
    %384 = vmatpush1.bf16.msra.mxu0 %v226
    %385 = vmatprep.subr.bf16.mxu0 %v219
    %386 = vmatpush1.bf16.msra.mxu0 %v218
    %387 = vmatprep.subr.bf16.mxu0 0
    %388 = vmatpush2.bf16.msra.mxu0 0
    %389 = vmatprep.subr.bf16.mxu0 0
    %390 = vmatpush2.bf16.msra.mxu0 0
    %391 = vmatprep.subr.bf16.mxu0 0
    %392 = vmatpush2.bf16.msra.mxu0 0
    %393 = vmatprep.subr.bf16.mxu0 0
    %394 = vmatpush2.bf16.msra.mxu0 0
    %395 = vmatprep.subr.bf16.mxu0 0
    %396 = vmatpush2.bf16.msra.mxu0 0
    %397 = vmatprep.subr.bf16.mxu0 0
    %398 = vmatpush2.bf16.msra.mxu0 0
    %399 = vmatprep.subr.bf16.mxu0 0
    %400 = vmatpush2.bf16.msra.mxu0 0
    %401 = vmatprep.subr.bf16.mxu0 0
    %402 = vmatpush2.bf16.msra.mxu0 0
    %403 = vmatprep.mubr.bf16.mxu0 0
    %404 = vmatmul.mubr.bf16.gmra.mxu0 %v246
    %v405 = vpop.f32.mrf.mxu0
    %v406 = vadd.f32 %v151, %v405
    %v407 = vpop.f32.mrf.mxu0
    %v408 = vadd.f32 %v155, %v407
    %v409 = vpop.f32.mrf.mxu0
    %v410 = vpop.f32.mrf.mxu0
    %411 = vdwg.mxu0
    %v412 = vmax.f32 %v283, 0.0
    %v413 = vmax.f32 %v285, 0.0
    %v414 = vmax.f32 %v324, 0.0
    %v415 = vmax.f32 %v326, 0.0
    %v416 = vmax.f32 %v365, 0.0
    %v417 = vmax.f32 %v367, 0.0
    %v418 = vmax.f32 %v406, 0.0
    %v419 = vmax.f32 %v408, 0.0
    %v420 = vpack.c.bf16 %v412, %v412
    %v421 = vpack.c.bf16 %v413, %v413
    %v422 = vpack.c.bf16 %v414, %v414
    %v423 = vpack.c.bf16 %v415, %v415
    %v424 = vpack.c.bf16 %v416, %v416
    %v425 = vpack.c.bf16 %v417, %v417
    %v426 = vpack.c.bf16 %v418, %v418
    %v427 = vpack.c.bf16 %v419, %v419
    %v428 = vld [vmem:[#allocation9] sm:$0xff]
    %v429 = vld [vmem:[#allocation9 + $0x8] sm:$0xff]
    %v430 = vld [vmem:[#allocation9 + $0x10] sm:$0xff]
    %v431 = vld [vmem:[#allocation9 + $0x18] sm:$0xff]
    %v432 = vld [vmem:[#allocation9 + $0x20] sm:$0xff]
    %v433 = vld [vmem:[#allocation9 + $0x28] sm:$0xff]
    %v434 = vld [vmem:[#allocation9 + $0x30] sm:$0xff]
    %v435 = vld [vmem:[#allocation9 + $0x38] sm:$0xff]
    %v436 = vld [vmem:[#allocation9 + $0x40] sm:$0xff]
    %v437 = vld [vmem:[#allocation9 + $0x48] sm:$0xff]
    %v438 = vld [vmem:[#allocation9 + $0x50] sm:$0xff]
    %v439 = vld [vmem:[#allocation9 + $0x58] sm:$0xff]
    %v440 = vld [vmem:[#allocation9 + $0x60] sm:$0xff]
    %v441 = vld [vmem:[#allocation9 + $0x68] sm:$0xff]
    %v442 = vld [vmem:[#allocation9 + $0x70] sm:$0xff]
    %v443 = vld [vmem:[#allocation9 + $0x78] sm:$0xff]
    %v444 = vld [vmem:[#allocation9 + $0x80] sm:$0xff]
    %v445 = vld [vmem:[#allocation9 + $0x88] sm:$0xff]
    %v446 = vld [vmem:[#allocation9 + $0x90] sm:$0xff]
    %v447 = vld [vmem:[#allocation9 + $0x98] sm:$0xff]
    %v448 = vld [vmem:[#allocation9 + $0xa0] sm:$0xff]
    %v449 = vld [vmem:[#allocation9 + $0xa8] sm:$0xff]
    %v450 = vld [vmem:[#allocation9 + $0xb0] sm:$0xff]
    %v451 = vld [vmem:[#allocation9 + $0xb8] sm:$0xff]
    %v452 = vld [vmem:[#allocation9 + $0xc0] sm:$0xff]
    %v453 = vld [vmem:[#allocation9 + $0xc8] sm:$0xff]
    %v454 = vld [vmem:[#allocation9 + $0xd0] sm:$0xff]
    %v455 = vld [vmem:[#allocation9 + $0xd8] sm:$0xff]
    %v456 = vld [vmem:[#allocation9 + $0xe0] sm:$0xff]
    %v457 = vld [vmem:[#allocation9 + $0xe8] sm:$0xff]
    %v458 = vld [vmem:[#allocation9 + $0xf0] sm:$0xff]
    %v459 = vld [vmem:[#allocation9 + $0xf8] sm:$0xff]
    %v460 = vld [vmem:[#allocation9 + $0x100] sm:$0xff]
    %v461 = vld [vmem:[#allocation9 + $0x108] sm:$0xff]
    %v462 = vld [vmem:[#allocation9 + $0x110] sm:$0xff]
    %v463 = vld [vmem:[#allocation9 + $0x118] sm:$0xff]
    %v464 = vld [vmem:[#allocation9 + $0x120] sm:$0xff]
    %v465 = vld [vmem:[#allocation9 + $0x128] sm:$0xff]
    %v466 = vld [vmem:[#allocation9 + $0x130] sm:$0xff]
    %v467 = vld [vmem:[#allocation9 + $0x138] sm:$0xff]
    %v468 = vld [vmem:[#allocation9 + $0x140] sm:$0xff]
    %v469 = vld [vmem:[#allocation9 + $0x148] sm:$0xff]
    %v470 = vld [vmem:[#allocation9 + $0x150] sm:$0xff]
    %v471 = vld [vmem:[#allocation9 + $0x158] sm:$0xff]
    %v472 = vld [vmem:[#allocation9 + $0x160] sm:$0xff]
    %v473 = vld [vmem:[#allocation9 + $0x168] sm:$0xff]
    %v474 = vld [vmem:[#allocation9 + $0x170] sm:$0xff]
    %v475 = vld [vmem:[#allocation9 + $0x178] sm:$0xff]
    %v476 = vld [vmem:[#allocation9 + $0x180] sm:$0xff]
    %v477 = vld [vmem:[#allocation9 + $0x188] sm:$0xff]
    %v478 = vld [vmem:[#allocation9 + $0x190] sm:$0xff]
    %v479 = vld [vmem:[#allocation9 + $0x198] sm:$0xff]
    %v480 = vld [vmem:[#allocation9 + $0x1a0] sm:$0xff]
    %v481 = vld [vmem:[#allocation9 + $0x1a8] sm:$0xff]
    %v482 = vld [vmem:[#allocation9 + $0x1b0] sm:$0xff]
    %v483 = vld [vmem:[#allocation9 + $0x1b8] sm:$0xff]
    %v484 = vld [vmem:[#allocation9 + $0x1c0] sm:$0xff]
    %v485 = vld [vmem:[#allocation9 + $0x1c8] sm:$0xff]
    %v486 = vld [vmem:[#allocation9 + $0x1d0] sm:$0xff]
    %v487 = vld [vmem:[#allocation9 + $0x1d8] sm:$0xff]
    %v488 = vld [vmem:[#allocation9 + $0x1e0] sm:$0xff]
    %v489 = vld [vmem:[#allocation9 + $0x1e8] sm:$0xff]
    %v490 = vld [vmem:[#allocation9 + $0x1f0] sm:$0xff]
    %v491 = vld [vmem:[#allocation9 + $0x1f8] sm:$0xff]
    %v492 = vld [vmem:[#allocation9 + $0x200] sm:$0xff]
    %v493 = vld [vmem:[#allocation9 + $0x208] sm:$0xff]
    %v494 = vld [vmem:[#allocation9 + $0x210] sm:$0xff]
    %v495 = vld [vmem:[#allocation9 + $0x218] sm:$0xff]
    %v496 = vld [vmem:[#allocation9 + $0x220] sm:$0xff]
    %v497 = vld [vmem:[#allocation9 + $0x228] sm:$0xff]
    %v498 = vld [vmem:[#allocation9 + $0x230] sm:$0xff]
    %v499 = vld [vmem:[#allocation9 + $0x238] sm:$0xff]
    %v500 = vld [vmem:[#allocation9 + $0x240] sm:$0xff]
    %v501 = vld [vmem:[#allocation9 + $0x248] sm:$0xff]
    %v502 = vld [vmem:[#allocation9 + $0x250] sm:$0xff]
    %v503 = vld [vmem:[#allocation9 + $0x258] sm:$0xff]
    %v504 = vld [vmem:[#allocation9 + $0x260] sm:$0xff]
    %v505 = vld [vmem:[#allocation9 + $0x268] sm:$0xff]
    %v506 = vld [vmem:[#allocation9 + $0x270] sm:$0xff]
    %v507 = vld [vmem:[#allocation9 + $0x278] sm:$0xff]
    %v508 = vld [vmem:[#allocation9 + $0x280] sm:$0xff]
    %v509 = vld [vmem:[#allocation9 + $0x288] sm:$0xff]
    %v510 = vld [vmem:[#allocation9 + $0x290] sm:$0xff]
    %v511 = vld [vmem:[#allocation9 + $0x298] sm:$0xff]
    %v512 = vld [vmem:[#allocation9 + $0x2a0] sm:$0xff]
    %v513 = vld [vmem:[#allocation9 + $0x2a8] sm:$0xff]
    %v514 = vld [vmem:[#allocation9 + $0x2b0] sm:$0xff]
    %v515 = vld [vmem:[#allocation9 + $0x2b8] sm:$0xff]
    %v516 = vld [vmem:[#allocation9 + $0x2c0] sm:$0xff]
    %v517 = vld [vmem:[#allocation9 + $0x2c8] sm:$0xff]
    %v518 = vld [vmem:[#allocation9 + $0x2d0] sm:$0xff]
    %v519 = vld [vmem:[#allocation9 + $0x2d8] sm:$0xff]
    %v520 = vld [vmem:[#allocation9 + $0x2e0] sm:$0xff]
    %v521 = vld [vmem:[#allocation9 + $0x2e8] sm:$0xff]
    %v522 = vld [vmem:[#allocation9 + $0x2f0] sm:$0xff]
    %v523 = vld [vmem:[#allocation9 + $0x2f8] sm:$0xff]
    %v524 = vld [vmem:[#allocation9 + $0x300] sm:$0xff]
    %v525 = vld [vmem:[#allocation9 + $0x308] sm:$0xff]
    %v526 = vld [vmem:[#allocation9 + $0x310] sm:$0xff]
    %v527 = vld [vmem:[#allocation9 + $0x318] sm:$0xff]
    %v528 = vld [vmem:[#allocation9 + $0x320] sm:$0xff]
    %v529 = vld [vmem:[#allocation9 + $0x328] sm:$0xff]
    %v530 = vld [vmem:[#allocation9 + $0x330] sm:$0xff]
    %v531 = vld [vmem:[#allocation9 + $0x338] sm:$0xff]
    %v532 = vld [vmem:[#allocation9 + $0x340] sm:$0xff]
    %v533 = vld [vmem:[#allocation9 + $0x348] sm:$0xff]
    %v534 = vld [vmem:[#allocation9 + $0x350] sm:$0xff]
    %v535 = vld [vmem:[#allocation9 + $0x358] sm:$0xff]
    %v536 = vld [vmem:[#allocation9 + $0x360] sm:$0xff]
    %v537 = vld [vmem:[#allocation9 + $0x368] sm:$0xff]
    %v538 = vld [vmem:[#allocation9 + $0x370] sm:$0xff]
    %v539 = vld [vmem:[#allocation9 + $0x378] sm:$0xff]
    %v540 = vld [vmem:[#allocation9 + $0x380] sm:$0xff]
    %v541 = vld [vmem:[#allocation9 + $0x388] sm:$0xff]
    %v542 = vld [vmem:[#allocation9 + $0x390] sm:$0xff]
    %v543 = vld [vmem:[#allocation9 + $0x398] sm:$0xff]
    %v544 = vld [vmem:[#allocation9 + $0x3a0] sm:$0xff]
    %v545 = vld [vmem:[#allocation9 + $0x3a8] sm:$0xff]
    %v546 = vld [vmem:[#allocation9 + $0x3b0] sm:$0xff]
    %v547 = vld [vmem:[#allocation9 + $0x3b8] sm:$0xff]
    %v548 = vld [vmem:[#allocation9 + $0x3c0] sm:$0xff]
    %v549 = vld [vmem:[#allocation9 + $0x3c8] sm:$0xff]
    %v550 = vld [vmem:[#allocation9 + $0x3d0] sm:$0xff]
    %v551 = vld [vmem:[#allocation9 + $0x3d8] sm:$0xff]
    %v552 = vld [vmem:[#allocation9 + $0x3e0] sm:$0xff]
    %v553 = vld [vmem:[#allocation9 + $0x3e8] sm:$0xff]
    %v554 = vld [vmem:[#allocation9 + $0x3f0] sm:$0xff]
    %v555 = vld [vmem:[#allocation9 + $0x3f8] sm:$0xff]
    %v556 = vld [vmem:[#allocation9 + $0x400] sm:$0xff]
    %v557 = vld [vmem:[#allocation9 + $0x408] sm:$0xff]
    %v558 = vld [vmem:[#allocation9 + $0x410] sm:$0xff]
    %v559 = vld [vmem:[#allocation9 + $0x418] sm:$0xff]
    %v560 = vld [vmem:[#allocation9 + $0x420] sm:$0xff]
    %v561 = vld [vmem:[#allocation9 + $0x428] sm:$0xff]
    %v562 = vld [vmem:[#allocation9 + $0x430] sm:$0xff]
    %v563 = vld [vmem:[#allocation9 + $0x438] sm:$0xff]
    %v564 = vld [vmem:[#allocation9 + $0x440] sm:$0xff]
    %v565 = vld [vmem:[#allocation9 + $0x448] sm:$0xff]
    %v566 = vld [vmem:[#allocation9 + $0x450] sm:$0xff]
    %v567 = vld [vmem:[#allocation9 + $0x458] sm:$0xff]
    %v568 = vld [vmem:[#allocation9 + $0x460] sm:$0xff]
    %v569 = vld [vmem:[#allocation9 + $0x468] sm:$0xff]
    %v570 = vld [vmem:[#allocation9 + $0x470] sm:$0xff]
    %v571 = vld [vmem:[#allocation9 + $0x478] sm:$0xff]
    %v572 = vld [vmem:[#allocation9 + $0x480] sm:$0xff]
    %v573 = vld [vmem:[#allocation9 + $0x488] sm:$0xff]
    %v574 = vld [vmem:[#allocation9 + $0x490] sm:$0xff]
    %v575 = vld [vmem:[#allocation9 + $0x498] sm:$0xff]
    %v576 = vld [vmem:[#allocation9 + $0x4a0] sm:$0xff]
    %v577 = vld [vmem:[#allocation9 + $0x4a8] sm:$0xff]
    %v578 = vld [vmem:[#allocation9 + $0x4b0] sm:$0xff]
    %v579 = vld [vmem:[#allocation9 + $0x4b8] sm:$0xff]
    %v580 = vld [vmem:[#allocation9 + $0x4c0] sm:$0xff]
    %v581 = vld [vmem:[#allocation9 + $0x4c8] sm:$0xff]
    %v582 = vld [vmem:[#allocation9 + $0x4d0] sm:$0xff]
    %v583 = vld [vmem:[#allocation9 + $0x4d8] sm:$0xff]
    %v584 = vld [vmem:[#allocation9 + $0x4e0] sm:$0xff]
    %v585 = vld [vmem:[#allocation9 + $0x4e8] sm:$0xff]
    %v586 = vld [vmem:[#allocation9 + $0x4f0] sm:$0xff]
    %v587 = vld [vmem:[#allocation9 + $0x4f8] sm:$0xff]
    %v588 = vld [vmem:[#allocation9 + $0x500] sm:$0xff]
    %v589 = vld [vmem:[#allocation9 + $0x508] sm:$0xff]
    %v590 = vld [vmem:[#allocation9 + $0x510] sm:$0xff]
    %v591 = vld [vmem:[#allocation9 + $0x518] sm:$0xff]
    %v592 = vld [vmem:[#allocation9 + $0x520] sm:$0xff]
    %v593 = vld [vmem:[#allocation9 + $0x528] sm:$0xff]
    %v594 = vld [vmem:[#allocation9 + $0x530] sm:$0xff]
    %v595 = vld [vmem:[#allocation9 + $0x538] sm:$0xff]
    %v596 = vld [vmem:[#allocation9 + $0x540] sm:$0xff]
    %v597 = vld [vmem:[#allocation9 + $0x548] sm:$0xff]
    %v598 = vld [vmem:[#allocation9 + $0x550] sm:$0xff]
    %v599 = vld [vmem:[#allocation9 + $0x558] sm:$0xff]
    %v600 = vld [vmem:[#allocation9 + $0x560] sm:$0xff]
    %v601 = vld [vmem:[#allocation9 + $0x568] sm:$0xff]
    %v602 = vld [vmem:[#allocation9 + $0x570] sm:$0xff]
    %v603 = vld [vmem:[#allocation9 + $0x578] sm:$0xff]
    %v604 = vld [vmem:[#allocation9 + $0x580] sm:$0xff]
    %v605 = vld [vmem:[#allocation9 + $0x588] sm:$0xff]
    %v606 = vld [vmem:[#allocation9 + $0x590] sm:$0xff]
    %v607 = vld [vmem:[#allocation9 + $0x598] sm:$0xff]
    %v608 = vld [vmem:[#allocation9 + $0x5a0] sm:$0xff]
    %v609 = vld [vmem:[#allocation9 + $0x5a8] sm:$0xff]
    %v610 = vld [vmem:[#allocation9 + $0x5b0] sm:$0xff]
    %v611 = vld [vmem:[#allocation9 + $0x5b8] sm:$0xff]
    %v612 = vld [vmem:[#allocation9 + $0x5c0] sm:$0xff]
    %v613 = vld [vmem:[#allocation9 + $0x5c8] sm:$0xff]
    %v614 = vld [vmem:[#allocation9 + $0x5d0] sm:$0xff]
    %v615 = vld [vmem:[#allocation9 + $0x5d8] sm:$0xff]
    %v616 = vld [vmem:[#allocation9 + $0x5e0] sm:$0xff]
    %v617 = vld [vmem:[#allocation9 + $0x5e8] sm:$0xff]
    %v618 = vld [vmem:[#allocation9 + $0x5f0] sm:$0xff]
    %v619 = vld [vmem:[#allocation9 + $0x5f8] sm:$0xff]
    %v620 = vld [vmem:[#allocation9 + $0x600] sm:$0xff]
    %v621 = vld [vmem:[#allocation9 + $0x608] sm:$0xff]
    %v622 = vld [vmem:[#allocation9 + $0x610] sm:$0xff]
    %v623 = vld [vmem:[#allocation9 + $0x618] sm:$0xff]
    %v624 = vld [vmem:[#allocation9 + $0x620] sm:$0xff]
    %v625 = vld [vmem:[#allocation9 + $0x628] sm:$0xff]
    %v626 = vld [vmem:[#allocation9 + $0x630] sm:$0xff]
    %v627 = vld [vmem:[#allocation9 + $0x638] sm:$0xff]
    %v628 = vld [vmem:[#allocation9 + $0x640] sm:$0xff]
    %v629 = vld [vmem:[#allocation9 + $0x648] sm:$0xff]
    %v630 = vld [vmem:[#allocation9 + $0x650] sm:$0xff]
    %v631 = vld [vmem:[#allocation9 + $0x658] sm:$0xff]
    %v632 = vld [vmem:[#allocation9 + $0x660] sm:$0xff]
    %v633 = vld [vmem:[#allocation9 + $0x668] sm:$0xff]
    %v634 = vld [vmem:[#allocation9 + $0x670] sm:$0xff]
    %v635 = vld [vmem:[#allocation9 + $0x678] sm:$0xff]
    %v636 = vld [vmem:[#allocation9 + $0x680] sm:$0xff]
    %v637 = vld [vmem:[#allocation9 + $0x688] sm:$0xff]
    %v638 = vld [vmem:[#allocation9 + $0x690] sm:$0xff]
    %v639 = vld [vmem:[#allocation9 + $0x698] sm:$0xff]
    %v640 = vld [vmem:[#allocation9 + $0x6a0] sm:$0xff]
    %v641 = vld [vmem:[#allocation9 + $0x6a8] sm:$0xff]
    %v642 = vld [vmem:[#allocation9 + $0x6b0] sm:$0xff]
    %v643 = vld [vmem:[#allocation9 + $0x6b8] sm:$0xff]
    %v644 = vld [vmem:[#allocation9 + $0x6c0] sm:$0xff]
    %v645 = vld [vmem:[#allocation9 + $0x6c8] sm:$0xff]
    %v646 = vld [vmem:[#allocation9 + $0x6d0] sm:$0xff]
    %v647 = vld [vmem:[#allocation9 + $0x6d8] sm:$0xff]
    %v648 = vld [vmem:[#allocation9 + $0x6e0] sm:$0xff]
    %v649 = vld [vmem:[#allocation9 + $0x6e8] sm:$0xff]
    %v650 = vld [vmem:[#allocation9 + $0x6f0] sm:$0xff]
    %v651 = vld [vmem:[#allocation9 + $0x6f8] sm:$0xff]
    %v652 = vld [vmem:[#allocation9 + $0x700] sm:$0xff]
    %v653 = vld [vmem:[#allocation9 + $0x708] sm:$0xff]
    %v654 = vld [vmem:[#allocation9 + $0x710] sm:$0xff]
    %v655 = vld [vmem:[#allocation9 + $0x718] sm:$0xff]
    %v656 = vld [vmem:[#allocation9 + $0x720] sm:$0xff]
    %v657 = vld [vmem:[#allocation9 + $0x728] sm:$0xff]
    %v658 = vld [vmem:[#allocation9 + $0x730] sm:$0xff]
    %v659 = vld [vmem:[#allocation9 + $0x738] sm:$0xff]
    %v660 = vld [vmem:[#allocation9 + $0x740] sm:$0xff]
    %v661 = vld [vmem:[#allocation9 + $0x748] sm:$0xff]
    %v662 = vld [vmem:[#allocation9 + $0x750] sm:$0xff]
    %v663 = vld [vmem:[#allocation9 + $0x758] sm:$0xff]
    %v664 = vld [vmem:[#allocation9 + $0x760] sm:$0xff]
    %v665 = vld [vmem:[#allocation9 + $0x768] sm:$0xff]
    %v666 = vld [vmem:[#allocation9 + $0x770] sm:$0xff]
    %v667 = vld [vmem:[#allocation9 + $0x778] sm:$0xff]
    %v668 = vld [vmem:[#allocation9 + $0x780] sm:$0xff]
    %v669 = vld [vmem:[#allocation9 + $0x788] sm:$0xff]
    %v670 = vld [vmem:[#allocation9 + $0x790] sm:$0xff]
    %v671 = vld [vmem:[#allocation9 + $0x798] sm:$0xff]
    %v672 = vld [vmem:[#allocation9 + $0x7a0] sm:$0xff]
    %v673 = vld [vmem:[#allocation9 + $0x7a8] sm:$0xff]
    %v674 = vld [vmem:[#allocation9 + $0x7b0] sm:$0xff]
    %v675 = vld [vmem:[#allocation9 + $0x7b8] sm:$0xff]
    %v676 = vld [vmem:[#allocation9 + $0x7c0] sm:$0xff]
    %v677 = vld [vmem:[#allocation9 + $0x7c8] sm:$0xff]
    %v678 = vld [vmem:[#allocation9 + $0x7d0] sm:$0xff]
    %v679 = vld [vmem:[#allocation9 + $0x7d8] sm:$0xff]
    %v680 = vld [vmem:[#allocation9 + $0x7e0] sm:$0xff]
    %v681 = vld [vmem:[#allocation9 + $0x7e8] sm:$0xff]
    %v682 = vld [vmem:[#allocation9 + $0x7f0] sm:$0xff]
    %v683 = vld [vmem:[#allocation9 + $0x7f8] sm:$0xff]
    %v684 = vld [vmem:[#allocation9 + $0x800] sm:$0xff]
    %v685 = vld [vmem:[#allocation9 + $0x808] sm:$0xff]
    %v686 = vld [vmem:[#allocation9 + $0x810] sm:$0xff]
    %v687 = vld [vmem:[#allocation9 + $0x818] sm:$0xff]
    %v688 = vld [vmem:[#allocation9 + $0x820] sm:$0xff]
    %v689 = vld [vmem:[#allocation9 + $0x828] sm:$0xff]
    %v690 = vld [vmem:[#allocation9 + $0x830] sm:$0xff]
    %v691 = vld [vmem:[#allocation9 + $0x838] sm:$0xff]
    %v692 = vld [vmem:[#allocation9 + $0x840] sm:$0xff]
    %v693 = vld [vmem:[#allocation9 + $0x848] sm:$0xff]
    %v694 = vld [vmem:[#allocation9 + $0x850] sm:$0xff]
    %v695 = vld [vmem:[#allocation9 + $0x858] sm:$0xff]
    %v696 = vld [vmem:[#allocation9 + $0x860] sm:$0xff]
    %v697 = vld [vmem:[#allocation9 + $0x868] sm:$0xff]
    %v698 = vld [vmem:[#allocation9 + $0x870] sm:$0xff]
    %v699 = vld [vmem:[#allocation9 + $0x878] sm:$0xff]
    %v700 = vld [vmem:[#allocation9 + $0x880] sm:$0xff]
    %v701 = vld [vmem:[#allocation9 + $0x888] sm:$0xff]
    %v702 = vld [vmem:[#allocation9 + $0x890] sm:$0xff]
    %v703 = vld [vmem:[#allocation9 + $0x898] sm:$0xff]
    %v704 = vld [vmem:[#allocation9 + $0x8a0] sm:$0xff]
    %v705 = vld [vmem:[#allocation9 + $0x8a8] sm:$0xff]
    %v706 = vld [vmem:[#allocation9 + $0x8b0] sm:$0xff]
    %v707 = vld [vmem:[#allocation9 + $0x8b8] sm:$0xff]
    %v708 = vld [vmem:[#allocation9 + $0x8c0] sm:$0xff]
    %v709 = vld [vmem:[#allocation9 + $0x8c8] sm:$0xff]
    %v710 = vld [vmem:[#allocation9 + $0x8d0] sm:$0xff]
    %v711 = vld [vmem:[#allocation9 + $0x8d8] sm:$0xff]
    %v712 = vld [vmem:[#allocation9 + $0x8e0] sm:$0xff]
    %v713 = vld [vmem:[#allocation9 + $0x8e8] sm:$0xff]
    %v714 = vld [vmem:[#allocation9 + $0x8f0] sm:$0xff]
    %v715 = vld [vmem:[#allocation9 + $0x8f8] sm:$0xff]
    %v716 = vld [vmem:[#allocation9 + $0x900] sm:$0xff]
    %v717 = vld [vmem:[#allocation9 + $0x908] sm:$0xff]
    %v718 = vld [vmem:[#allocation9 + $0x910] sm:$0xff]
    %v719 = vld [vmem:[#allocation9 + $0x918] sm:$0xff]
    %v720 = vld [vmem:[#allocation9 + $0x920] sm:$0xff]
    %v721 = vld [vmem:[#allocation9 + $0x928] sm:$0xff]
    %v722 = vld [vmem:[#allocation9 + $0x930] sm:$0xff]
    %v723 = vld [vmem:[#allocation9 + $0x938] sm:$0xff]
    %v724 = vld [vmem:[#allocation9 + $0x940] sm:$0xff]
    %v725 = vld [vmem:[#allocation9 + $0x948] sm:$0xff]
    %v726 = vld [vmem:[#allocation9 + $0x950] sm:$0xff]
    %v727 = vld [vmem:[#allocation9 + $0x958] sm:$0xff]
    %v728 = vld [vmem:[#allocation9 + $0x960] sm:$0xff]
    %v729 = vld [vmem:[#allocation9 + $0x968] sm:$0xff]
    %v730 = vld [vmem:[#allocation9 + $0x970] sm:$0xff]
    %v731 = vld [vmem:[#allocation9 + $0x978] sm:$0xff]
    %v732 = vld [vmem:[#allocation9 + $0x980] sm:$0xff]
    %v733 = vld [vmem:[#allocation9 + $0x988] sm:$0xff]
    %v734 = vld [vmem:[#allocation9 + $0x990] sm:$0xff]
    %v735 = vld [vmem:[#allocation9 + $0x998] sm:$0xff]
    %v736 = vld [vmem:[#allocation9 + $0x9a0] sm:$0xff]
    %v737 = vld [vmem:[#allocation9 + $0x9a8] sm:$0xff]
    %v738 = vld [vmem:[#allocation9 + $0x9b0] sm:$0xff]
    %v739 = vld [vmem:[#allocation9 + $0x9b8] sm:$0xff]
    %v740 = vld [vmem:[#allocation9 + $0x9c0] sm:$0xff]
    %v741 = vld [vmem:[#allocation9 + $0x9c8] sm:$0xff]
    %v742 = vld [vmem:[#allocation9 + $0x9d0] sm:$0xff]
    %v743 = vld [vmem:[#allocation9 + $0x9d8] sm:$0xff]
    %v744 = vld [vmem:[#allocation9 + $0x9e0] sm:$0xff]
    %v745 = vld [vmem:[#allocation9 + $0x9e8] sm:$0xff]
    %v746 = vld [vmem:[#allocation9 + $0x9f0] sm:$0xff]
    %v747 = vld [vmem:[#allocation9 + $0x9f8] sm:$0xff]
    %v748 = vld [vmem:[#allocation9 + $0xa00] sm:$0xff]
    %v749 = vld [vmem:[#allocation9 + $0xa08] sm:$0xff]
    %v750 = vld [vmem:[#allocation9 + $0xa10] sm:$0xff]
    %v751 = vld [vmem:[#allocation9 + $0xa18] sm:$0xff]
    %v752 = vld [vmem:[#allocation9 + $0xa20] sm:$0xff]
    %v753 = vld [vmem:[#allocation9 + $0xa28] sm:$0xff]
    %v754 = vld [vmem:[#allocation9 + $0xa30] sm:$0xff]
    %v755 = vld [vmem:[#allocation9 + $0xa38] sm:$0xff]
    %v756 = vld [vmem:[#allocation9 + $0xa40] sm:$0xff]
    %v757 = vld [vmem:[#allocation9 + $0xa48] sm:$0xff]
    %v758 = vld [vmem:[#allocation9 + $0xa50] sm:$0xff]
    %v759 = vld [vmem:[#allocation9 + $0xa58] sm:$0xff]
    %v760 = vld [vmem:[#allocation9 + $0xa60] sm:$0xff]
    %v761 = vld [vmem:[#allocation9 + $0xa68] sm:$0xff]
    %v762 = vld [vmem:[#allocation9 + $0xa70] sm:$0xff]
    %v763 = vld [vmem:[#allocation9 + $0xa78] sm:$0xff]
    %v764 = vld [vmem:[#allocation9 + $0xa80] sm:$0xff]
    %v765 = vld [vmem:[#allocation9 + $0xa88] sm:$0xff]
    %v766 = vld [vmem:[#allocation9 + $0xa90] sm:$0xff]
    %v767 = vld [vmem:[#allocation9 + $0xa98] sm:$0xff]
    %v768 = vld [vmem:[#allocation9 + $0xaa0] sm:$0xff]
    %v769 = vld [vmem:[#allocation9 + $0xaa8] sm:$0xff]
    %v770 = vld [vmem:[#allocation9 + $0xab0] sm:$0xff]
    %v771 = vld [vmem:[#allocation9 + $0xab8] sm:$0xff]
    %v772 = vld [vmem:[#allocation9 + $0xac0] sm:$0xff]
    %v773 = vld [vmem:[#allocation9 + $0xac8] sm:$0xff]
    %v774 = vld [vmem:[#allocation9 + $0xad0] sm:$0xff]
    %v775 = vld [vmem:[#allocation9 + $0xad8] sm:$0xff]
    %v776 = vld [vmem:[#allocation9 + $0xae0] sm:$0xff]
    %v777 = vld [vmem:[#allocation9 + $0xae8] sm:$0xff]
    %v778 = vld [vmem:[#allocation9 + $0xaf0] sm:$0xff]
    %v779 = vld [vmem:[#allocation9 + $0xaf8] sm:$0xff]
    %v780 = vld [vmem:[#allocation9 + $0xb00] sm:$0xff]
    %v781 = vld [vmem:[#allocation9 + $0xb08] sm:$0xff]
    %v782 = vld [vmem:[#allocation9 + $0xb10] sm:$0xff]
    %v783 = vld [vmem:[#allocation9 + $0xb18] sm:$0xff]
    %v784 = vld [vmem:[#allocation9 + $0xb20] sm:$0xff]
    %v785 = vld [vmem:[#allocation9 + $0xb28] sm:$0xff]
    %v786 = vld [vmem:[#allocation9 + $0xb30] sm:$0xff]
    %v787 = vld [vmem:[#allocation9 + $0xb38] sm:$0xff]
    %v788 = vld [vmem:[#allocation9 + $0xb40] sm:$0xff]
    %v789 = vld [vmem:[#allocation9 + $0xb48] sm:$0xff]
    %v790 = vld [vmem:[#allocation9 + $0xb50] sm:$0xff]
    %v791 = vld [vmem:[#allocation9 + $0xb58] sm:$0xff]
    %v792 = vld [vmem:[#allocation9 + $0xb60] sm:$0xff]
    %v793 = vld [vmem:[#allocation9 + $0xb68] sm:$0xff]
    %v794 = vld [vmem:[#allocation9 + $0xb70] sm:$0xff]
    %v795 = vld [vmem:[#allocation9 + $0xb78] sm:$0xff]
    %v796 = vld [vmem:[#allocation9 + $0xb80] sm:$0xff]
    %v797 = vld [vmem:[#allocation9 + $0xb88] sm:$0xff]
    %v798 = vld [vmem:[#allocation9 + $0xb90] sm:$0xff]
    %v799 = vld [vmem:[#allocation9 + $0xb98] sm:$0xff]
    %v800 = vld [vmem:[#allocation9 + $0xba0] sm:$0xff]
    %v801 = vld [vmem:[#allocation9 + $0xba8] sm:$0xff]
    %v802 = vld [vmem:[#allocation9 + $0xbb0] sm:$0xff]
    %v803 = vld [vmem:[#allocation9 + $0xbb8] sm:$0xff]
    %v804 = vld [vmem:[#allocation9 + $0xbc0] sm:$0xff]
    %v805 = vld [vmem:[#allocation9 + $0xbc8] sm:$0xff]
    %v806 = vld [vmem:[#allocation9 + $0xbd0] sm:$0xff]
    %v807 = vld [vmem:[#allocation9 + $0xbd8] sm:$0xff]
    %v808 = vld [vmem:[#allocation9 + $0xbe0] sm:$0xff]
    %v809 = vld [vmem:[#allocation9 + $0xbe8] sm:$0xff]
    %v810 = vld [vmem:[#allocation9 + $0xbf0] sm:$0xff]
    %v811 = vld [vmem:[#allocation9 + $0xbf8] sm:$0xff]
    %v812 = vld [vmem:[#allocation9 + $0xc00] sm:$0xff]
    %v813 = vld [vmem:[#allocation9 + $0xc08] sm:$0xff]
    %v814 = vld [vmem:[#allocation9 + $0xc10] sm:$0xff]
    %v815 = vld [vmem:[#allocation9 + $0xc18] sm:$0xff]
    %v816 = vld [vmem:[#allocation9 + $0xc20] sm:$0xff]
    %v817 = vld [vmem:[#allocation9 + $0xc28] sm:$0xff]
    %v818 = vld [vmem:[#allocation9 + $0xc30] sm:$0xff]
    %v819 = vld [vmem:[#allocation9 + $0xc38] sm:$0xff]
    %v820 = vld [vmem:[#allocation9 + $0xc40] sm:$0xff]
    %v821 = vld [vmem:[#allocation9 + $0xc48] sm:$0xff]
    %v822 = vld [vmem:[#allocation9 + $0xc50] sm:$0xff]
    %v823 = vld [vmem:[#allocation9 + $0xc58] sm:$0xff]
    %v824 = vld [vmem:[#allocation9 + $0xc60] sm:$0xff]
    %v825 = vld [vmem:[#allocation9 + $0xc68] sm:$0xff]
    %v826 = vld [vmem:[#allocation9 + $0xc70] sm:$0xff]
    %v827 = vld [vmem:[#allocation9 + $0xc78] sm:$0xff]
    %v828 = vld [vmem:[#allocation9 + $0xc80] sm:$0xff]
    %v829 = vld [vmem:[#allocation9 + $0xc88] sm:$0xff]
    %v830 = vld [vmem:[#allocation9 + $0xc90] sm:$0xff]
    %v831 = vld [vmem:[#allocation9 + $0xc98] sm:$0xff]
    %v832 = vld [vmem:[#allocation9 + $0xca0] sm:$0xff]
    %v833 = vld [vmem:[#allocation9 + $0xca8] sm:$0xff]
    %v834 = vld [vmem:[#allocation9 + $0xcb0] sm:$0xff]
    %v835 = vld [vmem:[#allocation9 + $0xcb8] sm:$0xff]
    %v836 = vld [vmem:[#allocation9 + $0xcc0] sm:$0xff]
    %v837 = vld [vmem:[#allocation9 + $0xcc8] sm:$0xff]
    %v838 = vld [vmem:[#allocation9 + $0xcd0] sm:$0xff]
    %v839 = vld [vmem:[#allocation9 + $0xcd8] sm:$0xff]
    %v840 = vld [vmem:[#allocation9 + $0xce0] sm:$0xff]
    %v841 = vld [vmem:[#allocation9 + $0xce8] sm:$0xff]
    %v842 = vld [vmem:[#allocation9 + $0xcf0] sm:$0xff]
    %v843 = vld [vmem:[#allocation9 + $0xcf8] sm:$0xff]
    %v844 = vld [vmem:[#allocation9 + $0xd00] sm:$0xff]
    %v845 = vld [vmem:[#allocation9 + $0xd08] sm:$0xff]
    %v846 = vld [vmem:[#allocation9 + $0xd10] sm:$0xff]
    %v847 = vld [vmem:[#allocation9 + $0xd18] sm:$0xff]
    %v848 = vld [vmem:[#allocation9 + $0xd20] sm:$0xff]
    %v849 = vld [vmem:[#allocation9 + $0xd28] sm:$0xff]
    %v850 = vld [vmem:[#allocation9 + $0xd30] sm:$0xff]
    %v851 = vld [vmem:[#allocation9 + $0xd38] sm:$0xff]
    %v852 = vld [vmem:[#allocation9 + $0xd40] sm:$0xff]
    %v853 = vld [vmem:[#allocation9 + $0xd48] sm:$0xff]
    %v854 = vld [vmem:[#allocation9 + $0xd50] sm:$0xff]
    %v855 = vld [vmem:[#allocation9 + $0xd58] sm:$0xff]
    %v856 = vld [vmem:[#allocation9 + $0xd60] sm:$0xff]
    %v857 = vld [vmem:[#allocation9 + $0xd68] sm:$0xff]
    %v858 = vld [vmem:[#allocation9 + $0xd70] sm:$0xff]
    %v859 = vld [vmem:[#allocation9 + $0xd78] sm:$0xff]
    %v860 = vld [vmem:[#allocation9 + $0xd80] sm:$0xff]
    %v861 = vld [vmem:[#allocation9 + $0xd88] sm:$0xff]
    %v862 = vld [vmem:[#allocation9 + $0xd90] sm:$0xff]
    %v863 = vld [vmem:[#allocation9 + $0xd98] sm:$0xff]
    %v864 = vld [vmem:[#allocation9 + $0xda0] sm:$0xff]
    %v865 = vld [vmem:[#allocation9 + $0xda8] sm:$0xff]
    %v866 = vld [vmem:[#allocation9 + $0xdb0] sm:$0xff]
    %v867 = vld [vmem:[#allocation9 + $0xdb8] sm:$0xff]
    %v868 = vld [vmem:[#allocation9 + $0xdc0] sm:$0xff]
    %v869 = vld [vmem:[#allocation9 + $0xdc8] sm:$0xff]
    %v870 = vld [vmem:[#allocation9 + $0xdd0] sm:$0xff]
    %v871 = vld [vmem:[#allocation9 + $0xdd8] sm:$0xff]
    %v872 = vld [vmem:[#allocation9 + $0xde0] sm:$0xff]
    %v873 = vld [vmem:[#allocation9 + $0xde8] sm:$0xff]
    %v874 = vld [vmem:[#allocation9 + $0xdf0] sm:$0xff]
    %v875 = vld [vmem:[#allocation9 + $0xdf8] sm:$0xff]
    %v876 = vld [vmem:[#allocation9 + $0xe00] sm:$0xff]
    %v877 = vld [vmem:[#allocation9 + $0xe08] sm:$0xff]
    %v878 = vld [vmem:[#allocation9 + $0xe10] sm:$0xff]
    %v879 = vld [vmem:[#allocation9 + $0xe18] sm:$0xff]
    %v880 = vld [vmem:[#allocation9 + $0xe20] sm:$0xff]
    %v881 = vld [vmem:[#allocation9 + $0xe28] sm:$0xff]
    %v882 = vld [vmem:[#allocation9 + $0xe30] sm:$0xff]
    %v883 = vld [vmem:[#allocation9 + $0xe38] sm:$0xff]
    %v884 = vld [vmem:[#allocation9 + $0xe40] sm:$0xff]
    %v885 = vld [vmem:[#allocation9 + $0xe48] sm:$0xff]
    %v886 = vld [vmem:[#allocation9 + $0xe50] sm:$0xff]
    %v887 = vld [vmem:[#allocation9 + $0xe58] sm:$0xff]
    %v888 = vld [vmem:[#allocation9 + $0xe60] sm:$0xff]
    %v889 = vld [vmem:[#allocation9 + $0xe68] sm:$0xff]
    %v890 = vld [vmem:[#allocation9 + $0xe70] sm:$0xff]
    %v891 = vld [vmem:[#allocation9 + $0xe78] sm:$0xff]
    %v892 = vld [vmem:[#allocation9 + $0xe80] sm:$0xff]
    %v893 = vld [vmem:[#allocation9 + $0xe88] sm:$0xff]
    %v894 = vld [vmem:[#allocation9 + $0xe90] sm:$0xff]
    %v895 = vld [vmem:[#allocation9 + $0xe98] sm:$0xff]
    %v896 = vld [vmem:[#allocation9 + $0xea0] sm:$0xff]
    %v897 = vld [vmem:[#allocation9 + $0xea8] sm:$0xff]
    %v898 = vld [vmem:[#allocation9 + $0xeb0] sm:$0xff]
    %v899 = vld [vmem:[#allocation9 + $0xeb8] sm:$0xff]
    %v900 = vld [vmem:[#allocation9 + $0xec0] sm:$0xff]
    %v901 = vld [vmem:[#allocation9 + $0xec8] sm:$0xff]
    %v902 = vld [vmem:[#allocation9 + $0xed0] sm:$0xff]
    %v903 = vld [vmem:[#allocation9 + $0xed8] sm:$0xff]
    %v904 = vld [vmem:[#allocation9 + $0xee0] sm:$0xff]
    %v905 = vld [vmem:[#allocation9 + $0xee8] sm:$0xff]
    %v906 = vld [vmem:[#allocation9 + $0xef0] sm:$0xff]
    %v907 = vld [vmem:[#allocation9 + $0xef8] sm:$0xff]
    %v908 = vld [vmem:[#allocation9 + $0xf00] sm:$0xff]
    %v909 = vld [vmem:[#allocation9 + $0xf08] sm:$0xff]
    %v910 = vld [vmem:[#allocation9 + $0xf10] sm:$0xff]
    %v911 = vld [vmem:[#allocation9 + $0xf18] sm:$0xff]
    %v912 = vld [vmem:[#allocation9 + $0xf20] sm:$0xff]
    %v913 = vld [vmem:[#allocation9 + $0xf28] sm:$0xff]
    %v914 = vld [vmem:[#allocation9 + $0xf30] sm:$0xff]
    %v915 = vld [vmem:[#allocation9 + $0xf38] sm:$0xff]
    %v916 = vld [vmem:[#allocation9 + $0xf40] sm:$0xff]
    %v917 = vld [vmem:[#allocation9 + $0xf48] sm:$0xff]
    %v918 = vld [vmem:[#allocation9 + $0xf50] sm:$0xff]
    %v919 = vld [vmem:[#allocation9 + $0xf58] sm:$0xff]
    %v920 = vld [vmem:[#allocation9 + $0xf60] sm:$0xff]
    %v921 = vld [vmem:[#allocation9 + $0xf68] sm:$0xff]
    %v922 = vld [vmem:[#allocation9 + $0xf70] sm:$0xff]
    %v923 = vld [vmem:[#allocation9 + $0xf78] sm:$0xff]
    %v924 = vld [vmem:[#allocation9 + $0xf80] sm:$0xff]
    %v925 = vld [vmem:[#allocation9 + $0xf88] sm:$0xff]
    %v926 = vld [vmem:[#allocation9 + $0xf90] sm:$0xff]
    %v927 = vld [vmem:[#allocation9 + $0xf98] sm:$0xff]
    %v928 = vld [vmem:[#allocation9 + $0xfa0] sm:$0xff]
    %v929 = vld [vmem:[#allocation9 + $0xfa8] sm:$0xff]
    %v930 = vld [vmem:[#allocation9 + $0xfb0] sm:$0xff]
    %v931 = vld [vmem:[#allocation9 + $0xfb8] sm:$0xff]
    %v932 = vld [vmem:[#allocation9 + $0xfc0] sm:$0xff]
    %v933 = vld [vmem:[#allocation9 + $0xfc8] sm:$0xff]
    %v934 = vld [vmem:[#allocation9 + $0xfd0] sm:$0xff]
    %v935 = vld [vmem:[#allocation9 + $0xfd8] sm:$0xff]
    %v936 = vld [vmem:[#allocation9 + $0xfe0] sm:$0xff]
    %v937 = vld [vmem:[#allocation9 + $0xfe8] sm:$0xff]
    %v938 = vld [vmem:[#allocation9 + $0xff0] sm:$0xff]
    %v939 = vld [vmem:[#allocation9 + $0xff8] sm:$0xff]
    %v940 = vld [vmem:[#allocation11] sm:$0xff]
    %v942 = vlaneseq
    %v943 = vshrl.u32 %v942, 7
    %v944 = vsub.s32 0, %v943
    %v945 = vrot.slane %v940, %v944
    %v946 = vlaneseq
    %v947 = vshrl.u32 %v946, 7
    %v948 = vsub.s32 1, %v947
    %v949 = vrot.slane %v940, %v948
    %v950 = vlaneseq
    %v951 = vshrl.u32 %v950, 7
    %v952 = vsub.s32 2, %v951
    %v953 = vrot.slane %v940, %v952
    %v954 = vlaneseq
    %v955 = vshrl.u32 %v954, 7
    %v956 = vsub.s32 3, %v955
    %v957 = vrot.slane %v940, %v956
    %v958 = vlaneseq
    %v959 = vshrl.u32 %v958, 7
    %v960 = vsub.s32 4, %v959
    %v961 = vrot.slane %v940, %v960
    %v962 = vlaneseq
    %v963 = vshrl.u32 %v962, 7
    %v964 = vsub.s32 5, %v963
    %v965 = vrot.slane %v940, %v964
    %v966 = vlaneseq
    %v967 = vshrl.u32 %v966, 7
    %v968 = vsub.s32 6, %v967
    %v969 = vrot.slane %v940, %v968
    %v970 = vlaneseq
    %v971 = vshrl.u32 %v970, 7
    %v972 = vsub.s32 7, %v971
    %v973 = vrot.slane %v940, %v972
    %v1494 = vunpack.c.l.b16 %v428
    %v1495 = vunpack.c.h.b16 %v428
    %v1496 = vunpack.c.l.b16 %v429
    %v1497 = vunpack.c.h.b16 %v429
    %v1498 = vunpack.c.l.b16 %v430
    %v1499 = vunpack.c.h.b16 %v430
    %v1500 = vunpack.c.l.b16 %v431
    %v1501 = vunpack.c.h.b16 %v431
    %v1502 = vunpack.c.l.b16 %v432
    %v1503 = vunpack.c.h.b16 %v432
    %v1504 = vunpack.c.l.b16 %v433
    %v1505 = vunpack.c.h.b16 %v433
    %v1506 = vunpack.c.l.b16 %v434
    %v1507 = vunpack.c.h.b16 %v434
    %v1508 = vunpack.c.l.b16 %v435
    %v1509 = vunpack.c.h.b16 %v435
    %v1510 = vunpack.c.l.b16 %v436
    %v1511 = vunpack.c.h.b16 %v436
    %v1512 = vunpack.c.l.b16 %v437
    %v1513 = vunpack.c.h.b16 %v437
    %v1514 = vunpack.c.l.b16 %v438
    %v1515 = vunpack.c.h.b16 %v438
    %v1516 = vunpack.c.l.b16 %v439
    %v1517 = vunpack.c.h.b16 %v439
    %v1518 = vunpack.c.l.b16 %v440
    %v1519 = vunpack.c.h.b16 %v440
    %v1520 = vunpack.c.l.b16 %v441
    %v1521 = vunpack.c.h.b16 %v441
    %v1522 = vunpack.c.l.b16 %v442
    %v1523 = vunpack.c.h.b16 %v442
    %v1524 = vunpack.c.l.b16 %v443
    %v1525 = vunpack.c.h.b16 %v443
    %v1526 = vunpack.c.l.b16 %v444
    %v1527 = vunpack.c.h.b16 %v444
    %v1528 = vunpack.c.l.b16 %v445
    %v1529 = vunpack.c.h.b16 %v445
    %v1530 = vunpack.c.l.b16 %v446
    %v1531 = vunpack.c.h.b16 %v446
    %v1532 = vunpack.c.l.b16 %v447
    %v1533 = vunpack.c.h.b16 %v447
    %v1534 = vunpack.c.l.b16 %v448
    %v1535 = vunpack.c.h.b16 %v448
    %v1536 = vunpack.c.l.b16 %v449
    %v1537 = vunpack.c.h.b16 %v449
    %v1538 = vunpack.c.l.b16 %v450
    %v1539 = vunpack.c.h.b16 %v450
    %v1540 = vunpack.c.l.b16 %v451
    %v1541 = vunpack.c.h.b16 %v451
    %v1542 = vunpack.c.l.b16 %v452
    %v1543 = vunpack.c.h.b16 %v452
    %v1544 = vunpack.c.l.b16 %v453
    %v1545 = vunpack.c.h.b16 %v453
    %v1546 = vunpack.c.l.b16 %v454
    %v1547 = vunpack.c.h.b16 %v454
    %v1548 = vunpack.c.l.b16 %v455
    %v1549 = vunpack.c.h.b16 %v455
    %v1550 = vunpack.c.l.b16 %v456
    %v1551 = vunpack.c.h.b16 %v456
    %v1552 = vunpack.c.l.b16 %v457
    %v1553 = vunpack.c.h.b16 %v457
    %v1554 = vunpack.c.l.b16 %v458
    %v1555 = vunpack.c.h.b16 %v458
    %v1556 = vunpack.c.l.b16 %v459
    %v1557 = vunpack.c.h.b16 %v459
    %v1558 = vunpack.c.l.b16 %v460
    %v1559 = vunpack.c.h.b16 %v460
    %v1560 = vunpack.c.l.b16 %v461
    %v1561 = vunpack.c.h.b16 %v461
    %v1562 = vunpack.c.l.b16 %v462
    %v1563 = vunpack.c.h.b16 %v462
    %v1564 = vunpack.c.l.b16 %v463
    %v1565 = vunpack.c.h.b16 %v463
    %v1566 = vunpack.c.l.b16 %v464
    %v1567 = vunpack.c.h.b16 %v464
    %v1568 = vunpack.c.l.b16 %v465
    %v1569 = vunpack.c.h.b16 %v465
    %v1570 = vunpack.c.l.b16 %v466
    %v1571 = vunpack.c.h.b16 %v466
    %v1572 = vunpack.c.l.b16 %v467
    %v1573 = vunpack.c.h.b16 %v467
    %v1574 = vunpack.c.l.b16 %v468
    %v1575 = vunpack.c.h.b16 %v468
    %v1576 = vunpack.c.l.b16 %v469
    %v1577 = vunpack.c.h.b16 %v469
    %v1578 = vunpack.c.l.b16 %v470
    %v1579 = vunpack.c.h.b16 %v470
    %v1580 = vunpack.c.l.b16 %v471
    %v1581 = vunpack.c.h.b16 %v471
    %v1582 = vunpack.c.l.b16 %v472
    %v1583 = vunpack.c.h.b16 %v472
    %v1584 = vunpack.c.l.b16 %v473
    %v1585 = vunpack.c.h.b16 %v473
    %v1586 = vunpack.c.l.b16 %v474
    %v1587 = vunpack.c.h.b16 %v474
    %v1588 = vunpack.c.l.b16 %v475
    %v1589 = vunpack.c.h.b16 %v475
    %v1590 = vunpack.c.l.b16 %v476
    %v1591 = vunpack.c.h.b16 %v476
    %v1592 = vunpack.c.l.b16 %v477
    %v1593 = vunpack.c.h.b16 %v477
    %v1594 = vunpack.c.l.b16 %v478
    %v1595 = vunpack.c.h.b16 %v478
    %v1596 = vunpack.c.l.b16 %v479
    %v1597 = vunpack.c.h.b16 %v479
    %v1598 = vunpack.c.l.b16 %v480
    %v1599 = vunpack.c.h.b16 %v480
    %v1600 = vunpack.c.l.b16 %v481
    %v1601 = vunpack.c.h.b16 %v481
    %v1602 = vunpack.c.l.b16 %v482
    %v1603 = vunpack.c.h.b16 %v482
    %v1604 = vunpack.c.l.b16 %v483
    %v1605 = vunpack.c.h.b16 %v483
    %v1606 = vunpack.c.l.b16 %v484
    %v1607 = vunpack.c.h.b16 %v484
    %v1608 = vunpack.c.l.b16 %v485
    %v1609 = vunpack.c.h.b16 %v485
    %v1610 = vunpack.c.l.b16 %v486
    %v1611 = vunpack.c.h.b16 %v486
    %v1612 = vunpack.c.l.b16 %v487
    %v1613 = vunpack.c.h.b16 %v487
    %v1614 = vunpack.c.l.b16 %v488
    %v1615 = vunpack.c.h.b16 %v488
    %v1616 = vunpack.c.l.b16 %v489
    %v1617 = vunpack.c.h.b16 %v489
    %v1618 = vunpack.c.l.b16 %v490
    %v1619 = vunpack.c.h.b16 %v490
    %v1620 = vunpack.c.l.b16 %v491
    %v1621 = vunpack.c.h.b16 %v491
    %v1622 = vunpack.c.l.b16 %v492
    %v1623 = vunpack.c.h.b16 %v492
    %v1624 = vunpack.c.l.b16 %v493
    %v1625 = vunpack.c.h.b16 %v493
    %v1626 = vunpack.c.l.b16 %v494
    %v1627 = vunpack.c.h.b16 %v494
    %v1628 = vunpack.c.l.b16 %v495
    %v1629 = vunpack.c.h.b16 %v495
    %v1630 = vunpack.c.l.b16 %v496
    %v1631 = vunpack.c.h.b16 %v496
    %v1632 = vunpack.c.l.b16 %v497
    %v1633 = vunpack.c.h.b16 %v497
    %v1634 = vunpack.c.l.b16 %v498
    %v1635 = vunpack.c.h.b16 %v498
    %v1636 = vunpack.c.l.b16 %v499
    %v1637 = vunpack.c.h.b16 %v499
    %v1638 = vunpack.c.l.b16 %v500
    %v1639 = vunpack.c.h.b16 %v500
    %v1640 = vunpack.c.l.b16 %v501
    %v1641 = vunpack.c.h.b16 %v501
    %v1642 = vunpack.c.l.b16 %v502
    %v1643 = vunpack.c.h.b16 %v502
    %v1644 = vunpack.c.l.b16 %v503
    %v1645 = vunpack.c.h.b16 %v503
    %v1646 = vunpack.c.l.b16 %v504
    %v1647 = vunpack.c.h.b16 %v504
    %v1648 = vunpack.c.l.b16 %v505
    %v1649 = vunpack.c.h.b16 %v505
    %v1650 = vunpack.c.l.b16 %v506
    %v1651 = vunpack.c.h.b16 %v506
    %v1652 = vunpack.c.l.b16 %v507
    %v1653 = vunpack.c.h.b16 %v507
    %v1654 = vunpack.c.l.b16 %v508
    %v1655 = vunpack.c.h.b16 %v508
    %v1656 = vunpack.c.l.b16 %v509
    %v1657 = vunpack.c.h.b16 %v509
    %v1658 = vunpack.c.l.b16 %v510
    %v1659 = vunpack.c.h.b16 %v510
    %v1660 = vunpack.c.l.b16 %v511
    %v1661 = vunpack.c.h.b16 %v511
    %v1662 = vunpack.c.l.b16 %v512
    %v1663 = vunpack.c.h.b16 %v512
    %v1664 = vunpack.c.l.b16 %v513
    %v1665 = vunpack.c.h.b16 %v513
    %v1666 = vunpack.c.l.b16 %v514
    %v1667 = vunpack.c.h.b16 %v514
    %v1668 = vunpack.c.l.b16 %v515
    %v1669 = vunpack.c.h.b16 %v515
    %v1670 = vunpack.c.l.b16 %v516
    %v1671 = vunpack.c.h.b16 %v516
    %v1672 = vunpack.c.l.b16 %v517
    %v1673 = vunpack.c.h.b16 %v517
    %v1674 = vunpack.c.l.b16 %v518
    %v1675 = vunpack.c.h.b16 %v518
    %v1676 = vunpack.c.l.b16 %v519
    %v1677 = vunpack.c.h.b16 %v519
    %v1678 = vunpack.c.l.b16 %v520
    %v1679 = vunpack.c.h.b16 %v520
    %v1680 = vunpack.c.l.b16 %v521
    %v1681 = vunpack.c.h.b16 %v521
    %v1682 = vunpack.c.l.b16 %v522
    %v1683 = vunpack.c.h.b16 %v522
    %v1684 = vunpack.c.l.b16 %v523
    %v1685 = vunpack.c.h.b16 %v523
    %v1686 = vunpack.c.l.b16 %v524
    %v1687 = vunpack.c.h.b16 %v524
    %v1688 = vunpack.c.l.b16 %v525
    %v1689 = vunpack.c.h.b16 %v525
    %v1690 = vunpack.c.l.b16 %v526
    %v1691 = vunpack.c.h.b16 %v526
    %v1692 = vunpack.c.l.b16 %v527
    %v1693 = vunpack.c.h.b16 %v527
    %v1694 = vunpack.c.l.b16 %v528
    %v1695 = vunpack.c.h.b16 %v528
    %v1696 = vunpack.c.l.b16 %v529
    %v1697 = vunpack.c.h.b16 %v529
    %v1698 = vunpack.c.l.b16 %v530
    %v1699 = vunpack.c.h.b16 %v530
    %v1700 = vunpack.c.l.b16 %v531
    %v1701 = vunpack.c.h.b16 %v531
    %v1702 = vunpack.c.l.b16 %v532
    %v1703 = vunpack.c.h.b16 %v532
    %v1704 = vunpack.c.l.b16 %v533
    %v1705 = vunpack.c.h.b16 %v533
    %v1706 = vunpack.c.l.b16 %v534
    %v1707 = vunpack.c.h.b16 %v534
    %v1708 = vunpack.c.l.b16 %v535
    %v1709 = vunpack.c.h.b16 %v535
    %v1710 = vunpack.c.l.b16 %v536
    %v1711 = vunpack.c.h.b16 %v536
    %v1712 = vunpack.c.l.b16 %v537
    %v1713 = vunpack.c.h.b16 %v537
    %v1714 = vunpack.c.l.b16 %v538
    %v1715 = vunpack.c.h.b16 %v538
    %v1716 = vunpack.c.l.b16 %v539
    %v1717 = vunpack.c.h.b16 %v539
    %v1718 = vunpack.c.l.b16 %v540
    %v1719 = vunpack.c.h.b16 %v540
    %v1720 = vunpack.c.l.b16 %v541
    %v1721 = vunpack.c.h.b16 %v541
    %v1722 = vunpack.c.l.b16 %v542
    %v1723 = vunpack.c.h.b16 %v542
    %v1724 = vunpack.c.l.b16 %v543
    %v1725 = vunpack.c.h.b16 %v543
    %v1726 = vunpack.c.l.b16 %v544
    %v1727 = vunpack.c.h.b16 %v544
    %v1728 = vunpack.c.l.b16 %v545
    %v1729 = vunpack.c.h.b16 %v545
    %v1730 = vunpack.c.l.b16 %v546
    %v1731 = vunpack.c.h.b16 %v546
    %v1732 = vunpack.c.l.b16 %v547
    %v1733 = vunpack.c.h.b16 %v547
    %v1734 = vunpack.c.l.b16 %v548
    %v1735 = vunpack.c.h.b16 %v548
    %v1736 = vunpack.c.l.b16 %v549
    %v1737 = vunpack.c.h.b16 %v549
    %v1738 = vunpack.c.l.b16 %v550
    %v1739 = vunpack.c.h.b16 %v550
    %v1740 = vunpack.c.l.b16 %v551
    %v1741 = vunpack.c.h.b16 %v551
    %v1742 = vunpack.c.l.b16 %v552
    %v1743 = vunpack.c.h.b16 %v552
    %v1744 = vunpack.c.l.b16 %v553
    %v1745 = vunpack.c.h.b16 %v553
    %v1746 = vunpack.c.l.b16 %v554
    %v1747 = vunpack.c.h.b16 %v554
    %v1748 = vunpack.c.l.b16 %v555
    %v1749 = vunpack.c.h.b16 %v555
    %v1750 = vunpack.c.l.b16 %v556
    %v1751 = vunpack.c.h.b16 %v556
    %v1752 = vunpack.c.l.b16 %v557
    %v1753 = vunpack.c.h.b16 %v557
    %v1754 = vunpack.c.l.b16 %v558
    %v1755 = vunpack.c.h.b16 %v558
    %v1756 = vunpack.c.l.b16 %v559
    %v1757 = vunpack.c.h.b16 %v559
    %v1758 = vunpack.c.l.b16 %v560
    %v1759 = vunpack.c.h.b16 %v560
    %v1760 = vunpack.c.l.b16 %v561
    %v1761 = vunpack.c.h.b16 %v561
    %v1762 = vunpack.c.l.b16 %v562
    %v1763 = vunpack.c.h.b16 %v562
    %v1764 = vunpack.c.l.b16 %v563
    %v1765 = vunpack.c.h.b16 %v563
    %v1766 = vunpack.c.l.b16 %v564
    %v1767 = vunpack.c.h.b16 %v564
    %v1768 = vunpack.c.l.b16 %v565
    %v1769 = vunpack.c.h.b16 %v565
    %v1770 = vunpack.c.l.b16 %v566
    %v1771 = vunpack.c.h.b16 %v566
    %v1772 = vunpack.c.l.b16 %v567
    %v1773 = vunpack.c.h.b16 %v567
    %v1774 = vunpack.c.l.b16 %v568
    %v1775 = vunpack.c.h.b16 %v568
    %v1776 = vunpack.c.l.b16 %v569
    %v1777 = vunpack.c.h.b16 %v569
    %v1778 = vunpack.c.l.b16 %v570
    %v1779 = vunpack.c.h.b16 %v570
    %v1780 = vunpack.c.l.b16 %v571
    %v1781 = vunpack.c.h.b16 %v571
    %v1782 = vunpack.c.l.b16 %v572
    %v1783 = vunpack.c.h.b16 %v572
    %v1784 = vunpack.c.l.b16 %v573
    %v1785 = vunpack.c.h.b16 %v573
    %v1786 = vunpack.c.l.b16 %v574
    %v1787 = vunpack.c.h.b16 %v574
    %v1788 = vunpack.c.l.b16 %v575
    %v1789 = vunpack.c.h.b16 %v575
    %v1790 = vunpack.c.l.b16 %v576
    %v1791 = vunpack.c.h.b16 %v576
    %v1792 = vunpack.c.l.b16 %v577
    %v1793 = vunpack.c.h.b16 %v577
    %v1794 = vunpack.c.l.b16 %v578
    %v1795 = vunpack.c.h.b16 %v578
    %v1796 = vunpack.c.l.b16 %v579
    %v1797 = vunpack.c.h.b16 %v579
    %v1798 = vunpack.c.l.b16 %v580
    %v1799 = vunpack.c.h.b16 %v580
    %v1800 = vunpack.c.l.b16 %v581
    %v1801 = vunpack.c.h.b16 %v581
    %v1802 = vunpack.c.l.b16 %v582
    %v1803 = vunpack.c.h.b16 %v582
    %v1804 = vunpack.c.l.b16 %v583
    %v1805 = vunpack.c.h.b16 %v583
    %v1806 = vunpack.c.l.b16 %v584
    %v1807 = vunpack.c.h.b16 %v584
    %v1808 = vunpack.c.l.b16 %v585
    %v1809 = vunpack.c.h.b16 %v585
    %v1810 = vunpack.c.l.b16 %v586
    %v1811 = vunpack.c.h.b16 %v586
    %v1812 = vunpack.c.l.b16 %v587
    %v1813 = vunpack.c.h.b16 %v587
    %v1814 = vunpack.c.l.b16 %v588
    %v1815 = vunpack.c.h.b16 %v588
    %v1816 = vunpack.c.l.b16 %v589
    %v1817 = vunpack.c.h.b16 %v589
    %v1818 = vunpack.c.l.b16 %v590
    %v1819 = vunpack.c.h.b16 %v590
    %v1820 = vunpack.c.l.b16 %v591
    %v1821 = vunpack.c.h.b16 %v591
    %v1822 = vunpack.c.l.b16 %v592
    %v1823 = vunpack.c.h.b16 %v592
    %v1824 = vunpack.c.l.b16 %v593
    %v1825 = vunpack.c.h.b16 %v593
    %v1826 = vunpack.c.l.b16 %v594
    %v1827 = vunpack.c.h.b16 %v594
    %v1828 = vunpack.c.l.b16 %v595
    %v1829 = vunpack.c.h.b16 %v595
    %v1830 = vunpack.c.l.b16 %v596
    %v1831 = vunpack.c.h.b16 %v596
    %v1832 = vunpack.c.l.b16 %v597
    %v1833 = vunpack.c.h.b16 %v597
    %v1834 = vunpack.c.l.b16 %v598
    %v1835 = vunpack.c.h.b16 %v598
    %v1836 = vunpack.c.l.b16 %v599
    %v1837 = vunpack.c.h.b16 %v599
    %v1838 = vunpack.c.l.b16 %v600
    %v1839 = vunpack.c.h.b16 %v600
    %v1840 = vunpack.c.l.b16 %v601
    %v1841 = vunpack.c.h.b16 %v601
    %v1842 = vunpack.c.l.b16 %v602
    %v1843 = vunpack.c.h.b16 %v602
    %v1844 = vunpack.c.l.b16 %v603
    %v1845 = vunpack.c.h.b16 %v603
    %v1846 = vunpack.c.l.b16 %v604
    %v1847 = vunpack.c.h.b16 %v604
    %v1848 = vunpack.c.l.b16 %v605
    %v1849 = vunpack.c.h.b16 %v605
    %v1850 = vunpack.c.l.b16 %v606
    %v1851 = vunpack.c.h.b16 %v606
    %v1852 = vunpack.c.l.b16 %v607
    %v1853 = vunpack.c.h.b16 %v607
    %v1854 = vunpack.c.l.b16 %v608
    %v1855 = vunpack.c.h.b16 %v608
    %v1856 = vunpack.c.l.b16 %v609
    %v1857 = vunpack.c.h.b16 %v609
    %v1858 = vunpack.c.l.b16 %v610
    %v1859 = vunpack.c.h.b16 %v610
    %v1860 = vunpack.c.l.b16 %v611
    %v1861 = vunpack.c.h.b16 %v611
    %v1862 = vunpack.c.l.b16 %v612
    %v1863 = vunpack.c.h.b16 %v612
    %v1864 = vunpack.c.l.b16 %v613
    %v1865 = vunpack.c.h.b16 %v613
    %v1866 = vunpack.c.l.b16 %v614
    %v1867 = vunpack.c.h.b16 %v614
    %v1868 = vunpack.c.l.b16 %v615
    %v1869 = vunpack.c.h.b16 %v615
    %v1870 = vunpack.c.l.b16 %v616
    %v1871 = vunpack.c.h.b16 %v616
    %v1872 = vunpack.c.l.b16 %v617
    %v1873 = vunpack.c.h.b16 %v617
    %v1874 = vunpack.c.l.b16 %v618
    %v1875 = vunpack.c.h.b16 %v618
    %v1876 = vunpack.c.l.b16 %v619
    %v1877 = vunpack.c.h.b16 %v619
    %v1878 = vunpack.c.l.b16 %v620
    %v1879 = vunpack.c.h.b16 %v620
    %v1880 = vunpack.c.l.b16 %v621
    %v1881 = vunpack.c.h.b16 %v621
    %v1882 = vunpack.c.l.b16 %v622
    %v1883 = vunpack.c.h.b16 %v622
    %v1884 = vunpack.c.l.b16 %v623
    %v1885 = vunpack.c.h.b16 %v623
    %v1886 = vunpack.c.l.b16 %v624
    %v1887 = vunpack.c.h.b16 %v624
    %v1888 = vunpack.c.l.b16 %v625
    %v1889 = vunpack.c.h.b16 %v625
    %v1890 = vunpack.c.l.b16 %v626
    %v1891 = vunpack.c.h.b16 %v626
    %v1892 = vunpack.c.l.b16 %v627
    %v1893 = vunpack.c.h.b16 %v627
    %v1894 = vunpack.c.l.b16 %v628
    %v1895 = vunpack.c.h.b16 %v628
    %v1896 = vunpack.c.l.b16 %v629
    %v1897 = vunpack.c.h.b16 %v629
    %v1898 = vunpack.c.l.b16 %v630
    %v1899 = vunpack.c.h.b16 %v630
    %v1900 = vunpack.c.l.b16 %v631
    %v1901 = vunpack.c.h.b16 %v631
    %v1902 = vunpack.c.l.b16 %v632
    %v1903 = vunpack.c.h.b16 %v632
    %v1904 = vunpack.c.l.b16 %v633
    %v1905 = vunpack.c.h.b16 %v633
    %v1906 = vunpack.c.l.b16 %v634
    %v1907 = vunpack.c.h.b16 %v634
    %v1908 = vunpack.c.l.b16 %v635
    %v1909 = vunpack.c.h.b16 %v635
    %v1910 = vunpack.c.l.b16 %v636
    %v1911 = vunpack.c.h.b16 %v636
    %v1912 = vunpack.c.l.b16 %v637
    %v1913 = vunpack.c.h.b16 %v637
    %v1914 = vunpack.c.l.b16 %v638
    %v1915 = vunpack.c.h.b16 %v638
    %v1916 = vunpack.c.l.b16 %v639
    %v1917 = vunpack.c.h.b16 %v639
    %v1918 = vunpack.c.l.b16 %v640
    %v1919 = vunpack.c.h.b16 %v640
    %v1920 = vunpack.c.l.b16 %v641
    %v1921 = vunpack.c.h.b16 %v641
    %v1922 = vunpack.c.l.b16 %v642
    %v1923 = vunpack.c.h.b16 %v642
    %v1924 = vunpack.c.l.b16 %v643
    %v1925 = vunpack.c.h.b16 %v643
    %v1926 = vunpack.c.l.b16 %v644
    %v1927 = vunpack.c.h.b16 %v644
    %v1928 = vunpack.c.l.b16 %v645
    %v1929 = vunpack.c.h.b16 %v645
    %v1930 = vunpack.c.l.b16 %v646
    %v1931 = vunpack.c.h.b16 %v646
    %v1932 = vunpack.c.l.b16 %v647
    %v1933 = vunpack.c.h.b16 %v647
    %v1934 = vunpack.c.l.b16 %v648
    %v1935 = vunpack.c.h.b16 %v648
    %v1936 = vunpack.c.l.b16 %v649
    %v1937 = vunpack.c.h.b16 %v649
    %v1938 = vunpack.c.l.b16 %v650
    %v1939 = vunpack.c.h.b16 %v650
    %v1940 = vunpack.c.l.b16 %v651
    %v1941 = vunpack.c.h.b16 %v651
    %v1942 = vunpack.c.l.b16 %v652
    %v1943 = vunpack.c.h.b16 %v652
    %v1944 = vunpack.c.l.b16 %v653
    %v1945 = vunpack.c.h.b16 %v653
    %v1946 = vunpack.c.l.b16 %v654
    %v1947 = vunpack.c.h.b16 %v654
    %v1948 = vunpack.c.l.b16 %v655
    %v1949 = vunpack.c.h.b16 %v655
    %v1950 = vunpack.c.l.b16 %v656
    %v1951 = vunpack.c.h.b16 %v656
    %v1952 = vunpack.c.l.b16 %v657
    %v1953 = vunpack.c.h.b16 %v657
    %v1954 = vunpack.c.l.b16 %v658
    %v1955 = vunpack.c.h.b16 %v658
    %v1956 = vunpack.c.l.b16 %v659
    %v1957 = vunpack.c.h.b16 %v659
    %v1958 = vunpack.c.l.b16 %v660
    %v1959 = vunpack.c.h.b16 %v660
    %v1960 = vunpack.c.l.b16 %v661
    %v1961 = vunpack.c.h.b16 %v661
    %v1962 = vunpack.c.l.b16 %v662
    %v1963 = vunpack.c.h.b16 %v662
    %v1964 = vunpack.c.l.b16 %v663
    %v1965 = vunpack.c.h.b16 %v663
    %v1966 = vunpack.c.l.b16 %v664
    %v1967 = vunpack.c.h.b16 %v664
    %v1968 = vunpack.c.l.b16 %v665
    %v1969 = vunpack.c.h.b16 %v665
    %v1970 = vunpack.c.l.b16 %v666
    %v1971 = vunpack.c.h.b16 %v666
    %v1972 = vunpack.c.l.b16 %v667
    %v1973 = vunpack.c.h.b16 %v667
    %v1974 = vunpack.c.l.b16 %v668
    %v1975 = vunpack.c.h.b16 %v668
    %v1976 = vunpack.c.l.b16 %v669
    %v1977 = vunpack.c.h.b16 %v669
    %v1978 = vunpack.c.l.b16 %v670
    %v1979 = vunpack.c.h.b16 %v670
    %v1980 = vunpack.c.l.b16 %v671
    %v1981 = vunpack.c.h.b16 %v671
    %v1982 = vunpack.c.l.b16 %v672
    %v1983 = vunpack.c.h.b16 %v672
    %v1984 = vunpack.c.l.b16 %v673
    %v1985 = vunpack.c.h.b16 %v673
    %v1986 = vunpack.c.l.b16 %v674
    %v1987 = vunpack.c.h.b16 %v674
    %v1988 = vunpack.c.l.b16 %v675
    %v1989 = vunpack.c.h.b16 %v675
    %v1990 = vunpack.c.l.b16 %v676
    %v1991 = vunpack.c.h.b16 %v676
    %v1992 = vunpack.c.l.b16 %v677
    %v1993 = vunpack.c.h.b16 %v677
    %v1994 = vunpack.c.l.b16 %v678
    %v1995 = vunpack.c.h.b16 %v678
    %v1996 = vunpack.c.l.b16 %v679
    %v1997 = vunpack.c.h.b16 %v679
    %v1998 = vunpack.c.l.b16 %v680
    %v1999 = vunpack.c.h.b16 %v680
    %v2000 = vunpack.c.l.b16 %v681
    %v2001 = vunpack.c.h.b16 %v681
    %v2002 = vunpack.c.l.b16 %v682
    %v2003 = vunpack.c.h.b16 %v682
    %v2004 = vunpack.c.l.b16 %v683
    %v2005 = vunpack.c.h.b16 %v683
    %v2006 = vunpack.c.l.b16 %v684
    %v2007 = vunpack.c.h.b16 %v684
    %v2008 = vunpack.c.l.b16 %v685
    %v2009 = vunpack.c.h.b16 %v685
    %v2010 = vunpack.c.l.b16 %v686
    %v2011 = vunpack.c.h.b16 %v686
    %v2012 = vunpack.c.l.b16 %v687
    %v2013 = vunpack.c.h.b16 %v687
    %v2014 = vunpack.c.l.b16 %v688
    %v2015 = vunpack.c.h.b16 %v688
    %v2016 = vunpack.c.l.b16 %v689
    %v2017 = vunpack.c.h.b16 %v689
    %v2018 = vunpack.c.l.b16 %v690
    %v2019 = vunpack.c.h.b16 %v690
    %v2020 = vunpack.c.l.b16 %v691
    %v2021 = vunpack.c.h.b16 %v691
    %v2022 = vunpack.c.l.b16 %v692
    %v2023 = vunpack.c.h.b16 %v692
    %v2024 = vunpack.c.l.b16 %v693
    %v2025 = vunpack.c.h.b16 %v693
    %v2026 = vunpack.c.l.b16 %v694
    %v2027 = vunpack.c.h.b16 %v694
    %v2028 = vunpack.c.l.b16 %v695
    %v2029 = vunpack.c.h.b16 %v695
    %v2030 = vunpack.c.l.b16 %v696
    %v2031 = vunpack.c.h.b16 %v696
    %v2032 = vunpack.c.l.b16 %v697
    %v2033 = vunpack.c.h.b16 %v697
    %v2034 = vunpack.c.l.b16 %v698
    %v2035 = vunpack.c.h.b16 %v698
    %v2036 = vunpack.c.l.b16 %v699
    %v2037 = vunpack.c.h.b16 %v699
    %v2038 = vunpack.c.l.b16 %v700
    %v2039 = vunpack.c.h.b16 %v700
    %v2040 = vunpack.c.l.b16 %v701
    %v2041 = vunpack.c.h.b16 %v701
    %v2042 = vunpack.c.l.b16 %v702
    %v2043 = vunpack.c.h.b16 %v702
    %v2044 = vunpack.c.l.b16 %v703
    %v2045 = vunpack.c.h.b16 %v703
    %v2046 = vunpack.c.l.b16 %v704
    %v2047 = vunpack.c.h.b16 %v704
    %v2048 = vunpack.c.l.b16 %v705
    %v2049 = vunpack.c.h.b16 %v705
    %v2050 = vunpack.c.l.b16 %v706
    %v2051 = vunpack.c.h.b16 %v706
    %v2052 = vunpack.c.l.b16 %v707
    %v2053 = vunpack.c.h.b16 %v707
    %v2054 = vunpack.c.l.b16 %v708
    %v2055 = vunpack.c.h.b16 %v708
    %v2056 = vunpack.c.l.b16 %v709
    %v2057 = vunpack.c.h.b16 %v709
    %v2058 = vunpack.c.l.b16 %v710
    %v2059 = vunpack.c.h.b16 %v710
    %v2060 = vunpack.c.l.b16 %v711
    %v2061 = vunpack.c.h.b16 %v711
    %v2062 = vunpack.c.l.b16 %v712
    %v2063 = vunpack.c.h.b16 %v712
    %v2064 = vunpack.c.l.b16 %v713
    %v2065 = vunpack.c.h.b16 %v713
    %v2066 = vunpack.c.l.b16 %v714
    %v2067 = vunpack.c.h.b16 %v714
    %v2068 = vunpack.c.l.b16 %v715
    %v2069 = vunpack.c.h.b16 %v715
    %v2070 = vunpack.c.l.b16 %v716
    %v2071 = vunpack.c.h.b16 %v716
    %v2072 = vunpack.c.l.b16 %v717
    %v2073 = vunpack.c.h.b16 %v717
    %v2074 = vunpack.c.l.b16 %v718
    %v2075 = vunpack.c.h.b16 %v718
    %v2076 = vunpack.c.l.b16 %v719
    %v2077 = vunpack.c.h.b16 %v719
    %v2078 = vunpack.c.l.b16 %v720
    %v2079 = vunpack.c.h.b16 %v720
    %v2080 = vunpack.c.l.b16 %v721
    %v2081 = vunpack.c.h.b16 %v721
    %v2082 = vunpack.c.l.b16 %v722
    %v2083 = vunpack.c.h.b16 %v722
    %v2084 = vunpack.c.l.b16 %v723
    %v2085 = vunpack.c.h.b16 %v723
    %v2086 = vunpack.c.l.b16 %v724
    %v2087 = vunpack.c.h.b16 %v724
    %v2088 = vunpack.c.l.b16 %v725
    %v2089 = vunpack.c.h.b16 %v725
    %v2090 = vunpack.c.l.b16 %v726
    %v2091 = vunpack.c.h.b16 %v726
    %v2092 = vunpack.c.l.b16 %v727
    %v2093 = vunpack.c.h.b16 %v727
    %v2094 = vunpack.c.l.b16 %v728
    %v2095 = vunpack.c.h.b16 %v728
    %v2096 = vunpack.c.l.b16 %v729
    %v2097 = vunpack.c.h.b16 %v729
    %v2098 = vunpack.c.l.b16 %v730
    %v2099 = vunpack.c.h.b16 %v730
    %v2100 = vunpack.c.l.b16 %v731
    %v2101 = vunpack.c.h.b16 %v731
    %v2102 = vunpack.c.l.b16 %v732
    %v2103 = vunpack.c.h.b16 %v732
    %v2104 = vunpack.c.l.b16 %v733
    %v2105 = vunpack.c.h.b16 %v733
    %v2106 = vunpack.c.l.b16 %v734
    %v2107 = vunpack.c.h.b16 %v734
    %v2108 = vunpack.c.l.b16 %v735
    %v2109 = vunpack.c.h.b16 %v735
    %v2110 = vunpack.c.l.b16 %v736
    %v2111 = vunpack.c.h.b16 %v736
    %v2112 = vunpack.c.l.b16 %v737
    %v2113 = vunpack.c.h.b16 %v737
    %v2114 = vunpack.c.l.b16 %v738
    %v2115 = vunpack.c.h.b16 %v738
    %v2116 = vunpack.c.l.b16 %v739
    %v2117 = vunpack.c.h.b16 %v739
    %v2118 = vunpack.c.l.b16 %v740
    %v2119 = vunpack.c.h.b16 %v740
    %v2120 = vunpack.c.l.b16 %v741
    %v2121 = vunpack.c.h.b16 %v741
    %v2122 = vunpack.c.l.b16 %v742
    %v2123 = vunpack.c.h.b16 %v742
    %v2124 = vunpack.c.l.b16 %v743
    %v2125 = vunpack.c.h.b16 %v743
    %v2126 = vunpack.c.l.b16 %v744
    %v2127 = vunpack.c.h.b16 %v744
    %v2128 = vunpack.c.l.b16 %v745
    %v2129 = vunpack.c.h.b16 %v745
    %v2130 = vunpack.c.l.b16 %v746
    %v2131 = vunpack.c.h.b16 %v746
    %v2132 = vunpack.c.l.b16 %v747
    %v2133 = vunpack.c.h.b16 %v747
    %v2134 = vunpack.c.l.b16 %v748
    %v2135 = vunpack.c.h.b16 %v748
    %v2136 = vunpack.c.l.b16 %v749
    %v2137 = vunpack.c.h.b16 %v749
    %v2138 = vunpack.c.l.b16 %v750
    %v2139 = vunpack.c.h.b16 %v750
    %v2140 = vunpack.c.l.b16 %v751
    %v2141 = vunpack.c.h.b16 %v751
    %v2142 = vunpack.c.l.b16 %v752
    %v2143 = vunpack.c.h.b16 %v752
    %v2144 = vunpack.c.l.b16 %v753
    %v2145 = vunpack.c.h.b16 %v753
    %v2146 = vunpack.c.l.b16 %v754
    %v2147 = vunpack.c.h.b16 %v754
    %v2148 = vunpack.c.l.b16 %v755
    %v2149 = vunpack.c.h.b16 %v755
    %v2150 = vunpack.c.l.b16 %v756
    %v2151 = vunpack.c.h.b16 %v756
    %v2152 = vunpack.c.l.b16 %v757
    %v2153 = vunpack.c.h.b16 %v757
    %v2154 = vunpack.c.l.b16 %v758
    %v2155 = vunpack.c.h.b16 %v758
    %v2156 = vunpack.c.l.b16 %v759
    %v2157 = vunpack.c.h.b16 %v759
    %v2158 = vunpack.c.l.b16 %v760
    %v2159 = vunpack.c.h.b16 %v760
    %v2160 = vunpack.c.l.b16 %v761
    %v2161 = vunpack.c.h.b16 %v761
    %v2162 = vunpack.c.l.b16 %v762
    %v2163 = vunpack.c.h.b16 %v762
    %v2164 = vunpack.c.l.b16 %v763
    %v2165 = vunpack.c.h.b16 %v763
    %v2166 = vunpack.c.l.b16 %v764
    %v2167 = vunpack.c.h.b16 %v764
    %v2168 = vunpack.c.l.b16 %v765
    %v2169 = vunpack.c.h.b16 %v765
    %v2170 = vunpack.c.l.b16 %v766
    %v2171 = vunpack.c.h.b16 %v766
    %v2172 = vunpack.c.l.b16 %v767
    %v2173 = vunpack.c.h.b16 %v767
    %v2174 = vunpack.c.l.b16 %v768
    %v2175 = vunpack.c.h.b16 %v768
    %v2176 = vunpack.c.l.b16 %v769
    %v2177 = vunpack.c.h.b16 %v769
    %v2178 = vunpack.c.l.b16 %v770
    %v2179 = vunpack.c.h.b16 %v770
    %v2180 = vunpack.c.l.b16 %v771
    %v2181 = vunpack.c.h.b16 %v771
    %v2182 = vunpack.c.l.b16 %v772
    %v2183 = vunpack.c.h.b16 %v772
    %v2184 = vunpack.c.l.b16 %v773
    %v2185 = vunpack.c.h.b16 %v773
    %v2186 = vunpack.c.l.b16 %v774
    %v2187 = vunpack.c.h.b16 %v774
    %v2188 = vunpack.c.l.b16 %v775
    %v2189 = vunpack.c.h.b16 %v775
    %v2190 = vunpack.c.l.b16 %v776
    %v2191 = vunpack.c.h.b16 %v776
    %v2192 = vunpack.c.l.b16 %v777
    %v2193 = vunpack.c.h.b16 %v777
    %v2194 = vunpack.c.l.b16 %v778
    %v2195 = vunpack.c.h.b16 %v778
    %v2196 = vunpack.c.l.b16 %v779
    %v2197 = vunpack.c.h.b16 %v779
    %v2198 = vunpack.c.l.b16 %v780
    %v2199 = vunpack.c.h.b16 %v780
    %v2200 = vunpack.c.l.b16 %v781
    %v2201 = vunpack.c.h.b16 %v781
    %v2202 = vunpack.c.l.b16 %v782
    %v2203 = vunpack.c.h.b16 %v782
    %v2204 = vunpack.c.l.b16 %v783
    %v2205 = vunpack.c.h.b16 %v783
    %v2206 = vunpack.c.l.b16 %v784
    %v2207 = vunpack.c.h.b16 %v784
    %v2208 = vunpack.c.l.b16 %v785
    %v2209 = vunpack.c.h.b16 %v785
    %v2210 = vunpack.c.l.b16 %v786
    %v2211 = vunpack.c.h.b16 %v786
    %v2212 = vunpack.c.l.b16 %v787
    %v2213 = vunpack.c.h.b16 %v787
    %v2214 = vunpack.c.l.b16 %v788
    %v2215 = vunpack.c.h.b16 %v788
    %v2216 = vunpack.c.l.b16 %v789
    %v2217 = vunpack.c.h.b16 %v789
    %v2218 = vunpack.c.l.b16 %v790
    %v2219 = vunpack.c.h.b16 %v790
    %v2220 = vunpack.c.l.b16 %v791
    %v2221 = vunpack.c.h.b16 %v791
    %v2222 = vunpack.c.l.b16 %v792
    %v2223 = vunpack.c.h.b16 %v792
    %v2224 = vunpack.c.l.b16 %v793
    %v2225 = vunpack.c.h.b16 %v793
    %v2226 = vunpack.c.l.b16 %v794
    %v2227 = vunpack.c.h.b16 %v794
    %v2228 = vunpack.c.l.b16 %v795
    %v2229 = vunpack.c.h.b16 %v795
    %v2230 = vunpack.c.l.b16 %v796
    %v2231 = vunpack.c.h.b16 %v796
    %v2232 = vunpack.c.l.b16 %v797
    %v2233 = vunpack.c.h.b16 %v797
    %v2234 = vunpack.c.l.b16 %v798
    %v2235 = vunpack.c.h.b16 %v798
    %v2236 = vunpack.c.l.b16 %v799
    %v2237 = vunpack.c.h.b16 %v799
    %v2238 = vunpack.c.l.b16 %v800
    %v2239 = vunpack.c.h.b16 %v800
    %v2240 = vunpack.c.l.b16 %v801
    %v2241 = vunpack.c.h.b16 %v801
    %v2242 = vunpack.c.l.b16 %v802
    %v2243 = vunpack.c.h.b16 %v802
    %v2244 = vunpack.c.l.b16 %v803
    %v2245 = vunpack.c.h.b16 %v803
    %v2246 = vunpack.c.l.b16 %v804
    %v2247 = vunpack.c.h.b16 %v804
    %v2248 = vunpack.c.l.b16 %v805
    %v2249 = vunpack.c.h.b16 %v805
    %v2250 = vunpack.c.l.b16 %v806
    %v2251 = vunpack.c.h.b16 %v806
    %v2252 = vunpack.c.l.b16 %v807
    %v2253 = vunpack.c.h.b16 %v807
    %v2254 = vunpack.c.l.b16 %v808
    %v2255 = vunpack.c.h.b16 %v808
    %v2256 = vunpack.c.l.b16 %v809
    %v2257 = vunpack.c.h.b16 %v809
    %v2258 = vunpack.c.l.b16 %v810
    %v2259 = vunpack.c.h.b16 %v810
    %v2260 = vunpack.c.l.b16 %v811
    %v2261 = vunpack.c.h.b16 %v811
    %v2262 = vunpack.c.l.b16 %v812
    %v2263 = vunpack.c.h.b16 %v812
    %v2264 = vunpack.c.l.b16 %v813
    %v2265 = vunpack.c.h.b16 %v813
    %v2266 = vunpack.c.l.b16 %v814
    %v2267 = vunpack.c.h.b16 %v814
    %v2268 = vunpack.c.l.b16 %v815
    %v2269 = vunpack.c.h.b16 %v815
    %v2270 = vunpack.c.l.b16 %v816
    %v2271 = vunpack.c.h.b16 %v816
    %v2272 = vunpack.c.l.b16 %v817
    %v2273 = vunpack.c.h.b16 %v817
    %v2274 = vunpack.c.l.b16 %v818
    %v2275 = vunpack.c.h.b16 %v818
    %v2276 = vunpack.c.l.b16 %v819
    %v2277 = vunpack.c.h.b16 %v819
    %v2278 = vunpack.c.l.b16 %v820
    %v2279 = vunpack.c.h.b16 %v820
    %v2280 = vunpack.c.l.b16 %v821
    %v2281 = vunpack.c.h.b16 %v821
    %v2282 = vunpack.c.l.b16 %v822
    %v2283 = vunpack.c.h.b16 %v822
    %v2284 = vunpack.c.l.b16 %v823
    %v2285 = vunpack.c.h.b16 %v823
    %v2286 = vunpack.c.l.b16 %v824
    %v2287 = vunpack.c.h.b16 %v824
    %v2288 = vunpack.c.l.b16 %v825
    %v2289 = vunpack.c.h.b16 %v825
    %v2290 = vunpack.c.l.b16 %v826
    %v2291 = vunpack.c.h.b16 %v826
    %v2292 = vunpack.c.l.b16 %v827
    %v2293 = vunpack.c.h.b16 %v827
    %v2294 = vunpack.c.l.b16 %v828
    %v2295 = vunpack.c.h.b16 %v828
    %v2296 = vunpack.c.l.b16 %v829
    %v2297 = vunpack.c.h.b16 %v829
    %v2298 = vunpack.c.l.b16 %v830
    %v2299 = vunpack.c.h.b16 %v830
    %v2300 = vunpack.c.l.b16 %v831
    %v2301 = vunpack.c.h.b16 %v831
    %v2302 = vunpack.c.l.b16 %v832
    %v2303 = vunpack.c.h.b16 %v832
    %v2304 = vunpack.c.l.b16 %v833
    %v2305 = vunpack.c.h.b16 %v833
    %v2306 = vunpack.c.l.b16 %v834
    %v2307 = vunpack.c.h.b16 %v834
    %v2308 = vunpack.c.l.b16 %v835
    %v2309 = vunpack.c.h.b16 %v835
    %v2310 = vunpack.c.l.b16 %v836
    %v2311 = vunpack.c.h.b16 %v836
    %v2312 = vunpack.c.l.b16 %v837
    %v2313 = vunpack.c.h.b16 %v837
    %v2314 = vunpack.c.l.b16 %v838
    %v2315 = vunpack.c.h.b16 %v838
    %v2316 = vunpack.c.l.b16 %v839
    %v2317 = vunpack.c.h.b16 %v839
    %v2318 = vunpack.c.l.b16 %v840
    %v2319 = vunpack.c.h.b16 %v840
    %v2320 = vunpack.c.l.b16 %v841
    %v2321 = vunpack.c.h.b16 %v841
    %v2322 = vunpack.c.l.b16 %v842
    %v2323 = vunpack.c.h.b16 %v842
    %v2324 = vunpack.c.l.b16 %v843
    %v2325 = vunpack.c.h.b16 %v843
    %v2326 = vunpack.c.l.b16 %v844
    %v2327 = vunpack.c.h.b16 %v844
    %v2328 = vunpack.c.l.b16 %v845
    %v2329 = vunpack.c.h.b16 %v845
    %v2330 = vunpack.c.l.b16 %v846
    %v2331 = vunpack.c.h.b16 %v846
    %v2332 = vunpack.c.l.b16 %v847
    %v2333 = vunpack.c.h.b16 %v847
    %v2334 = vunpack.c.l.b16 %v848
    %v2335 = vunpack.c.h.b16 %v848
    %v2336 = vunpack.c.l.b16 %v849
    %v2337 = vunpack.c.h.b16 %v849
    %v2338 = vunpack.c.l.b16 %v850
    %v2339 = vunpack.c.h.b16 %v850
    %v2340 = vunpack.c.l.b16 %v851
    %v2341 = vunpack.c.h.b16 %v851
    %v2342 = vunpack.c.l.b16 %v852
    %v2343 = vunpack.c.h.b16 %v852
    %v2344 = vunpack.c.l.b16 %v853
    %v2345 = vunpack.c.h.b16 %v853
    %v2346 = vunpack.c.l.b16 %v854
    %v2347 = vunpack.c.h.b16 %v854
    %v2348 = vunpack.c.l.b16 %v855
    %v2349 = vunpack.c.h.b16 %v855
    %v2350 = vunpack.c.l.b16 %v856
    %v2351 = vunpack.c.h.b16 %v856
    %v2352 = vunpack.c.l.b16 %v857
    %v2353 = vunpack.c.h.b16 %v857
    %v2354 = vunpack.c.l.b16 %v858
    %v2355 = vunpack.c.h.b16 %v858
    %v2356 = vunpack.c.l.b16 %v859
    %v2357 = vunpack.c.h.b16 %v859
    %v2358 = vunpack.c.l.b16 %v860
    %v2359 = vunpack.c.h.b16 %v860
    %v2360 = vunpack.c.l.b16 %v861
    %v2361 = vunpack.c.h.b16 %v861
    %v2362 = vunpack.c.l.b16 %v862
    %v2363 = vunpack.c.h.b16 %v862
    %v2364 = vunpack.c.l.b16 %v863
    %v2365 = vunpack.c.h.b16 %v863
    %v2366 = vunpack.c.l.b16 %v864
    %v2367 = vunpack.c.h.b16 %v864
    %v2368 = vunpack.c.l.b16 %v865
    %v2369 = vunpack.c.h.b16 %v865
    %v2370 = vunpack.c.l.b16 %v866
    %v2371 = vunpack.c.h.b16 %v866
    %v2372 = vunpack.c.l.b16 %v867
    %v2373 = vunpack.c.h.b16 %v867
    %v2374 = vunpack.c.l.b16 %v868
    %v2375 = vunpack.c.h.b16 %v868
    %v2376 = vunpack.c.l.b16 %v869
    %v2377 = vunpack.c.h.b16 %v869
    %v2378 = vunpack.c.l.b16 %v870
    %v2379 = vunpack.c.h.b16 %v870
    %v2380 = vunpack.c.l.b16 %v871
    %v2381 = vunpack.c.h.b16 %v871
    %v2382 = vunpack.c.l.b16 %v872
    %v2383 = vunpack.c.h.b16 %v872
    %v2384 = vunpack.c.l.b16 %v873
    %v2385 = vunpack.c.h.b16 %v873
    %v2386 = vunpack.c.l.b16 %v874
    %v2387 = vunpack.c.h.b16 %v874
    %v2388 = vunpack.c.l.b16 %v875
    %v2389 = vunpack.c.h.b16 %v875
    %v2390 = vunpack.c.l.b16 %v876
    %v2391 = vunpack.c.h.b16 %v876
    %v2392 = vunpack.c.l.b16 %v877
    %v2393 = vunpack.c.h.b16 %v877
    %v2394 = vunpack.c.l.b16 %v878
    %v2395 = vunpack.c.h.b16 %v878
    %v2396 = vunpack.c.l.b16 %v879
    %v2397 = vunpack.c.h.b16 %v879
    %v2398 = vunpack.c.l.b16 %v880
    %v2399 = vunpack.c.h.b16 %v880
    %v2400 = vunpack.c.l.b16 %v881
    %v2401 = vunpack.c.h.b16 %v881
    %v2402 = vunpack.c.l.b16 %v882
    %v2403 = vunpack.c.h.b16 %v882
    %v2404 = vunpack.c.l.b16 %v883
    %v2405 = vunpack.c.h.b16 %v883
    %v2406 = vunpack.c.l.b16 %v884
    %v2407 = vunpack.c.h.b16 %v884
    %v2408 = vunpack.c.l.b16 %v885
    %v2409 = vunpack.c.h.b16 %v885
    %v2410 = vunpack.c.l.b16 %v886
    %v2411 = vunpack.c.h.b16 %v886
    %v2412 = vunpack.c.l.b16 %v887
    %v2413 = vunpack.c.h.b16 %v887
    %v2414 = vunpack.c.l.b16 %v888
    %v2415 = vunpack.c.h.b16 %v888
    %v2416 = vunpack.c.l.b16 %v889
    %v2417 = vunpack.c.h.b16 %v889
    %v2418 = vunpack.c.l.b16 %v890
    %v2419 = vunpack.c.h.b16 %v890
    %v2420 = vunpack.c.l.b16 %v891
    %v2421 = vunpack.c.h.b16 %v891
    %v2422 = vunpack.c.l.b16 %v892
    %v2423 = vunpack.c.h.b16 %v892
    %v2424 = vunpack.c.l.b16 %v893
    %v2425 = vunpack.c.h.b16 %v893
    %v2426 = vunpack.c.l.b16 %v894
    %v2427 = vunpack.c.h.b16 %v894
    %v2428 = vunpack.c.l.b16 %v895
    %v2429 = vunpack.c.h.b16 %v895
    %v2430 = vunpack.c.l.b16 %v896
    %v2431 = vunpack.c.h.b16 %v896
    %v2432 = vunpack.c.l.b16 %v897
    %v2433 = vunpack.c.h.b16 %v897
    %v2434 = vunpack.c.l.b16 %v898
    %v2435 = vunpack.c.h.b16 %v898
    %v2436 = vunpack.c.l.b16 %v899
    %v2437 = vunpack.c.h.b16 %v899
    %v2438 = vunpack.c.l.b16 %v900
    %v2439 = vunpack.c.h.b16 %v900
    %v2440 = vunpack.c.l.b16 %v901
    %v2441 = vunpack.c.h.b16 %v901
    %v2442 = vunpack.c.l.b16 %v902
    %v2443 = vunpack.c.h.b16 %v902
    %v2444 = vunpack.c.l.b16 %v903
    %v2445 = vunpack.c.h.b16 %v903
    %v2446 = vunpack.c.l.b16 %v904
    %v2447 = vunpack.c.h.b16 %v904
    %v2448 = vunpack.c.l.b16 %v905
    %v2449 = vunpack.c.h.b16 %v905
    %v2450 = vunpack.c.l.b16 %v906
    %v2451 = vunpack.c.h.b16 %v906
    %v2452 = vunpack.c.l.b16 %v907
    %v2453 = vunpack.c.h.b16 %v907
    %v2454 = vunpack.c.l.b16 %v908
    %v2455 = vunpack.c.h.b16 %v908
    %v2456 = vunpack.c.l.b16 %v909
    %v2457 = vunpack.c.h.b16 %v909
    %v2458 = vunpack.c.l.b16 %v910
    %v2459 = vunpack.c.h.b16 %v910
    %v2460 = vunpack.c.l.b16 %v911
    %v2461 = vunpack.c.h.b16 %v911
    %v2462 = vunpack.c.l.b16 %v912
    %v2463 = vunpack.c.h.b16 %v912
    %v2464 = vunpack.c.l.b16 %v913
    %v2465 = vunpack.c.h.b16 %v913
    %v2466 = vunpack.c.l.b16 %v914
    %v2467 = vunpack.c.h.b16 %v914
    %v2468 = vunpack.c.l.b16 %v915
    %v2469 = vunpack.c.h.b16 %v915
    %v2470 = vunpack.c.l.b16 %v916
    %v2471 = vunpack.c.h.b16 %v916
    %v2472 = vunpack.c.l.b16 %v917
    %v2473 = vunpack.c.h.b16 %v917
    %v2474 = vunpack.c.l.b16 %v918
    %v2475 = vunpack.c.h.b16 %v918
    %v2476 = vunpack.c.l.b16 %v919
    %v2477 = vunpack.c.h.b16 %v919
    %v2478 = vunpack.c.l.b16 %v920
    %v2479 = vunpack.c.h.b16 %v920
    %v2480 = vunpack.c.l.b16 %v921
    %v2481 = vunpack.c.h.b16 %v921
    %v2482 = vunpack.c.l.b16 %v922
    %v2483 = vunpack.c.h.b16 %v922
    %v2484 = vunpack.c.l.b16 %v923
    %v2485 = vunpack.c.h.b16 %v923
    %v2486 = vunpack.c.l.b16 %v924
    %v2487 = vunpack.c.h.b16 %v924
    %v2488 = vunpack.c.l.b16 %v925
    %v2489 = vunpack.c.h.b16 %v925
    %v2490 = vunpack.c.l.b16 %v926
    %v2491 = vunpack.c.h.b16 %v926
    %v2492 = vunpack.c.l.b16 %v927
    %v2493 = vunpack.c.h.b16 %v927
    %v2494 = vunpack.c.l.b16 %v928
    %v2495 = vunpack.c.h.b16 %v928
    %v2496 = vunpack.c.l.b16 %v929
    %v2497 = vunpack.c.h.b16 %v929
    %v2498 = vunpack.c.l.b16 %v930
    %v2499 = vunpack.c.h.b16 %v930
    %v2500 = vunpack.c.l.b16 %v931
    %v2501 = vunpack.c.h.b16 %v931
    %v2502 = vunpack.c.l.b16 %v932
    %v2503 = vunpack.c.h.b16 %v932
    %v2504 = vunpack.c.l.b16 %v933
    %v2505 = vunpack.c.h.b16 %v933
    %v2506 = vunpack.c.l.b16 %v934
    %v2507 = vunpack.c.h.b16 %v934
    %v2508 = vunpack.c.l.b16 %v935
    %v2509 = vunpack.c.h.b16 %v935
    %v2510 = vunpack.c.l.b16 %v936
    %v2511 = vunpack.c.h.b16 %v936
    %v2512 = vunpack.c.l.b16 %v937
    %v2513 = vunpack.c.h.b16 %v937
    %v2514 = vunpack.c.l.b16 %v938
    %v2515 = vunpack.c.h.b16 %v938
    %v2516 = vunpack.c.l.b16 %v939
    %v2517 = vunpack.c.h.b16 %v939
    %v2518 = vpack.c.b16 %v1502, %v1494
    %v2519 = vpack.c.b16 %v1503, %v1495
    %v2520 = vpack.c.b16 %v1504, %v1496
    %v2521 = vpack.c.b16 %v1505, %v1497
    %v2522 = vpack.c.b16 %v1506, %v1498
    %v2523 = vpack.c.b16 %v1507, %v1499
    %v2524 = vpack.c.b16 %v1508, %v1500
    %v2525 = vpack.c.b16 %v1509, %v1501
    %v2526 = vpack.c.b16 %v1518, %v1510
    %v2527 = vpack.c.b16 %v1519, %v1511
    %v2528 = vpack.c.b16 %v1520, %v1512
    %v2529 = vpack.c.b16 %v1521, %v1513
    %v2530 = vpack.c.b16 %v1522, %v1514
    %v2531 = vpack.c.b16 %v1523, %v1515
    %v2532 = vpack.c.b16 %v1524, %v1516
    %v2533 = vpack.c.b16 %v1525, %v1517
    %v2534 = vpack.c.b16 %v1534, %v1526
    %v2535 = vpack.c.b16 %v1535, %v1527
    %v2536 = vpack.c.b16 %v1536, %v1528
    %v2537 = vpack.c.b16 %v1537, %v1529
    %v2538 = vpack.c.b16 %v1538, %v1530
    %v2539 = vpack.c.b16 %v1539, %v1531
    %v2540 = vpack.c.b16 %v1540, %v1532
    %v2541 = vpack.c.b16 %v1541, %v1533
    %v2542 = vpack.c.b16 %v1550, %v1542
    %v2543 = vpack.c.b16 %v1551, %v1543
    %v2544 = vpack.c.b16 %v1552, %v1544
    %v2545 = vpack.c.b16 %v1553, %v1545
    %v2546 = vpack.c.b16 %v1554, %v1546
    %v2547 = vpack.c.b16 %v1555, %v1547
    %v2548 = vpack.c.b16 %v1556, %v1548
    %v2549 = vpack.c.b16 %v1557, %v1549
    %v2550 = vpack.c.b16 %v1566, %v1558
    %v2551 = vpack.c.b16 %v1567, %v1559
    %v2552 = vpack.c.b16 %v1568, %v1560
    %v2553 = vpack.c.b16 %v1569, %v1561
    %v2554 = vpack.c.b16 %v1570, %v1562
    %v2555 = vpack.c.b16 %v1571, %v1563
    %v2556 = vpack.c.b16 %v1572, %v1564
    %v2557 = vpack.c.b16 %v1573, %v1565
    %v2558 = vpack.c.b16 %v1582, %v1574
    %v2559 = vpack.c.b16 %v1583, %v1575
    %v2560 = vpack.c.b16 %v1584, %v1576
    %v2561 = vpack.c.b16 %v1585, %v1577
    %v2562 = vpack.c.b16 %v1586, %v1578
    %v2563 = vpack.c.b16 %v1587, %v1579
    %v2564 = vpack.c.b16 %v1588, %v1580
    %v2565 = vpack.c.b16 %v1589, %v1581
    %v2566 = vpack.c.b16 %v1598, %v1590
    %v2567 = vpack.c.b16 %v1599, %v1591
    %v2568 = vpack.c.b16 %v1600, %v1592
    %v2569 = vpack.c.b16 %v1601, %v1593
    %v2570 = vpack.c.b16 %v1602, %v1594
    %v2571 = vpack.c.b16 %v1603, %v1595
    %v2572 = vpack.c.b16 %v1604, %v1596
    %v2573 = vpack.c.b16 %v1605, %v1597
    %v2574 = vpack.c.b16 %v1614, %v1606
    %v2575 = vpack.c.b16 %v1615, %v1607
    %v2576 = vpack.c.b16 %v1616, %v1608
    %v2577 = vpack.c.b16 %v1617, %v1609
    %v2578 = vpack.c.b16 %v1618, %v1610
    %v2579 = vpack.c.b16 %v1619, %v1611
    %v2580 = vpack.c.b16 %v1620, %v1612
    %v2581 = vpack.c.b16 %v1621, %v1613
    %v2582 = vpack.c.b16 %v1630, %v1622
    %v2583 = vpack.c.b16 %v1631, %v1623
    %v2584 = vpack.c.b16 %v1632, %v1624
    %v2585 = vpack.c.b16 %v1633, %v1625
    %v2586 = vpack.c.b16 %v1634, %v1626
    %v2587 = vpack.c.b16 %v1635, %v1627
    %v2588 = vpack.c.b16 %v1636, %v1628
    %v2589 = vpack.c.b16 %v1637, %v1629
    %v2590 = vpack.c.b16 %v1646, %v1638
    %v2591 = vpack.c.b16 %v1647, %v1639
    %v2592 = vpack.c.b16 %v1648, %v1640
    %v2593 = vpack.c.b16 %v1649, %v1641
    %v2594 = vpack.c.b16 %v1650, %v1642
    %v2595 = vpack.c.b16 %v1651, %v1643
    %v2596 = vpack.c.b16 %v1652, %v1644
    %v2597 = vpack.c.b16 %v1653, %v1645
    %v2598 = vpack.c.b16 %v1662, %v1654
    %v2599 = vpack.c.b16 %v1663, %v1655
    %v2600 = vpack.c.b16 %v1664, %v1656
    %v2601 = vpack.c.b16 %v1665, %v1657
    %v2602 = vpack.c.b16 %v1666, %v1658
    %v2603 = vpack.c.b16 %v1667, %v1659
    %v2604 = vpack.c.b16 %v1668, %v1660
    %v2605 = vpack.c.b16 %v1669, %v1661
    %v2606 = vpack.c.b16 %v1678, %v1670
    %v2607 = vpack.c.b16 %v1679, %v1671
    %v2608 = vpack.c.b16 %v1680, %v1672
    %v2609 = vpack.c.b16 %v1681, %v1673
    %v2610 = vpack.c.b16 %v1682, %v1674
    %v2611 = vpack.c.b16 %v1683, %v1675
    %v2612 = vpack.c.b16 %v1684, %v1676
    %v2613 = vpack.c.b16 %v1685, %v1677
    %v2614 = vpack.c.b16 %v1694, %v1686
    %v2615 = vpack.c.b16 %v1695, %v1687
    %v2616 = vpack.c.b16 %v1696, %v1688
    %v2617 = vpack.c.b16 %v1697, %v1689
    %v2618 = vpack.c.b16 %v1698, %v1690
    %v2619 = vpack.c.b16 %v1699, %v1691
    %v2620 = vpack.c.b16 %v1700, %v1692
    %v2621 = vpack.c.b16 %v1701, %v1693
    %v2622 = vpack.c.b16 %v1710, %v1702
    %v2623 = vpack.c.b16 %v1711, %v1703
    %v2624 = vpack.c.b16 %v1712, %v1704
    %v2625 = vpack.c.b16 %v1713, %v1705
    %v2626 = vpack.c.b16 %v1714, %v1706
    %v2627 = vpack.c.b16 %v1715, %v1707
    %v2628 = vpack.c.b16 %v1716, %v1708
    %v2629 = vpack.c.b16 %v1717, %v1709
    %v2630 = vpack.c.b16 %v1726, %v1718
    %v2631 = vpack.c.b16 %v1727, %v1719
    %v2632 = vpack.c.b16 %v1728, %v1720
    %v2633 = vpack.c.b16 %v1729, %v1721
    %v2634 = vpack.c.b16 %v1730, %v1722
    %v2635 = vpack.c.b16 %v1731, %v1723
    %v2636 = vpack.c.b16 %v1732, %v1724
    %v2637 = vpack.c.b16 %v1733, %v1725
    %v2638 = vpack.c.b16 %v1742, %v1734
    %v2639 = vpack.c.b16 %v1743, %v1735
    %v2640 = vpack.c.b16 %v1744, %v1736
    %v2641 = vpack.c.b16 %v1745, %v1737
    %v2642 = vpack.c.b16 %v1746, %v1738
    %v2643 = vpack.c.b16 %v1747, %v1739
    %v2644 = vpack.c.b16 %v1748, %v1740
    %v2645 = vpack.c.b16 %v1749, %v1741
    %v2646 = vpack.c.b16 %v1758, %v1750
    %v2647 = vpack.c.b16 %v1759, %v1751
    %v2648 = vpack.c.b16 %v1760, %v1752
    %v2649 = vpack.c.b16 %v1761, %v1753
    %v2650 = vpack.c.b16 %v1762, %v1754
    %v2651 = vpack.c.b16 %v1763, %v1755
    %v2652 = vpack.c.b16 %v1764, %v1756
    %v2653 = vpack.c.b16 %v1765, %v1757
    %v2654 = vpack.c.b16 %v1774, %v1766
    %v2655 = vpack.c.b16 %v1775, %v1767
    %v2656 = vpack.c.b16 %v1776, %v1768
    %v2657 = vpack.c.b16 %v1777, %v1769
    %v2658 = vpack.c.b16 %v1778, %v1770
    %v2659 = vpack.c.b16 %v1779, %v1771
    %v2660 = vpack.c.b16 %v1780, %v1772
    %v2661 = vpack.c.b16 %v1781, %v1773
    %v2662 = vpack.c.b16 %v1790, %v1782
    %v2663 = vpack.c.b16 %v1791, %v1783
    %v2664 = vpack.c.b16 %v1792, %v1784
    %v2665 = vpack.c.b16 %v1793, %v1785
    %v2666 = vpack.c.b16 %v1794, %v1786
    %v2667 = vpack.c.b16 %v1795, %v1787
    %v2668 = vpack.c.b16 %v1796, %v1788
    %v2669 = vpack.c.b16 %v1797, %v1789
    %v2670 = vpack.c.b16 %v1806, %v1798
    %v2671 = vpack.c.b16 %v1807, %v1799
    %v2672 = vpack.c.b16 %v1808, %v1800
    %v2673 = vpack.c.b16 %v1809, %v1801
    %v2674 = vpack.c.b16 %v1810, %v1802
    %v2675 = vpack.c.b16 %v1811, %v1803
    %v2676 = vpack.c.b16 %v1812, %v1804
    %v2677 = vpack.c.b16 %v1813, %v1805
    %v2678 = vpack.c.b16 %v1822, %v1814
    %v2679 = vpack.c.b16 %v1823, %v1815
    %v2680 = vpack.c.b16 %v1824, %v1816
    %v2681 = vpack.c.b16 %v1825, %v1817
    %v2682 = vpack.c.b16 %v1826, %v1818
    %v2683 = vpack.c.b16 %v1827, %v1819
    %v2684 = vpack.c.b16 %v1828, %v1820
    %v2685 = vpack.c.b16 %v1829, %v1821
    %v2686 = vpack.c.b16 %v1838, %v1830
    %v2687 = vpack.c.b16 %v1839, %v1831
    %v2688 = vpack.c.b16 %v1840, %v1832
    %v2689 = vpack.c.b16 %v1841, %v1833
    %v2690 = vpack.c.b16 %v1842, %v1834
    %v2691 = vpack.c.b16 %v1843, %v1835
    %v2692 = vpack.c.b16 %v1844, %v1836
    %v2693 = vpack.c.b16 %v1845, %v1837
    %v2694 = vpack.c.b16 %v1854, %v1846
    %v2695 = vpack.c.b16 %v1855, %v1847
    %v2696 = vpack.c.b16 %v1856, %v1848
    %v2697 = vpack.c.b16 %v1857, %v1849
    %v2698 = vpack.c.b16 %v1858, %v1850
    %v2699 = vpack.c.b16 %v1859, %v1851
    %v2700 = vpack.c.b16 %v1860, %v1852
    %v2701 = vpack.c.b16 %v1861, %v1853
    %v2702 = vpack.c.b16 %v1870, %v1862
    %v2703 = vpack.c.b16 %v1871, %v1863
    %v2704 = vpack.c.b16 %v1872, %v1864
    %v2705 = vpack.c.b16 %v1873, %v1865
    %v2706 = vpack.c.b16 %v1874, %v1866
    %v2707 = vpack.c.b16 %v1875, %v1867
    %v2708 = vpack.c.b16 %v1876, %v1868
    %v2709 = vpack.c.b16 %v1877, %v1869
    %v2710 = vpack.c.b16 %v1886, %v1878
    %v2711 = vpack.c.b16 %v1887, %v1879
    %v2712 = vpack.c.b16 %v1888, %v1880
    %v2713 = vpack.c.b16 %v1889, %v1881
    %v2714 = vpack.c.b16 %v1890, %v1882
    %v2715 = vpack.c.b16 %v1891, %v1883
    %v2716 = vpack.c.b16 %v1892, %v1884
    %v2717 = vpack.c.b16 %v1893, %v1885
    %v2718 = vpack.c.b16 %v1902, %v1894
    %v2719 = vpack.c.b16 %v1903, %v1895
    %v2720 = vpack.c.b16 %v1904, %v1896
    %v2721 = vpack.c.b16 %v1905, %v1897
    %v2722 = vpack.c.b16 %v1906, %v1898
    %v2723 = vpack.c.b16 %v1907, %v1899
    %v2724 = vpack.c.b16 %v1908, %v1900
    %v2725 = vpack.c.b16 %v1909, %v1901
    %v2726 = vpack.c.b16 %v1918, %v1910
    %v2727 = vpack.c.b16 %v1919, %v1911
    %v2728 = vpack.c.b16 %v1920, %v1912
    %v2729 = vpack.c.b16 %v1921, %v1913
    %v2730 = vpack.c.b16 %v1922, %v1914
    %v2731 = vpack.c.b16 %v1923, %v1915
    %v2732 = vpack.c.b16 %v1924, %v1916
    %v2733 = vpack.c.b16 %v1925, %v1917
    %v2734 = vpack.c.b16 %v1934, %v1926
    %v2735 = vpack.c.b16 %v1935, %v1927
    %v2736 = vpack.c.b16 %v1936, %v1928
    %v2737 = vpack.c.b16 %v1937, %v1929
    %v2738 = vpack.c.b16 %v1938, %v1930
    %v2739 = vpack.c.b16 %v1939, %v1931
    %v2740 = vpack.c.b16 %v1940, %v1932
    %v2741 = vpack.c.b16 %v1941, %v1933
    %v2742 = vpack.c.b16 %v1950, %v1942
    %v2743 = vpack.c.b16 %v1951, %v1943
    %v2744 = vpack.c.b16 %v1952, %v1944
    %v2745 = vpack.c.b16 %v1953, %v1945
    %v2746 = vpack.c.b16 %v1954, %v1946
    %v2747 = vpack.c.b16 %v1955, %v1947
    %v2748 = vpack.c.b16 %v1956, %v1948
    %v2749 = vpack.c.b16 %v1957, %v1949
    %v2750 = vpack.c.b16 %v1966, %v1958
    %v2751 = vpack.c.b16 %v1967, %v1959
    %v2752 = vpack.c.b16 %v1968, %v1960
    %v2753 = vpack.c.b16 %v1969, %v1961
    %v2754 = vpack.c.b16 %v1970, %v1962
    %v2755 = vpack.c.b16 %v1971, %v1963
    %v2756 = vpack.c.b16 %v1972, %v1964
    %v2757 = vpack.c.b16 %v1973, %v1965
    %v2758 = vpack.c.b16 %v1982, %v1974
    %v2759 = vpack.c.b16 %v1983, %v1975
    %v2760 = vpack.c.b16 %v1984, %v1976
    %v2761 = vpack.c.b16 %v1985, %v1977
    %v2762 = vpack.c.b16 %v1986, %v1978
    %v2763 = vpack.c.b16 %v1987, %v1979
    %v2764 = vpack.c.b16 %v1988, %v1980
    %v2765 = vpack.c.b16 %v1989, %v1981
    %v2766 = vpack.c.b16 %v1998, %v1990
    %v2767 = vpack.c.b16 %v1999, %v1991
    %v2768 = vpack.c.b16 %v2000, %v1992
    %v2769 = vpack.c.b16 %v2001, %v1993
    %v2770 = vpack.c.b16 %v2002, %v1994
    %v2771 = vpack.c.b16 %v2003, %v1995
    %v2772 = vpack.c.b16 %v2004, %v1996
    %v2773 = vpack.c.b16 %v2005, %v1997
    %v2774 = vpack.c.b16 %v2014, %v2006
    %v2775 = vpack.c.b16 %v2015, %v2007
    %v2776 = vpack.c.b16 %v2016, %v2008
    %v2777 = vpack.c.b16 %v2017, %v2009
    %v2778 = vpack.c.b16 %v2018, %v2010
    %v2779 = vpack.c.b16 %v2019, %v2011
    %v2780 = vpack.c.b16 %v2020, %v2012
    %v2781 = vpack.c.b16 %v2021, %v2013
    %v2782 = vpack.c.b16 %v2030, %v2022
    %v2783 = vpack.c.b16 %v2031, %v2023
    %v2784 = vpack.c.b16 %v2032, %v2024
    %v2785 = vpack.c.b16 %v2033, %v2025
    %v2786 = vpack.c.b16 %v2034, %v2026
    %v2787 = vpack.c.b16 %v2035, %v2027
    %v2788 = vpack.c.b16 %v2036, %v2028
    %v2789 = vpack.c.b16 %v2037, %v2029
    %v2790 = vpack.c.b16 %v2046, %v2038
    %v2791 = vpack.c.b16 %v2047, %v2039
    %v2792 = vpack.c.b16 %v2048, %v2040
    %v2793 = vpack.c.b16 %v2049, %v2041
    %v2794 = vpack.c.b16 %v2050, %v2042
    %v2795 = vpack.c.b16 %v2051, %v2043
    %v2796 = vpack.c.b16 %v2052, %v2044
    %v2797 = vpack.c.b16 %v2053, %v2045
    %v2798 = vpack.c.b16 %v2062, %v2054
    %v2799 = vpack.c.b16 %v2063, %v2055
    %v2800 = vpack.c.b16 %v2064, %v2056
    %v2801 = vpack.c.b16 %v2065, %v2057
    %v2802 = vpack.c.b16 %v2066, %v2058
    %v2803 = vpack.c.b16 %v2067, %v2059
    %v2804 = vpack.c.b16 %v2068, %v2060
    %v2805 = vpack.c.b16 %v2069, %v2061
    %v2806 = vpack.c.b16 %v2078, %v2070
    %v2807 = vpack.c.b16 %v2079, %v2071
    %v2808 = vpack.c.b16 %v2080, %v2072
    %v2809 = vpack.c.b16 %v2081, %v2073
    %v2810 = vpack.c.b16 %v2082, %v2074
    %v2811 = vpack.c.b16 %v2083, %v2075
    %v2812 = vpack.c.b16 %v2084, %v2076
    %v2813 = vpack.c.b16 %v2085, %v2077
    %v2814 = vpack.c.b16 %v2094, %v2086
    %v2815 = vpack.c.b16 %v2095, %v2087
    %v2816 = vpack.c.b16 %v2096, %v2088
    %v2817 = vpack.c.b16 %v2097, %v2089
    %v2818 = vpack.c.b16 %v2098, %v2090
    %v2819 = vpack.c.b16 %v2099, %v2091
    %v2820 = vpack.c.b16 %v2100, %v2092
    %v2821 = vpack.c.b16 %v2101, %v2093
    %v2822 = vpack.c.b16 %v2110, %v2102
    %v2823 = vpack.c.b16 %v2111, %v2103
    %v2824 = vpack.c.b16 %v2112, %v2104
    %v2825 = vpack.c.b16 %v2113, %v2105
    %v2826 = vpack.c.b16 %v2114, %v2106
    %v2827 = vpack.c.b16 %v2115, %v2107
    %v2828 = vpack.c.b16 %v2116, %v2108
    %v2829 = vpack.c.b16 %v2117, %v2109
    %v2830 = vpack.c.b16 %v2126, %v2118
    %v2831 = vpack.c.b16 %v2127, %v2119
    %v2832 = vpack.c.b16 %v2128, %v2120
    %v2833 = vpack.c.b16 %v2129, %v2121
    %v2834 = vpack.c.b16 %v2130, %v2122
    %v2835 = vpack.c.b16 %v2131, %v2123
    %v2836 = vpack.c.b16 %v2132, %v2124
    %v2837 = vpack.c.b16 %v2133, %v2125
    %v2838 = vpack.c.b16 %v2142, %v2134
    %v2839 = vpack.c.b16 %v2143, %v2135
    %v2840 = vpack.c.b16 %v2144, %v2136
    %v2841 = vpack.c.b16 %v2145, %v2137
    %v2842 = vpack.c.b16 %v2146, %v2138
    %v2843 = vpack.c.b16 %v2147, %v2139
    %v2844 = vpack.c.b16 %v2148, %v2140
    %v2845 = vpack.c.b16 %v2149, %v2141
    %v2846 = vpack.c.b16 %v2158, %v2150
    %v2847 = vpack.c.b16 %v2159, %v2151
    %v2848 = vpack.c.b16 %v2160, %v2152
    %v2849 = vpack.c.b16 %v2161, %v2153
    %v2850 = vpack.c.b16 %v2162, %v2154
    %v2851 = vpack.c.b16 %v2163, %v2155
    %v2852 = vpack.c.b16 %v2164, %v2156
    %v2853 = vpack.c.b16 %v2165, %v2157
    %v2854 = vpack.c.b16 %v2174, %v2166
    %v2855 = vpack.c.b16 %v2175, %v2167
    %v2856 = vpack.c.b16 %v2176, %v2168
    %v2857 = vpack.c.b16 %v2177, %v2169
    %v2858 = vpack.c.b16 %v2178, %v2170
    %v2859 = vpack.c.b16 %v2179, %v2171
    %v2860 = vpack.c.b16 %v2180, %v2172
    %v2861 = vpack.c.b16 %v2181, %v2173
    %v2862 = vpack.c.b16 %v2190, %v2182
    %v2863 = vpack.c.b16 %v2191, %v2183
    %v2864 = vpack.c.b16 %v2192, %v2184
    %v2865 = vpack.c.b16 %v2193, %v2185
    %v2866 = vpack.c.b16 %v2194, %v2186
    %v2867 = vpack.c.b16 %v2195, %v2187
    %v2868 = vpack.c.b16 %v2196, %v2188
    %v2869 = vpack.c.b16 %v2197, %v2189
    %v2870 = vpack.c.b16 %v2206, %v2198
    %v2871 = vpack.c.b16 %v2207, %v2199
    %v2872 = vpack.c.b16 %v2208, %v2200
    %v2873 = vpack.c.b16 %v2209, %v2201
    %v2874 = vpack.c.b16 %v2210, %v2202
    %v2875 = vpack.c.b16 %v2211, %v2203
    %v2876 = vpack.c.b16 %v2212, %v2204
    %v2877 = vpack.c.b16 %v2213, %v2205
    %v2878 = vpack.c.b16 %v2222, %v2214
    %v2879 = vpack.c.b16 %v2223, %v2215
    %v2880 = vpack.c.b16 %v2224, %v2216
    %v2881 = vpack.c.b16 %v2225, %v2217
    %v2882 = vpack.c.b16 %v2226, %v2218
    %v2883 = vpack.c.b16 %v2227, %v2219
    %v2884 = vpack.c.b16 %v2228, %v2220
    %v2885 = vpack.c.b16 %v2229, %v2221
    %v2886 = vpack.c.b16 %v2238, %v2230
    %v2887 = vpack.c.b16 %v2239, %v2231
    %v2888 = vpack.c.b16 %v2240, %v2232
    %v2889 = vpack.c.b16 %v2241, %v2233
    %v2890 = vpack.c.b16 %v2242, %v2234
    %v2891 = vpack.c.b16 %v2243, %v2235
    %v2892 = vpack.c.b16 %v2244, %v2236
    %v2893 = vpack.c.b16 %v2245, %v2237
    %v2894 = vpack.c.b16 %v2254, %v2246
    %v2895 = vpack.c.b16 %v2255, %v2247
    %v2896 = vpack.c.b16 %v2256, %v2248
    %v2897 = vpack.c.b16 %v2257, %v2249
    %v2898 = vpack.c.b16 %v2258, %v2250
    %v2899 = vpack.c.b16 %v2259, %v2251
    %v2900 = vpack.c.b16 %v2260, %v2252
    %v2901 = vpack.c.b16 %v2261, %v2253
    %v2902 = vpack.c.b16 %v2270, %v2262
    %v2903 = vpack.c.b16 %v2271, %v2263
    %v2904 = vpack.c.b16 %v2272, %v2264
    %v2905 = vpack.c.b16 %v2273, %v2265
    %v2906 = vpack.c.b16 %v2274, %v2266
    %v2907 = vpack.c.b16 %v2275, %v2267
    %v2908 = vpack.c.b16 %v2276, %v2268
    %v2909 = vpack.c.b16 %v2277, %v2269
    %v2910 = vpack.c.b16 %v2286, %v2278
    %v2911 = vpack.c.b16 %v2287, %v2279
    %v2912 = vpack.c.b16 %v2288, %v2280
    %v2913 = vpack.c.b16 %v2289, %v2281
    %v2914 = vpack.c.b16 %v2290, %v2282
    %v2915 = vpack.c.b16 %v2291, %v2283
    %v2916 = vpack.c.b16 %v2292, %v2284
    %v2917 = vpack.c.b16 %v2293, %v2285
    %v2918 = vpack.c.b16 %v2302, %v2294
    %v2919 = vpack.c.b16 %v2303, %v2295
    %v2920 = vpack.c.b16 %v2304, %v2296
    %v2921 = vpack.c.b16 %v2305, %v2297
    %v2922 = vpack.c.b16 %v2306, %v2298
    %v2923 = vpack.c.b16 %v2307, %v2299
    %v2924 = vpack.c.b16 %v2308, %v2300
    %v2925 = vpack.c.b16 %v2309, %v2301
    %v2926 = vpack.c.b16 %v2318, %v2310
    %v2927 = vpack.c.b16 %v2319, %v2311
    %v2928 = vpack.c.b16 %v2320, %v2312
    %v2929 = vpack.c.b16 %v2321, %v2313
    %v2930 = vpack.c.b16 %v2322, %v2314
    %v2931 = vpack.c.b16 %v2323, %v2315
    %v2932 = vpack.c.b16 %v2324, %v2316
    %v2933 = vpack.c.b16 %v2325, %v2317
    %v2934 = vpack.c.b16 %v2334, %v2326
    %v2935 = vpack.c.b16 %v2335, %v2327
    %v2936 = vpack.c.b16 %v2336, %v2328
    %v2937 = vpack.c.b16 %v2337, %v2329
    %v2938 = vpack.c.b16 %v2338, %v2330
    %v2939 = vpack.c.b16 %v2339, %v2331
    %v2940 = vpack.c.b16 %v2340, %v2332
    %v2941 = vpack.c.b16 %v2341, %v2333
    %v2942 = vpack.c.b16 %v2350, %v2342
    %v2943 = vpack.c.b16 %v2351, %v2343
    %v2944 = vpack.c.b16 %v2352, %v2344
    %v2945 = vpack.c.b16 %v2353, %v2345
    %v2946 = vpack.c.b16 %v2354, %v2346
    %v2947 = vpack.c.b16 %v2355, %v2347
    %v2948 = vpack.c.b16 %v2356, %v2348
    %v2949 = vpack.c.b16 %v2357, %v2349
    %v2950 = vpack.c.b16 %v2366, %v2358
    %v2951 = vpack.c.b16 %v2367, %v2359
    %v2952 = vpack.c.b16 %v2368, %v2360
    %v2953 = vpack.c.b16 %v2369, %v2361
    %v2954 = vpack.c.b16 %v2370, %v2362
    %v2955 = vpack.c.b16 %v2371, %v2363
    %v2956 = vpack.c.b16 %v2372, %v2364
    %v2957 = vpack.c.b16 %v2373, %v2365
    %v2958 = vpack.c.b16 %v2382, %v2374
    %v2959 = vpack.c.b16 %v2383, %v2375
    %v2960 = vpack.c.b16 %v2384, %v2376
    %v2961 = vpack.c.b16 %v2385, %v2377
    %v2962 = vpack.c.b16 %v2386, %v2378
    %v2963 = vpack.c.b16 %v2387, %v2379
    %v2964 = vpack.c.b16 %v2388, %v2380
    %v2965 = vpack.c.b16 %v2389, %v2381
    %v2966 = vpack.c.b16 %v2398, %v2390
    %v2967 = vpack.c.b16 %v2399, %v2391
    %v2968 = vpack.c.b16 %v2400, %v2392
    %v2969 = vpack.c.b16 %v2401, %v2393
    %v2970 = vpack.c.b16 %v2402, %v2394
    %v2971 = vpack.c.b16 %v2403, %v2395
    %v2972 = vpack.c.b16 %v2404, %v2396
    %v2973 = vpack.c.b16 %v2405, %v2397
    %v2974 = vpack.c.b16 %v2414, %v2406
    %v2975 = vpack.c.b16 %v2415, %v2407
    %v2976 = vpack.c.b16 %v2416, %v2408
    %v2977 = vpack.c.b16 %v2417, %v2409
    %v2978 = vpack.c.b16 %v2418, %v2410
    %v2979 = vpack.c.b16 %v2419, %v2411
    %v2980 = vpack.c.b16 %v2420, %v2412
    %v2981 = vpack.c.b16 %v2421, %v2413
    %v2982 = vpack.c.b16 %v2430, %v2422
    %v2983 = vpack.c.b16 %v2431, %v2423
    %v2984 = vpack.c.b16 %v2432, %v2424
    %v2985 = vpack.c.b16 %v2433, %v2425
    %v2986 = vpack.c.b16 %v2434, %v2426
    %v2987 = vpack.c.b16 %v2435, %v2427
    %v2988 = vpack.c.b16 %v2436, %v2428
    %v2989 = vpack.c.b16 %v2437, %v2429
    %v2990 = vpack.c.b16 %v2446, %v2438
    %v2991 = vpack.c.b16 %v2447, %v2439
    %v2992 = vpack.c.b16 %v2448, %v2440
    %v2993 = vpack.c.b16 %v2449, %v2441
    %v2994 = vpack.c.b16 %v2450, %v2442
    %v2995 = vpack.c.b16 %v2451, %v2443
    %v2996 = vpack.c.b16 %v2452, %v2444
    %v2997 = vpack.c.b16 %v2453, %v2445
    %v2998 = vpack.c.b16 %v2462, %v2454
    %v2999 = vpack.c.b16 %v2463, %v2455
    %v3000 = vpack.c.b16 %v2464, %v2456
    %v3001 = vpack.c.b16 %v2465, %v2457
    %v3002 = vpack.c.b16 %v2466, %v2458
    %v3003 = vpack.c.b16 %v2467, %v2459
    %v3004 = vpack.c.b16 %v2468, %v2460
    %v3005 = vpack.c.b16 %v2469, %v2461
    %v3006 = vpack.c.b16 %v2478, %v2470
    %v3007 = vpack.c.b16 %v2479, %v2471
    %v3008 = vpack.c.b16 %v2480, %v2472
    %v3009 = vpack.c.b16 %v2481, %v2473
    %v3010 = vpack.c.b16 %v2482, %v2474
    %v3011 = vpack.c.b16 %v2483, %v2475
    %v3012 = vpack.c.b16 %v2484, %v2476
    %v3013 = vpack.c.b16 %v2485, %v2477
    %v3014 = vpack.c.b16 %v2494, %v2486
    %v3015 = vpack.c.b16 %v2495, %v2487
    %v3016 = vpack.c.b16 %v2496, %v2488
    %v3017 = vpack.c.b16 %v2497, %v2489
    %v3018 = vpack.c.b16 %v2498, %v2490
    %v3019 = vpack.c.b16 %v2499, %v2491
    %v3020 = vpack.c.b16 %v2500, %v2492
    %v3021 = vpack.c.b16 %v2501, %v2493
    %v3022 = vpack.c.b16 %v2510, %v2502
    %v3023 = vpack.c.b16 %v2511, %v2503
    %v3024 = vpack.c.b16 %v2512, %v2504
    %v3025 = vpack.c.b16 %v2513, %v2505
    %v3026 = vpack.c.b16 %v2514, %v2506
    %v3027 = vpack.c.b16 %v2515, %v2507
    %v3028 = vpack.c.b16 %v2516, %v2508
    %v3029 = vpack.c.b16 %v2517, %v2509
    %3542 = vmatprep.subr.bf16.mxu0 %v2575
    %3543 = vmatpush1.bf16.msra.mxu0 %v2574
    %3544 = vmatprep.subr.bf16.mxu0 %v2567
    %3545 = vmatpush1.bf16.msra.mxu0 %v2566
    %3546 = vmatprep.subr.bf16.mxu0 %v2559
    %3547 = vmatpush1.bf16.msra.mxu0 %v2558
    %3548 = vmatprep.subr.bf16.mxu0 %v2551
    %3549 = vmatpush1.bf16.msra.mxu0 %v2550
    %3550 = vmatprep.subr.bf16.mxu0 %v2543
    %3551 = vmatpush1.bf16.msra.mxu0 %v2542
    %3552 = vmatprep.subr.bf16.mxu0 %v2535
    %3553 = vmatpush1.bf16.msra.mxu0 %v2534
    %3554 = vmatprep.subr.bf16.mxu0 %v2527
    %3555 = vmatpush1.bf16.msra.mxu0 %v2526
    %3556 = vmatprep.subr.bf16.mxu0 %v2519
    %3557 = vmatpush1.bf16.msra.mxu0 %v2518
    %3558 = vmatprep.subr.bf16.mxu0 %v2639
    %3559 = vmatpush2.bf16.msra.mxu0 %v2638
    %3560 = vmatprep.subr.bf16.mxu0 %v2631
    %3561 = vmatpush2.bf16.msra.mxu0 %v2630
    %3562 = vmatprep.subr.bf16.mxu0 %v2623
    %3563 = vmatpush2.bf16.msra.mxu0 %v2622
    %3564 = vmatprep.subr.bf16.mxu0 %v2615
    %3565 = vmatpush2.bf16.msra.mxu0 %v2614
    %3566 = vmatprep.subr.bf16.mxu0 %v2607
    %3567 = vmatpush2.bf16.msra.mxu0 %v2606
    %3568 = vmatprep.subr.bf16.mxu0 %v2599
    %3569 = vmatpush2.bf16.msra.mxu0 %v2598
    %3570 = vmatprep.subr.bf16.mxu0 %v2591
    %3571 = vmatpush2.bf16.msra.mxu0 %v2590
    %3572 = vmatprep.subr.bf16.mxu0 %v2583
    %3573 = vmatpush2.bf16.msra.mxu0 %v2582
    %3574 = vmatprep.mubr.bf16.mxu0 %v421
    %3575 = vmatmul.mubr.bf16.gmra.mxu0 %v420
    %v3576 = vpop.f32.mrf.mxu0
    %v3577 = vadd.f32 %v945, %v3576
    %v3578 = vpop.f32.mrf.mxu0
    %v3579 = vadd.f32 %v949, %v3578
    %v3580 = vpop.f32.mrf.mxu0
    %v3581 = vpop.f32.mrf.mxu0
    %3582 = vdwg.mxu0
    %3583 = vmatprep.subr.bf16.mxu0 %v2703
    %3584 = vmatpush1.bf16.msra.mxu0 %v2702
    %3585 = vmatprep.subr.bf16.mxu0 %v2695
    %3586 = vmatpush1.bf16.msra.mxu0 %v2694
    %3587 = vmatprep.subr.bf16.mxu0 %v2687
    %3588 = vmatpush1.bf16.msra.mxu0 %v2686
    %3589 = vmatprep.subr.bf16.mxu0 %v2679
    %3590 = vmatpush1.bf16.msra.mxu0 %v2678
    %3591 = vmatprep.subr.bf16.mxu0 %v2671
    %3592 = vmatpush1.bf16.msra.mxu0 %v2670
    %3593 = vmatprep.subr.bf16.mxu0 %v2663
    %3594 = vmatpush1.bf16.msra.mxu0 %v2662
    %3595 = vmatprep.subr.bf16.mxu0 %v2655
    %3596 = vmatpush1.bf16.msra.mxu0 %v2654
    %3597 = vmatprep.subr.bf16.mxu0 %v2647
    %3598 = vmatpush1.bf16.msra.mxu0 %v2646
    %3599 = vmatprep.subr.bf16.mxu0 %v2767
    %3600 = vmatpush2.bf16.msra.mxu0 %v2766
    %3601 = vmatprep.subr.bf16.mxu0 %v2759
    %3602 = vmatpush2.bf16.msra.mxu0 %v2758
    %3603 = vmatprep.subr.bf16.mxu0 %v2751
    %3604 = vmatpush2.bf16.msra.mxu0 %v2750
    %3605 = vmatprep.subr.bf16.mxu0 %v2743
    %3606 = vmatpush2.bf16.msra.mxu0 %v2742
    %3607 = vmatprep.subr.bf16.mxu0 %v2735
    %3608 = vmatpush2.bf16.msra.mxu0 %v2734
    %3609 = vmatprep.subr.bf16.mxu0 %v2727
    %3610 = vmatpush2.bf16.msra.mxu0 %v2726
    %3611 = vmatprep.subr.bf16.mxu0 %v2719
    %3612 = vmatpush2.bf16.msra.mxu0 %v2718
    %3613 = vmatprep.subr.bf16.mxu0 %v2711
    %3614 = vmatpush2.bf16.msra.mxu0 %v2710
    %3615 = vmatprep.mubr.bf16.mxu0 %v423
    %3616 = vmatmul.mubr.bf16.gmra.mxu0 %v422
    %v3617 = vpop.f32.mrf.mxu0
    %v3618 = vadd.f32 %v3577, %v3617
    %v3619 = vpop.f32.mrf.mxu0
    %v3620 = vadd.f32 %v3579, %v3619
    %v3621 = vpop.f32.mrf.mxu0
    %v3622 = vpop.f32.mrf.mxu0
    %3623 = vdwg.mxu0
    %3624 = vmatprep.subr.bf16.mxu0 %v2831
    %3625 = vmatpush1.bf16.msra.mxu0 %v2830
    %3626 = vmatprep.subr.bf16.mxu0 %v2823
    %3627 = vmatpush1.bf16.msra.mxu0 %v2822
    %3628 = vmatprep.subr.bf16.mxu0 %v2815
    %3629 = vmatpush1.bf16.msra.mxu0 %v2814
    %3630 = vmatprep.subr.bf16.mxu0 %v2807
    %3631 = vmatpush1.bf16.msra.mxu0 %v2806
    %3632 = vmatprep.subr.bf16.mxu0 %v2799
    %3633 = vmatpush1.bf16.msra.mxu0 %v2798
    %3634 = vmatprep.subr.bf16.mxu0 %v2791
    %3635 = vmatpush1.bf16.msra.mxu0 %v2790
    %3636 = vmatprep.subr.bf16.mxu0 %v2783
    %3637 = vmatpush1.bf16.msra.mxu0 %v2782
    %3638 = vmatprep.subr.bf16.mxu0 %v2775
    %3639 = vmatpush1.bf16.msra.mxu0 %v2774
    %3640 = vmatprep.subr.bf16.mxu0 %v2895
    %3641 = vmatpush2.bf16.msra.mxu0 %v2894
    %3642 = vmatprep.subr.bf16.mxu0 %v2887
    %3643 = vmatpush2.bf16.msra.mxu0 %v2886
    %3644 = vmatprep.subr.bf16.mxu0 %v2879
    %3645 = vmatpush2.bf16.msra.mxu0 %v2878
    %3646 = vmatprep.subr.bf16.mxu0 %v2871
    %3647 = vmatpush2.bf16.msra.mxu0 %v2870
    %3648 = vmatprep.subr.bf16.mxu0 %v2863
    %3649 = vmatpush2.bf16.msra.mxu0 %v2862
    %3650 = vmatprep.subr.bf16.mxu0 %v2855
    %3651 = vmatpush2.bf16.msra.mxu0 %v2854
    %3652 = vmatprep.subr.bf16.mxu0 %v2847
    %3653 = vmatpush2.bf16.msra.mxu0 %v2846
    %3654 = vmatprep.subr.bf16.mxu0 %v2839
    %3655 = vmatpush2.bf16.msra.mxu0 %v2838
    %3656 = vmatprep.mubr.bf16.mxu0 %v425
    %3657 = vmatmul.mubr.bf16.gmra.mxu0 %v424
    %v3658 = vpop.f32.mrf.mxu0
    %v3659 = vadd.f32 %v3618, %v3658
    %v3660 = vpop.f32.mrf.mxu0
    %v3661 = vadd.f32 %v3620, %v3660
    %v3662 = vpop.f32.mrf.mxu0
    %v3663 = vpop.f32.mrf.mxu0
    %3664 = vdwg.mxu0
    %3665 = vmatprep.subr.bf16.mxu0 %v2959
    %3666 = vmatpush1.bf16.msra.mxu0 %v2958
    %3667 = vmatprep.subr.bf16.mxu0 %v2951
    %3668 = vmatpush1.bf16.msra.mxu0 %v2950
    %3669 = vmatprep.subr.bf16.mxu0 %v2943
    %3670 = vmatpush1.bf16.msra.mxu0 %v2942
    %3671 = vmatprep.subr.bf16.mxu0 %v2935
    %3672 = vmatpush1.bf16.msra.mxu0 %v2934
    %3673 = vmatprep.subr.bf16.mxu0 %v2927
    %3674 = vmatpush1.bf16.msra.mxu0 %v2926
    %3675 = vmatprep.subr.bf16.mxu0 %v2919
    %3676 = vmatpush1.bf16.msra.mxu0 %v2918
    %3677 = vmatprep.subr.bf16.mxu0 %v2911
    %3678 = vmatpush1.bf16.msra.mxu0 %v2910
    %3679 = vmatprep.subr.bf16.mxu0 %v2903
    %3680 = vmatpush1.bf16.msra.mxu0 %v2902
    %3681 = vmatprep.subr.bf16.mxu0 %v3023
    %3682 = vmatpush2.bf16.msra.mxu0 %v3022
    %3683 = vmatprep.subr.bf16.mxu0 %v3015
    %3684 = vmatpush2.bf16.msra.mxu0 %v3014
    %3685 = vmatprep.subr.bf16.mxu0 %v3007
    %3686 = vmatpush2.bf16.msra.mxu0 %v3006
    %3687 = vmatprep.subr.bf16.mxu0 %v2999
    %3688 = vmatpush2.bf16.msra.mxu0 %v2998
    %3689 = vmatprep.subr.bf16.mxu0 %v2991
    %3690 = vmatpush2.bf16.msra.mxu0 %v2990
    %3691 = vmatprep.subr.bf16.mxu0 %v2983
    %3692 = vmatpush2.bf16.msra.mxu0 %v2982
    %3693 = vmatprep.subr.bf16.mxu0 %v2975
    %3694 = vmatpush2.bf16.msra.mxu0 %v2974
    %3695 = vmatprep.subr.bf16.mxu0 %v2967
    %3696 = vmatpush2.bf16.msra.mxu0 %v2966
    %3697 = vmatprep.mubr.bf16.mxu0 %v427
    %3698 = vmatmul.mubr.bf16.gmra.mxu0 %v426
    %v3699 = vpop.f32.mrf.mxu0
    %v3700 = vadd.f32 %v3659, %v3699
    %v3701 = vpop.f32.mrf.mxu0
    %v3702 = vadd.f32 %v3661, %v3701
    %v3703 = vpop.f32.mrf.mxu0
    %v3704 = vpop.f32.mrf.mxu0
    %3705 = vdwg.mxu0
    %3706 = vmatprep.subr.bf16.mxu0 %v2577
    %3707 = vmatpush1.bf16.msra.mxu0 %v2576
    %3708 = vmatprep.subr.bf16.mxu0 %v2569
    %3709 = vmatpush1.bf16.msra.mxu0 %v2568
    %3710 = vmatprep.subr.bf16.mxu0 %v2561
    %3711 = vmatpush1.bf16.msra.mxu0 %v2560
    %3712 = vmatprep.subr.bf16.mxu0 %v2553
    %3713 = vmatpush1.bf16.msra.mxu0 %v2552
    %3714 = vmatprep.subr.bf16.mxu0 %v2545
    %3715 = vmatpush1.bf16.msra.mxu0 %v2544
    %3716 = vmatprep.subr.bf16.mxu0 %v2537
    %3717 = vmatpush1.bf16.msra.mxu0 %v2536
    %3718 = vmatprep.subr.bf16.mxu0 %v2529
    %3719 = vmatpush1.bf16.msra.mxu0 %v2528
    %3720 = vmatprep.subr.bf16.mxu0 %v2521
    %3721 = vmatpush1.bf16.msra.mxu0 %v2520
    %3722 = vmatprep.subr.bf16.mxu0 %v2641
    %3723 = vmatpush2.bf16.msra.mxu0 %v2640
    %3724 = vmatprep.subr.bf16.mxu0 %v2633
    %3725 = vmatpush2.bf16.msra.mxu0 %v2632
    %3726 = vmatprep.subr.bf16.mxu0 %v2625
    %3727 = vmatpush2.bf16.msra.mxu0 %v2624
    %3728 = vmatprep.subr.bf16.mxu0 %v2617
    %3729 = vmatpush2.bf16.msra.mxu0 %v2616
    %3730 = vmatprep.subr.bf16.mxu0 %v2609
    %3731 = vmatpush2.bf16.msra.mxu0 %v2608
    %3732 = vmatprep.subr.bf16.mxu0 %v2601
    %3733 = vmatpush2.bf16.msra.mxu0 %v2600
    %3734 = vmatprep.subr.bf16.mxu0 %v2593
    %3735 = vmatpush2.bf16.msra.mxu0 %v2592
    %3736 = vmatprep.subr.bf16.mxu0 %v2585
    %3737 = vmatpush2.bf16.msra.mxu0 %v2584
    %3738 = vmatprep.mubr.bf16.mxu0 %v421
    %3739 = vmatmul.mubr.bf16.gmra.mxu0 %v420
    %v3740 = vpop.f32.mrf.mxu0
    %v3741 = vadd.f32 %v953, %v3740
    %v3742 = vpop.f32.mrf.mxu0
    %v3743 = vadd.f32 %v957, %v3742
    %v3744 = vpop.f32.mrf.mxu0
    %v3745 = vpop.f32.mrf.mxu0
    %3746 = vdwg.mxu0
    %3747 = vmatprep.subr.bf16.mxu0 %v2705
    %3748 = vmatpush1.bf16.msra.mxu0 %v2704
    %3749 = vmatprep.subr.bf16.mxu0 %v2697
    %3750 = vmatpush1.bf16.msra.mxu0 %v2696
    %3751 = vmatprep.subr.bf16.mxu0 %v2689
    %3752 = vmatpush1.bf16.msra.mxu0 %v2688
    %3753 = vmatprep.subr.bf16.mxu0 %v2681
    %3754 = vmatpush1.bf16.msra.mxu0 %v2680
    %3755 = vmatprep.subr.bf16.mxu0 %v2673
    %3756 = vmatpush1.bf16.msra.mxu0 %v2672
    %3757 = vmatprep.subr.bf16.mxu0 %v2665
    %3758 = vmatpush1.bf16.msra.mxu0 %v2664
    %3759 = vmatprep.subr.bf16.mxu0 %v2657
    %3760 = vmatpush1.bf16.msra.mxu0 %v2656
    %3761 = vmatprep.subr.bf16.mxu0 %v2649
    %3762 = vmatpush1.bf16.msra.mxu0 %v2648
    %3763 = vmatprep.subr.bf16.mxu0 %v2769
    %3764 = vmatpush2.bf16.msra.mxu0 %v2768
    %3765 = vmatprep.subr.bf16.mxu0 %v2761
    %3766 = vmatpush2.bf16.msra.mxu0 %v2760
    %3767 = vmatprep.subr.bf16.mxu0 %v2753
    %3768 = vmatpush2.bf16.msra.mxu0 %v2752
    %3769 = vmatprep.subr.bf16.mxu0 %v2745
    %3770 = vmatpush2.bf16.msra.mxu0 %v2744
    %3771 = vmatprep.subr.bf16.mxu0 %v2737
    %3772 = vmatpush2.bf16.msra.mxu0 %v2736
    %3773 = vmatprep.subr.bf16.mxu0 %v2729
    %3774 = vmatpush2.bf16.msra.mxu0 %v2728
    %3775 = vmatprep.subr.bf16.mxu0 %v2721
    %3776 = vmatpush2.bf16.msra.mxu0 %v2720
    %3777 = vmatprep.subr.bf16.mxu0 %v2713
    %3778 = vmatpush2.bf16.msra.mxu0 %v2712
    %3779 = vmatprep.mubr.bf16.mxu0 %v423
    %3780 = vmatmul.mubr.bf16.gmra.mxu0 %v422
    %v3781 = vpop.f32.mrf.mxu0
    %v3782 = vadd.f32 %v3741, %v3781
    %v3783 = vpop.f32.mrf.mxu0
    %v3784 = vadd.f32 %v3743, %v3783
    %v3785 = vpop.f32.mrf.mxu0
    %v3786 = vpop.f32.mrf.mxu0
    %3787 = vdwg.mxu0
    %3788 = vmatprep.subr.bf16.mxu0 %v2833
    %3789 = vmatpush1.bf16.msra.mxu0 %v2832
    %3790 = vmatprep.subr.bf16.mxu0 %v2825
    %3791 = vmatpush1.bf16.msra.mxu0 %v2824
    %3792 = vmatprep.subr.bf16.mxu0 %v2817
    %3793 = vmatpush1.bf16.msra.mxu0 %v2816
    %3794 = vmatprep.subr.bf16.mxu0 %v2809
    %3795 = vmatpush1.bf16.msra.mxu0 %v2808
    %3796 = vmatprep.subr.bf16.mxu0 %v2801
    %3797 = vmatpush1.bf16.msra.mxu0 %v2800
    %3798 = vmatprep.subr.bf16.mxu0 %v2793
    %3799 = vmatpush1.bf16.msra.mxu0 %v2792
    %3800 = vmatprep.subr.bf16.mxu0 %v2785
    %3801 = vmatpush1.bf16.msra.mxu0 %v2784
    %3802 = vmatprep.subr.bf16.mxu0 %v2777
    %3803 = vmatpush1.bf16.msra.mxu0 %v2776
    %3804 = vmatprep.subr.bf16.mxu0 %v2897
    %3805 = vmatpush2.bf16.msra.mxu0 %v2896
    %3806 = vmatprep.subr.bf16.mxu0 %v2889
    %3807 = vmatpush2.bf16.msra.mxu0 %v2888
    %3808 = vmatprep.subr.bf16.mxu0 %v2881
    %3809 = vmatpush2.bf16.msra.mxu0 %v2880
    %3810 = vmatprep.subr.bf16.mxu0 %v2873
    %3811 = vmatpush2.bf16.msra.mxu0 %v2872
    %3812 = vmatprep.subr.bf16.mxu0 %v2865
    %3813 = vmatpush2.bf16.msra.mxu0 %v2864
    %3814 = vmatprep.subr.bf16.mxu0 %v2857
    %3815 = vmatpush2.bf16.msra.mxu0 %v2856
    %3816 = vmatprep.subr.bf16.mxu0 %v2849
    %3817 = vmatpush2.bf16.msra.mxu0 %v2848
    %3818 = vmatprep.subr.bf16.mxu0 %v2841
    %3819 = vmatpush2.bf16.msra.mxu0 %v2840
    %3820 = vmatprep.mubr.bf16.mxu0 %v425
    %3821 = vmatmul.mubr.bf16.gmra.mxu0 %v424
    %v3822 = vpop.f32.mrf.mxu0
    %v3823 = vadd.f32 %v3782, %v3822
    %v3824 = vpop.f32.mrf.mxu0
    %v3825 = vadd.f32 %v3784, %v3824
    %v3826 = vpop.f32.mrf.mxu0
    %v3827 = vpop.f32.mrf.mxu0
    %3828 = vdwg.mxu0
    %3829 = vmatprep.subr.bf16.mxu0 %v2961
    %3830 = vmatpush1.bf16.msra.mxu0 %v2960
    %3831 = vmatprep.subr.bf16.mxu0 %v2953
    %3832 = vmatpush1.bf16.msra.mxu0 %v2952
    %3833 = vmatprep.subr.bf16.mxu0 %v2945
    %3834 = vmatpush1.bf16.msra.mxu0 %v2944
    %3835 = vmatprep.subr.bf16.mxu0 %v2937
    %3836 = vmatpush1.bf16.msra.mxu0 %v2936
    %3837 = vmatprep.subr.bf16.mxu0 %v2929
    %3838 = vmatpush1.bf16.msra.mxu0 %v2928
    %3839 = vmatprep.subr.bf16.mxu0 %v2921
    %3840 = vmatpush1.bf16.msra.mxu0 %v2920
    %3841 = vmatprep.subr.bf16.mxu0 %v2913
    %3842 = vmatpush1.bf16.msra.mxu0 %v2912
    %3843 = vmatprep.subr.bf16.mxu0 %v2905
    %3844 = vmatpush1.bf16.msra.mxu0 %v2904
    %3845 = vmatprep.subr.bf16.mxu0 %v3025
    %3846 = vmatpush2.bf16.msra.mxu0 %v3024
    %3847 = vmatprep.subr.bf16.mxu0 %v3017
    %3848 = vmatpush2.bf16.msra.mxu0 %v3016
    %3849 = vmatprep.subr.bf16.mxu0 %v3009
    %3850 = vmatpush2.bf16.msra.mxu0 %v3008
    %3851 = vmatprep.subr.bf16.mxu0 %v3001
    %3852 = vmatpush2.bf16.msra.mxu0 %v3000
    %3853 = vmatprep.subr.bf16.mxu0 %v2993
    %3854 = vmatpush2.bf16.msra.mxu0 %v2992
    %3855 = vmatprep.subr.bf16.mxu0 %v2985
    %3856 = vmatpush2.bf16.msra.mxu0 %v2984
    %3857 = vmatprep.subr.bf16.mxu0 %v2977
    %3858 = vmatpush2.bf16.msra.mxu0 %v2976
    %3859 = vmatprep.subr.bf16.mxu0 %v2969
    %3860 = vmatpush2.bf16.msra.mxu0 %v2968
    %3861 = vmatprep.mubr.bf16.mxu0 %v427
    %3862 = vmatmul.mubr.bf16.gmra.mxu0 %v426
    %v3863 = vpop.f32.mrf.mxu0
    %v3864 = vadd.f32 %v3823, %v3863
    %v3865 = vpop.f32.mrf.mxu0
    %v3866 = vadd.f32 %v3825, %v3865
    %v3867 = vpop.f32.mrf.mxu0
    %v3868 = vpop.f32.mrf.mxu0
    %3869 = vdwg.mxu0
    %3870 = vmatprep.subr.bf16.mxu0 %v2579
    %3871 = vmatpush1.bf16.msra.mxu0 %v2578
    %3872 = vmatprep.subr.bf16.mxu0 %v2571
    %3873 = vmatpush1.bf16.msra.mxu0 %v2570
    %3874 = vmatprep.subr.bf16.mxu0 %v2563
    %3875 = vmatpush1.bf16.msra.mxu0 %v2562
    %3876 = vmatprep.subr.bf16.mxu0 %v2555
    %3877 = vmatpush1.bf16.msra.mxu0 %v2554
    %3878 = vmatprep.subr.bf16.mxu0 %v2547
    %3879 = vmatpush1.bf16.msra.mxu0 %v2546
    %3880 = vmatprep.subr.bf16.mxu0 %v2539
    %3881 = vmatpush1.bf16.msra.mxu0 %v2538
    %3882 = vmatprep.subr.bf16.mxu0 %v2531
    %3883 = vmatpush1.bf16.msra.mxu0 %v2530
    %3884 = vmatprep.subr.bf16.mxu0 %v2523
    %3885 = vmatpush1.bf16.msra.mxu0 %v2522
    %3886 = vmatprep.subr.bf16.mxu0 %v2643
    %3887 = vmatpush2.bf16.msra.mxu0 %v2642
    %3888 = vmatprep.subr.bf16.mxu0 %v2635
    %3889 = vmatpush2.bf16.msra.mxu0 %v2634
    %3890 = vmatprep.subr.bf16.mxu0 %v2627
    %3891 = vmatpush2.bf16.msra.mxu0 %v2626
    %3892 = vmatprep.subr.bf16.mxu0 %v2619
    %3893 = vmatpush2.bf16.msra.mxu0 %v2618
    %3894 = vmatprep.subr.bf16.mxu0 %v2611
    %3895 = vmatpush2.bf16.msra.mxu0 %v2610
    %3896 = vmatprep.subr.bf16.mxu0 %v2603
    %3897 = vmatpush2.bf16.msra.mxu0 %v2602
    %3898 = vmatprep.subr.bf16.mxu0 %v2595
    %3899 = vmatpush2.bf16.msra.mxu0 %v2594
    %3900 = vmatprep.subr.bf16.mxu0 %v2587
    %3901 = vmatpush2.bf16.msra.mxu0 %v2586
    %3902 = vmatprep.mubr.bf16.mxu0 %v421
    %3903 = vmatmul.mubr.bf16.gmra.mxu0 %v420
    %v3904 = vpop.f32.mrf.mxu0
    %v3905 = vadd.f32 %v961, %v3904
    %v3906 = vpop.f32.mrf.mxu0
    %v3907 = vadd.f32 %v965, %v3906
    %v3908 = vpop.f32.mrf.mxu0
    %v3909 = vpop.f32.mrf.mxu0
    %3910 = vdwg.mxu0
    %3911 = vmatprep.subr.bf16.mxu0 %v2707
    %3912 = vmatpush1.bf16.msra.mxu0 %v2706
    %3913 = vmatprep.subr.bf16.mxu0 %v2699
    %3914 = vmatpush1.bf16.msra.mxu0 %v2698
    %3915 = vmatprep.subr.bf16.mxu0 %v2691
    %3916 = vmatpush1.bf16.msra.mxu0 %v2690
    %3917 = vmatprep.subr.bf16.mxu0 %v2683
    %3918 = vmatpush1.bf16.msra.mxu0 %v2682
    %3919 = vmatprep.subr.bf16.mxu0 %v2675
    %3920 = vmatpush1.bf16.msra.mxu0 %v2674
    %3921 = vmatprep.subr.bf16.mxu0 %v2667
    %3922 = vmatpush1.bf16.msra.mxu0 %v2666
    %3923 = vmatprep.subr.bf16.mxu0 %v2659
    %3924 = vmatpush1.bf16.msra.mxu0 %v2658
    %3925 = vmatprep.subr.bf16.mxu0 %v2651
    %3926 = vmatpush1.bf16.msra.mxu0 %v2650
    %3927 = vmatprep.subr.bf16.mxu0 %v2771
    %3928 = vmatpush2.bf16.msra.mxu0 %v2770
    %3929 = vmatprep.subr.bf16.mxu0 %v2763
    %3930 = vmatpush2.bf16.msra.mxu0 %v2762
    %3931 = vmatprep.subr.bf16.mxu0 %v2755
    %3932 = vmatpush2.bf16.msra.mxu0 %v2754
    %3933 = vmatprep.subr.bf16.mxu0 %v2747
    %3934 = vmatpush2.bf16.msra.mxu0 %v2746
    %3935 = vmatprep.subr.bf16.mxu0 %v2739
    %3936 = vmatpush2.bf16.msra.mxu0 %v2738
    %3937 = vmatprep.subr.bf16.mxu0 %v2731
    %3938 = vmatpush2.bf16.msra.mxu0 %v2730
    %3939 = vmatprep.subr.bf16.mxu0 %v2723
    %3940 = vmatpush2.bf16.msra.mxu0 %v2722
    %3941 = vmatprep.subr.bf16.mxu0 %v2715
    %3942 = vmatpush2.bf16.msra.mxu0 %v2714
    %3943 = vmatprep.mubr.bf16.mxu0 %v423
    %3944 = vmatmul.mubr.bf16.gmra.mxu0 %v422
    %v3945 = vpop.f32.mrf.mxu0
    %v3946 = vadd.f32 %v3905, %v3945
    %v3947 = vpop.f32.mrf.mxu0
    %v3948 = vadd.f32 %v3907, %v3947
    %v3949 = vpop.f32.mrf.mxu0
    %v3950 = vpop.f32.mrf.mxu0
    %3951 = vdwg.mxu0
    %3952 = vmatprep.subr.bf16.mxu0 %v2835
    %3953 = vmatpush1.bf16.msra.mxu0 %v2834
    %3954 = vmatprep.subr.bf16.mxu0 %v2827
    %3955 = vmatpush1.bf16.msra.mxu0 %v2826
    %3956 = vmatprep.subr.bf16.mxu0 %v2819
    %3957 = vmatpush1.bf16.msra.mxu0 %v2818
    %3958 = vmatprep.subr.bf16.mxu0 %v2811
    %3959 = vmatpush1.bf16.msra.mxu0 %v2810
    %3960 = vmatprep.subr.bf16.mxu0 %v2803
    %3961 = vmatpush1.bf16.msra.mxu0 %v2802
    %3962 = vmatprep.subr.bf16.mxu0 %v2795
    %3963 = vmatpush1.bf16.msra.mxu0 %v2794
    %3964 = vmatprep.subr.bf16.mxu0 %v2787
    %3965 = vmatpush1.bf16.msra.mxu0 %v2786
    %3966 = vmatprep.subr.bf16.mxu0 %v2779
    %3967 = vmatpush1.bf16.msra.mxu0 %v2778
    %3968 = vmatprep.subr.bf16.mxu0 %v2899
    %3969 = vmatpush2.bf16.msra.mxu0 %v2898
    %3970 = vmatprep.subr.bf16.mxu0 %v2891
    %3971 = vmatpush2.bf16.msra.mxu0 %v2890
    %3972 = vmatprep.subr.bf16.mxu0 %v2883
    %3973 = vmatpush2.bf16.msra.mxu0 %v2882
    %3974 = vmatprep.subr.bf16.mxu0 %v2875
    %3975 = vmatpush2.bf16.msra.mxu0 %v2874
    %3976 = vmatprep.subr.bf16.mxu0 %v2867
    %3977 = vmatpush2.bf16.msra.mxu0 %v2866
    %3978 = vmatprep.subr.bf16.mxu0 %v2859
    %3979 = vmatpush2.bf16.msra.mxu0 %v2858
    %3980 = vmatprep.subr.bf16.mxu0 %v2851
    %3981 = vmatpush2.bf16.msra.mxu0 %v2850
    %3982 = vmatprep.subr.bf16.mxu0 %v2843
    %3983 = vmatpush2.bf16.msra.mxu0 %v2842
    %3984 = vmatprep.mubr.bf16.mxu0 %v425
    %3985 = vmatmul.mubr.bf16.gmra.mxu0 %v424
    %v3986 = vpop.f32.mrf.mxu0
    %v3987 = vadd.f32 %v3946, %v3986
    %v3988 = vpop.f32.mrf.mxu0
    %v3989 = vadd.f32 %v3948, %v3988
    %v3990 = vpop.f32.mrf.mxu0
    %v3991 = vpop.f32.mrf.mxu0
    %3992 = vdwg.mxu0
    %3993 = vmatprep.subr.bf16.mxu0 %v2963
    %3994 = vmatpush1.bf16.msra.mxu0 %v2962
    %3995 = vmatprep.subr.bf16.mxu0 %v2955
    %3996 = vmatpush1.bf16.msra.mxu0 %v2954
    %3997 = vmatprep.subr.bf16.mxu0 %v2947
    %3998 = vmatpush1.bf16.msra.mxu0 %v2946
    %3999 = vmatprep.subr.bf16.mxu0 %v2939
    %4000 = vmatpush1.bf16.msra.mxu0 %v2938
    %4001 = vmatprep.subr.bf16.mxu0 %v2931
    %4002 = vmatpush1.bf16.msra.mxu0 %v2930
    %4003 = vmatprep.subr.bf16.mxu0 %v2923
    %4004 = vmatpush1.bf16.msra.mxu0 %v2922
    %4005 = vmatprep.subr.bf16.mxu0 %v2915
    %4006 = vmatpush1.bf16.msra.mxu0 %v2914
    %4007 = vmatprep.subr.bf16.mxu0 %v2907
    %4008 = vmatpush1.bf16.msra.mxu0 %v2906
    %4009 = vmatprep.subr.bf16.mxu0 %v3027
    %4010 = vmatpush2.bf16.msra.mxu0 %v3026
    %4011 = vmatprep.subr.bf16.mxu0 %v3019
    %4012 = vmatpush2.bf16.msra.mxu0 %v3018
    %4013 = vmatprep.subr.bf16.mxu0 %v3011
    %4014 = vmatpush2.bf16.msra.mxu0 %v3010
    %4015 = vmatprep.subr.bf16.mxu0 %v3003
    %4016 = vmatpush2.bf16.msra.mxu0 %v3002
    %4017 = vmatprep.subr.bf16.mxu0 %v2995
    %4018 = vmatpush2.bf16.msra.mxu0 %v2994
    %4019 = vmatprep.subr.bf16.mxu0 %v2987
    %4020 = vmatpush2.bf16.msra.mxu0 %v2986
    %4021 = vmatprep.subr.bf16.mxu0 %v2979
    %4022 = vmatpush2.bf16.msra.mxu0 %v2978
    %4023 = vmatprep.subr.bf16.mxu0 %v2971
    %4024 = vmatpush2.bf16.msra.mxu0 %v2970
    %4025 = vmatprep.mubr.bf16.mxu0 %v427
    %4026 = vmatmul.mubr.bf16.gmra.mxu0 %v426
    %v4027 = vpop.f32.mrf.mxu0
    %v4028 = vadd.f32 %v3987, %v4027
    %v4029 = vpop.f32.mrf.mxu0
    %v4030 = vadd.f32 %v3989, %v4029
    %v4031 = vpop.f32.mrf.mxu0
    %v4032 = vpop.f32.mrf.mxu0
    %4033 = vdwg.mxu0
    %4034 = vmatprep.subr.bf16.mxu0 %v2581
    %4035 = vmatpush1.bf16.msra.mxu0 %v2580
    %4036 = vmatprep.subr.bf16.mxu0 %v2573
    %4037 = vmatpush1.bf16.msra.mxu0 %v2572
    %4038 = vmatprep.subr.bf16.mxu0 %v2565
    %4039 = vmatpush1.bf16.msra.mxu0 %v2564
    %4040 = vmatprep.subr.bf16.mxu0 %v2557
    %4041 = vmatpush1.bf16.msra.mxu0 %v2556
    %4042 = vmatprep.subr.bf16.mxu0 %v2549
    %4043 = vmatpush1.bf16.msra.mxu0 %v2548
    %4044 = vmatprep.subr.bf16.mxu0 %v2541
    %4045 = vmatpush1.bf16.msra.mxu0 %v2540
    %4046 = vmatprep.subr.bf16.mxu0 %v2533
    %4047 = vmatpush1.bf16.msra.mxu0 %v2532
    %4048 = vmatprep.subr.bf16.mxu0 %v2525
    %4049 = vmatpush1.bf16.msra.mxu0 %v2524
    %4050 = vmatprep.subr.bf16.mxu0 %v2645
    %4051 = vmatpush2.bf16.msra.mxu0 %v2644
    %4052 = vmatprep.subr.bf16.mxu0 %v2637
    %4053 = vmatpush2.bf16.msra.mxu0 %v2636
    %4054 = vmatprep.subr.bf16.mxu0 %v2629
    %4055 = vmatpush2.bf16.msra.mxu0 %v2628
    %4056 = vmatprep.subr.bf16.mxu0 %v2621
    %4057 = vmatpush2.bf16.msra.mxu0 %v2620
    %4058 = vmatprep.subr.bf16.mxu0 %v2613
    %4059 = vmatpush2.bf16.msra.mxu0 %v2612
    %4060 = vmatprep.subr.bf16.mxu0 %v2605
    %4061 = vmatpush2.bf16.msra.mxu0 %v2604
    %4062 = vmatprep.subr.bf16.mxu0 %v2597
    %4063 = vmatpush2.bf16.msra.mxu0 %v2596
    %4064 = vmatprep.subr.bf16.mxu0 %v2589
    %4065 = vmatpush2.bf16.msra.mxu0 %v2588
    %4066 = vmatprep.mubr.bf16.mxu0 %v421
    %4067 = vmatmul.mubr.bf16.gmra.mxu0 %v420
    %v4068 = vpop.f32.mrf.mxu0
    %v4069 = vadd.f32 %v969, %v4068
    %v4070 = vpop.f32.mrf.mxu0
    %v4071 = vadd.f32 %v973, %v4070
    %v4072 = vpop.f32.mrf.mxu0
    %v4073 = vpop.f32.mrf.mxu0
    %4074 = vdwg.mxu0
    %4075 = vmatprep.subr.bf16.mxu0 %v2709
    %4076 = vmatpush1.bf16.msra.mxu0 %v2708
    %4077 = vmatprep.subr.bf16.mxu0 %v2701
    %4078 = vmatpush1.bf16.msra.mxu0 %v2700
    %4079 = vmatprep.subr.bf16.mxu0 %v2693
    %4080 = vmatpush1.bf16.msra.mxu0 %v2692
    %4081 = vmatprep.subr.bf16.mxu0 %v2685
    %4082 = vmatpush1.bf16.msra.mxu0 %v2684
    %4083 = vmatprep.subr.bf16.mxu0 %v2677
    %4084 = vmatpush1.bf16.msra.mxu0 %v2676
    %4085 = vmatprep.subr.bf16.mxu0 %v2669
    %4086 = vmatpush1.bf16.msra.mxu0 %v2668
    %4087 = vmatprep.subr.bf16.mxu0 %v2661
    %4088 = vmatpush1.bf16.msra.mxu0 %v2660
    %4089 = vmatprep.subr.bf16.mxu0 %v2653
    %4090 = vmatpush1.bf16.msra.mxu0 %v2652
    %4091 = vmatprep.subr.bf16.mxu0 %v2773
    %4092 = vmatpush2.bf16.msra.mxu0 %v2772
    %4093 = vmatprep.subr.bf16.mxu0 %v2765
    %4094 = vmatpush2.bf16.msra.mxu0 %v2764
    %4095 = vmatprep.subr.bf16.mxu0 %v2757
    %4096 = vmatpush2.bf16.msra.mxu0 %v2756
    %4097 = vmatprep.subr.bf16.mxu0 %v2749
    %4098 = vmatpush2.bf16.msra.mxu0 %v2748
    %4099 = vmatprep.subr.bf16.mxu0 %v2741
    %4100 = vmatpush2.bf16.msra.mxu0 %v2740
    %4101 = vmatprep.subr.bf16.mxu0 %v2733
    %4102 = vmatpush2.bf16.msra.mxu0 %v2732
    %4103 = vmatprep.subr.bf16.mxu0 %v2725
    %4104 = vmatpush2.bf16.msra.mxu0 %v2724
    %4105 = vmatprep.subr.bf16.mxu0 %v2717
    %4106 = vmatpush2.bf16.msra.mxu0 %v2716
    %4107 = vmatprep.mubr.bf16.mxu0 %v423
    %4108 = vmatmul.mubr.bf16.gmra.mxu0 %v422
    %v4109 = vpop.f32.mrf.mxu0
    %v4110 = vadd.f32 %v4069, %v4109
    %v4111 = vpop.f32.mrf.mxu0
    %v4112 = vadd.f32 %v4071, %v4111
    %v4113 = vpop.f32.mrf.mxu0
    %v4114 = vpop.f32.mrf.mxu0
    %4115 = vdwg.mxu0
    %4116 = vmatprep.subr.bf16.mxu0 %v2837
    %4117 = vmatpush1.bf16.msra.mxu0 %v2836
    %4118 = vmatprep.subr.bf16.mxu0 %v2829
    %4119 = vmatpush1.bf16.msra.mxu0 %v2828
    %4120 = vmatprep.subr.bf16.mxu0 %v2821
    %4121 = vmatpush1.bf16.msra.mxu0 %v2820
    %4122 = vmatprep.subr.bf16.mxu0 %v2813
    %4123 = vmatpush1.bf16.msra.mxu0 %v2812
    %4124 = vmatprep.subr.bf16.mxu0 %v2805
    %4125 = vmatpush1.bf16.msra.mxu0 %v2804
    %4126 = vmatprep.subr.bf16.mxu0 %v2797
    %4127 = vmatpush1.bf16.msra.mxu0 %v2796
    %4128 = vmatprep.subr.bf16.mxu0 %v2789
    %4129 = vmatpush1.bf16.msra.mxu0 %v2788
    %4130 = vmatprep.subr.bf16.mxu0 %v2781
    %4131 = vmatpush1.bf16.msra.mxu0 %v2780
    %4132 = vmatprep.subr.bf16.mxu0 %v2901
    %4133 = vmatpush2.bf16.msra.mxu0 %v2900
    %4134 = vmatprep.subr.bf16.mxu0 %v2893
    %4135 = vmatpush2.bf16.msra.mxu0 %v2892
    %4136 = vmatprep.subr.bf16.mxu0 %v2885
    %4137 = vmatpush2.bf16.msra.mxu0 %v2884
    %4138 = vmatprep.subr.bf16.mxu0 %v2877
    %4139 = vmatpush2.bf16.msra.mxu0 %v2876
    %4140 = vmatprep.subr.bf16.mxu0 %v2869
    %4141 = vmatpush2.bf16.msra.mxu0 %v2868
    %4142 = vmatprep.subr.bf16.mxu0 %v2861
    %4143 = vmatpush2.bf16.msra.mxu0 %v2860
    %4144 = vmatprep.subr.bf16.mxu0 %v2853
    %4145 = vmatpush2.bf16.msra.mxu0 %v2852
    %4146 = vmatprep.subr.bf16.mxu0 %v2845
    %4147 = vmatpush2.bf16.msra.mxu0 %v2844
    %4148 = vmatprep.mubr.bf16.mxu0 %v425
    %4149 = vmatmul.mubr.bf16.gmra.mxu0 %v424
    %v4150 = vpop.f32.mrf.mxu0
    %v4151 = vadd.f32 %v4110, %v4150
    %v4152 = vpop.f32.mrf.mxu0
    %v4153 = vadd.f32 %v4112, %v4152
    %v4154 = vpop.f32.mrf.mxu0
    %v4155 = vpop.f32.mrf.mxu0
    %4156 = vdwg.mxu0
    %4157 = vmatprep.subr.bf16.mxu0 %v2965
    %4158 = vmatpush1.bf16.msra.mxu0 %v2964
    %4159 = vmatprep.subr.bf16.mxu0 %v2957
    %4160 = vmatpush1.bf16.msra.mxu0 %v2956
    %4161 = vmatprep.subr.bf16.mxu0 %v2949
    %4162 = vmatpush1.bf16.msra.mxu0 %v2948
    %4163 = vmatprep.subr.bf16.mxu0 %v2941
    %4164 = vmatpush1.bf16.msra.mxu0 %v2940
    %4165 = vmatprep.subr.bf16.mxu0 %v2933
    %4166 = vmatpush1.bf16.msra.mxu0 %v2932
    %4167 = vmatprep.subr.bf16.mxu0 %v2925
    %4168 = vmatpush1.bf16.msra.mxu0 %v2924
    %4169 = vmatprep.subr.bf16.mxu0 %v2917
    %4170 = vmatpush1.bf16.msra.mxu0 %v2916
    %4171 = vmatprep.subr.bf16.mxu0 %v2909
    %4172 = vmatpush1.bf16.msra.mxu0 %v2908
    %4173 = vmatprep.subr.bf16.mxu0 %v3029
    %4174 = vmatpush2.bf16.msra.mxu0 %v3028
    %4175 = vmatprep.subr.bf16.mxu0 %v3021
    %4176 = vmatpush2.bf16.msra.mxu0 %v3020
    %4177 = vmatprep.subr.bf16.mxu0 %v3013
    %4178 = vmatpush2.bf16.msra.mxu0 %v3012
    %4179 = vmatprep.subr.bf16.mxu0 %v3005
    %4180 = vmatpush2.bf16.msra.mxu0 %v3004
    %4181 = vmatprep.subr.bf16.mxu0 %v2997
    %4182 = vmatpush2.bf16.msra.mxu0 %v2996
    %4183 = vmatprep.subr.bf16.mxu0 %v2989
    %4184 = vmatpush2.bf16.msra.mxu0 %v2988
    %4185 = vmatprep.subr.bf16.mxu0 %v2981
    %4186 = vmatpush2.bf16.msra.mxu0 %v2980
    %4187 = vmatprep.subr.bf16.mxu0 %v2973
    %4188 = vmatpush2.bf16.msra.mxu0 %v2972
    %4189 = vmatprep.mubr.bf16.mxu0 %v427
    %4190 = vmatmul.mubr.bf16.gmra.mxu0 %v426
    %v4191 = vpop.f32.mrf.mxu0
    %v4192 = vadd.f32 %v4151, %v4191
    %v4193 = vpop.f32.mrf.mxu0
    %v4194 = vadd.f32 %v4153, %v4193
    %v4195 = vpop.f32.mrf.mxu0
    %v4196 = vpop.f32.mrf.mxu0
    %4197 = vdwg.mxu0
    %v4198 = vmax.f32 %v3700, 0.0
    %v4199 = vmax.f32 %v3702, 0.0
    %v4200 = vmax.f32 %v3864, 0.0
    %v4201 = vmax.f32 %v3866, 0.0
    %v4202 = vmax.f32 %v4028, 0.0
    %v4203 = vmax.f32 %v4030, 0.0
    %v4204 = vmax.f32 %v4192, 0.0
    %v4205 = vmax.f32 %v4194, 0.0
    %v4206 = vld [vmem:[#allocation12] sm:$0xff]
    %v4208 = vlaneseq
    %v4209 = vshrl.u32 %v4208, 7
    %v4210 = vsub.s32 0, %v4209
    %v4211 = vrot.slane %v4206, %v4210
    %v4212 = vlaneseq
    %v4213 = vshrl.u32 %v4212, 7
    %v4214 = vsub.s32 1, %v4213
    %v4215 = vrot.slane %v4206, %v4214
    %v4216 = vlaneseq
    %v4217 = vshrl.u32 %v4216, 7
    %v4218 = vsub.s32 2, %v4217
    %v4219 = vrot.slane %v4206, %v4218
    %v4220 = vlaneseq
    %v4221 = vshrl.u32 %v4220, 7
    %v4222 = vsub.s32 3, %v4221
    %v4223 = vrot.slane %v4206, %v4222
    %v4224 = vlaneseq
    %v4225 = vshrl.u32 %v4224, 7
    %v4226 = vsub.s32 4, %v4225
    %v4227 = vrot.slane %v4206, %v4226
    %v4228 = vlaneseq
    %v4229 = vshrl.u32 %v4228, 7
    %v4230 = vsub.s32 5, %v4229
    %v4231 = vrot.slane %v4206, %v4230
    %v4232 = vlaneseq
    %v4233 = vshrl.u32 %v4232, 7
    %v4234 = vsub.s32 6, %v4233
    %v4235 = vrot.slane %v4206, %v4234
    %v4236 = vlaneseq
    %v4237 = vshrl.u32 %v4236, 7
    %v4238 = vsub.s32 7, %v4237
    %v4239 = vrot.slane %v4206, %v4238
    %v4248 = vmul.f32 %v4198, %v4211
    %v4249 = vmul.f32 %v4199, %v4215
    %v4250 = vmul.f32 %v4200, %v4219
    %v4251 = vmul.f32 %v4201, %v4223
    %v4252 = vmul.f32 %v4202, %v4227
    %v4253 = vmul.f32 %v4203, %v4231
    %v4254 = vmul.f32 %v4204, %v4235
    %v4255 = vmul.f32 %v4205, %v4239
    %v4256 = vadd.f32 %v4248, %v4249
    %v4257 = vadd.f32 %v4256, %v4250
    %v4258 = vadd.f32 %v4257, %v4251
    %v4259 = vadd.f32 %v4258, %v4252
    %v4260 = vadd.f32 %v4259, %v4253
    %v4261 = vadd.f32 %v4260, %v4254
    %v4262 = vadd.f32 %v4261, %v4255
    %4263 = vadd.xlane.f32.xlu0 %v4262
    %v4264 = vpop.xlane.xlu0 %4263
    %v4265 = vld [vmem:[#allocation2] sm:$0x1]
    %v4267 = vlaneseq
    %v4268 = vshrl.u32 %v4267, 7
    %v4269 = vsub.s32 0, %v4268
    %v4270 = vrot.slane %v4265, %v4269
    %v4272 = vadd.f32 %v4264, %v4270
    %4273 = vxpose.xlu0.b32.start [1/16] %v4272, 128
    %4274 = vxpose.xlu0.b32.cont [2/16] 0.0, 128
    %4275 = vxpose.xlu0.b32.cont [3/16] 0.0, 128
    %4276 = vxpose.xlu0.b32.cont [4/16] 0.0, 128
    %4277 = vxpose.xlu0.b32.cont [5/16] 0.0, 128
    %4278 = vxpose.xlu0.b32.cont [6/16] 0.0, 128
    %4279 = vxpose.xlu0.b32.cont [7/16] 0.0, 128
    %4280 = vxpose.xlu0.b32.cont [8/16] 0.0, 128
    %4281 = vxpose.xlu0.b32.cont [9/16] 0.0, 128
    %4282 = vxpose.xlu0.b32.cont [10/16] 0.0, 128
    %4283 = vxpose.xlu0.b32.cont [11/16] 0.0, 128
    %4284 = vxpose.xlu0.b32.cont [12/16] 0.0, 128
    %4285 = vxpose.xlu0.b32.cont [13/16] 0.0, 128
    %4286 = vxpose.xlu0.b32.cont [14/16] 0.0, 128
    %4287 = vxpose.xlu0.b32.cont [15/16] 0.0, 128
    %4288 = vxpose.xlu0.b32.end [16/16] 0.0, 128
    %v4289 = vpop.trf.xlu0
    %v4290 = vpop.trf.xlu0
    %v4291 = vpop.trf.xlu0
    %v4292 = vpop.trf.xlu0
    %v4293 = vpop.trf.xlu0
    %v4294 = vpop.trf.xlu0
    %v4295 = vpop.trf.xlu0
    %v4296 = vpop.trf.xlu0
    %v4297 = vpop.trf.xlu0
    %v4298 = vpop.trf.xlu0
    %v4299 = vpop.trf.xlu0
    %v4300 = vpop.trf.xlu0
    %v4301 = vpop.trf.xlu0
    %v4302 = vpop.trf.xlu0
    %v4303 = vpop.trf.xlu0
    %v4304 = vpop.trf.xlu0
    %vm4305 = vcmask 57344
    %4306 = vst.msk [vmem:[#allocation14] sm:$0x1] %vm4305, %v4289
    // Predicated region
    $region54: #{tpu_custom_call.1} parent=1 // pred_check
      _
    $region55: #{tpu_custom_call.1} parent=1 // pred_check_branch
      %4308 = sbr.rel (0) target = $region57
    $region56: #{tpu_custom_call.1} parent=1 // pred_region
      %s4310 = ssub.s32 16, 16
      %4311 = vsyncadd [#allocation5], %s4310
      %s4313 = sshll.u32 [#allocation14], 4
      %s4314 = int_to_ptr.vmem [resolvable:$true] %s4313
      %4316 = dma.vmem_to_hbm [thread:$0]  %s4314, 16, %s7, [#allocation5]
    $region57: #{tpu_custom_call.1} parent=1 // pred_fallthru
      _
    // Predicated region
    $region58: #{tpu_custom_call.1} parent=1 // pred_check
      _
    $region59: #{tpu_custom_call.1} parent=1 // pred_check_branch
      %4318 = sbr.rel (0) target = $region61
    $region60: #{tpu_custom_call.1} parent=1 // pred_region
      %4319 = dma.done [#allocation5], 16
    $region61: #{tpu_custom_call.1} parent=1 // pred_fallthru
      _
    %4320 = vsyncpa [#allocation4], 1
    %4321 = vsyncpa [#allocation7], 1
    %4322 = vsyncpa [#allocation10], 1
    %4323 = vsyncpa [#allocation13], 1
    %4324 = vsyncpa [#allocation5], 1

</llo_original>
